<compile_context>
chip_gen: v5e
topology: v5e:2x2
jax: 0.10.0
libtpu: 0.0.40
codegen_flags: <defaults>
</compile_context>

<pallas_src>
import jax
import jax.numpy as jnp
import numpy as np
from jax.experimental import pallas as pl
from jax.experimental.pallas import tpu as pltpu

_LANE = 128


def residual_block_kernel(x_ref, w1_ref, w2_ref, s1_ref, b1_ref, s2_ref,
                          b2_ref, out_ref, y1pad_ref):
    # x_ref    : (1, 1, T+4, W+2, Cp) bf16 pre-padded input row-tile (2-row,
    #            1-col halo), built in the wrapper.
    # w1_ref   : (3, 3, Cp, Cp)       bf16 conv1 weight, (dy, dx, Cin, Cout)
    # w2_ref   : (3, 3, Cp, Cp)       bf16 conv2 weight
    # s*/b*    : (1, Cp)              f32 folded BN scale / bias
    # out_ref  : (1, T, W, Cp)        bf16 output row-tile
    # y1pad_ref: (T+2, W+2, Cp)       bf16 VMEM scratch (padded conv2 input)
    T, W, Cp = out_ref.shape[1], out_ref.shape[2], out_ref.shape[3]
    t = pl.program_id(1)
    last_t = pl.num_programs(1) - 1

    xs = x_ref[0, 0]  # (T+4, W+2, Cp) bf16, already spatially padded

    # ---- conv1 over T+2 extended rows (the extra top/bottom row is the y1
    # halo conv2 needs), interior W cols.  Nine K=Cp accumulating matmuls
    # straight from sliced views — no im2col concat, no 3*Cp-wide temp.
    acc1 = jnp.zeros(((T + 2) * W, Cp), jnp.float32)
    for dy in range(3):
        for dx in range(3):
            patch = xs[dy:dy + T + 2, dx:dx + W, :].reshape((T + 2) * W, Cp)
            acc1 += jnp.dot(patch, w1_ref[dy, dx],
                            preferred_element_type=jnp.float32)

    # ---- bn1 + relu (f32), stage y1 (bf16) into the padded scratch ----
    y1 = jnp.maximum(acc1 * s1_ref[...] + b1_ref[...], 0.0)
    y1pad_ref[:, 1:1 + W, :] = y1.reshape(T + 2, W, Cp).astype(jnp.bfloat16)

    # y1's 1-px column halo must be zero every step (conv2 zero-pads y1).
    zcol = jnp.zeros((T + 2, 1, Cp), jnp.bfloat16)
    y1pad_ref[:, 0:1, :] = zcol
    y1pad_ref[:, W + 1:W + 2, :] = zcol

    # conv2's zero padding applies to y1 itself (NOT conv1-of-padded-x), so at
    # the image top/bottom the recomputed halo row must be zeroed instead.
    zrow = jnp.zeros((1, W + 2, Cp), jnp.bfloat16)

    @pl.when(t == 0)
    def _():
        y1pad_ref[0:1, :, :] = zrow

    @pl.when(t == last_t)
    def _():
        y1pad_ref[T + 1:T + 2, :, :] = zrow

    ys = y1pad_ref[...]  # (T+2, W+2, Cp) bf16

    # ---- conv2: nine K=Cp accumulating matmuls ----
    acc2 = jnp.zeros((T * W, Cp), jnp.float32)
    for dy in range(3):
        for dx in range(3):
            patch = ys[dy:dy + T, dx:dx + W, :].reshape(T * W, Cp)
            acc2 += jnp.dot(patch, w2_ref[dy, dx],
                            preferred_element_type=jnp.float32)

    # ---- bn2 + residual + relu, single fused epilogue, lane-dense store ----
    residual = xs[2:2 + T, 1:1 + W, :].reshape(T * W, Cp).astype(jnp.float32)
    out = jnp.maximum(acc2 * s2_ref[...] + b2_ref[...] + residual, 0.0)
    out_ref[...] = out.reshape(1, T, W, Cp).astype(out_ref.dtype)


def _prep_weight(w_oihw, c_in, c_out, cp):
    """OIHW -> (dy, dx, Cin_p, Cout_p) bf16, channel-padded to cp lanes."""
    w = jnp.transpose(w_oihw, (2, 3, 1, 0))                  # (kh, kw, Cin, Cout)
    w = jnp.pad(w, ((0, 0), (0, 0), (0, cp - c_in), (0, cp - c_out)))
    return w.astype(jnp.bfloat16)                            # (3, 3, Cp, Cp)


def _fold_bn(gamma, beta, mean, var, cp, eps):
    """Fold eval-mode BN into per-channel scale/bias, padded to cp lanes."""
    inv = gamma * jax.lax.rsqrt(var + eps)
    c = gamma.shape[0]
    scale = jnp.pad(inv, (0, cp - c)).reshape(1, cp).astype(jnp.float32)
    bias = jnp.pad(beta - mean * inv, (0, cp - c)).reshape(1, cp)
    return scale, bias.astype(jnp.float32)


def _pick_row_tile(h, target=8):
    """Row-tile size: ~8 rows per step (M = T*W ~ a few hundred), dividing H."""
    if h % target == 0:
        return target
    for cand in (16, 8, 4, 2):
        if h % cand == 0:
            return cand
    return h


def residual_block(x_nchw, w1_oihw, w2_oihw,
                   gamma1, beta1, mean1, var1,
                   gamma2, beta2, mean2, var2, eps=1e-5):
    """Forward of ResidualBlock (stride=1, downsample=None). Input NCHW."""
    B, C, H, W = x_nchw.shape
    Cout = w1_oihw.shape[0]
    assert Cout == C, "downsample=None requires in_channels == out_channels"

    # Round channels up to a full lane group (128) for lane-dense compute.
    Cp = ((max(C, Cout) + _LANE - 1) // _LANE) * _LANE

    T = _pick_row_tile(H)
    NT = H // T

    # NCHW -> NHWC, pad channels, pre-pad spatially (2 rows / 1 col — the two
    # stacked 3x3 convs need a 2-row halo), cast to bf16 at the HBM boundary.
    x_nhwc = jnp.transpose(x_nchw, (0, 2, 3, 1))
    x_p = jnp.pad(x_nhwc,
                  ((0, 0), (2, 2), (1, 1), (0, Cp - C))).astype(jnp.bfloat16)
    # Overlapping row tiles with a 2-row halo each side: (B, NT, T+4, W+2, Cp).
    x_tiles = jnp.stack([x_p[:, i * T:i * T + T + 4] for i in range(NT)],
                        axis=1)

    w1 = _prep_weight(w1_oihw, C, Cout, Cp)
    w2 = _prep_weight(w2_oihw, Cout, Cout, Cp)
    s1, b1 = _fold_bn(gamma1, beta1, mean1, var1, Cp, eps)
    s2, b2 = _fold_bn(gamma2, beta2, mean2, var2, Cp, eps)

    out_p = pl.pallas_call(
        residual_block_kernel,
        out_shape=jax.ShapeDtypeStruct((B, H, W, Cp), jnp.bfloat16),
        grid_spec=pltpu.PrefetchScalarGridSpec(
            num_scalar_prefetch=0,
            grid=(B, NT),
            in_specs=[
                pl.BlockSpec((1, 1, T + 4, W + 2, Cp),
                             lambda b, t: (b, t, 0, 0, 0)),
                pl.BlockSpec((3, 3, Cp, Cp), lambda b, t: (0, 0, 0, 0)),
                pl.BlockSpec((3, 3, Cp, Cp), lambda b, t: (0, 0, 0, 0)),
                pl.BlockSpec((1, Cp), lambda b, t: (0, 0)),
                pl.BlockSpec((1, Cp), lambda b, t: (0, 0)),
                pl.BlockSpec((1, Cp), lambda b, t: (0, 0)),
                pl.BlockSpec((1, Cp), lambda b, t: (0, 0)),
            ],
            out_specs=pl.BlockSpec((1, T, W, Cp), lambda b, t: (b, t, 0, 0)),
            scratch_shapes=[
                pltpu.VMEM((T + 2, W + 2, Cp), jnp.bfloat16),  # padded conv2 in
            ],
        ),
        # Both axes fully independent: feeds both v7x TensorCores even at B=1
        # and gives the auto-pipeline multiple steps to overlap.  Per-step
        # working set is ~1.5 MB incl. double buffering — well inside the
        # default scoped-VMEM limit on v5e/v6e/v7x at real ResNet sizes.
        compiler_params=pltpu.CompilerParams(
            dimension_semantics=("parallel", "parallel")),
    )(x_tiles, w1, w2, s1, b1, s2, b2)

    # Drop channel padding, NHWC -> NCHW.
    out = out_p[..., :C]
    return jnp.transpose(out, (0, 3, 1, 2)).astype(x_nchw.dtype)


def residual_block_reference(x, w1, w2, g1, be1, m1, v1, g2, be2, m2, v2,
                             eps=1e-5):
    """Pure-JAX f32 reference (NCHW / OIHW), eval-mode BN."""
    def conv(x, w):
        return jax.lax.conv_general_dilated(
            x, w, window_strides=(1, 1), padding=((1, 1), (1, 1)),
            dimension_numbers=("NCHW", "OIHW", "NCHW"))

    def bn(x, g, b, m, v):
        g = g[None, :, None, None]
        b = b[None, :, None, None]
        m = m[None, :, None, None]
        v = v[None, :, None, None]
        return (x - m) / jnp.sqrt(v + eps) * g + b

    out = jax.nn.relu(bn(conv(x, w1), g1, be1, m1, v1))
    out = bn(conv(out, w2), g2, be2, m2, v2)
    return jax.nn.relu(out + x)


if __name__ == "__main__":
    B, C, H, W = 2, 4, 16, 16  # in_channels = out_channels = 4, stride = 1

    key = jax.random.PRNGKey(0)
    keys = jax.random.split(key, 12)

    x = jax.random.normal(keys[0], (B, C, H, W), jnp.float32)

    # conv weights in PyTorch OIHW layout, deterministic init
    w1_oihw = 0.1 * jax.random.normal(keys[1], (C, C, 3, 3), jnp.float32)
    w2_oihw = 0.1 * jax.random.normal(keys[2], (C, C, 3, 3), jnp.float32)

    # BatchNorm parameters / running stats (eval-mode semantics)
    gamma1 = 1.0 + 0.1 * jax.random.normal(keys[3], (C,), jnp.float32)
    beta1 = 0.1 * jax.random.normal(keys[4], (C,), jnp.float32)
    mean1 = 0.1 * jax.random.normal(keys[5], (C,), jnp.float32)
    var1 = 0.5 + jax.random.uniform(keys[6], (C,), jnp.float32)
    gamma2 = 1.0 + 0.1 * jax.random.normal(keys[7], (C,), jnp.float32)
    beta2 = 0.1 * jax.random.normal(keys[8], (C,), jnp.float32)
    mean2 = 0.1 * jax.random.normal(keys[9], (C,), jnp.float32)
    var2 = 0.5 + jax.random.uniform(keys[10], (C,), jnp.float32)

    out = residual_block(x, w1_oihw, w2_oihw,
                         gamma1, beta1, mean1, var1,
                         gamma2, beta2, mean2, var2)
    out = jax.block_until_ready(out)

    ref = residual_block_reference(x, w1_oihw, w2_oihw,
                                   gamma1, beta1, mean1, var1,
                                   gamma2, beta2, mean2, var2)
    ref = jax.block_until_ready(ref)

    # Tolerance reflects bf16 activations at the HBM boundary + bf16 MXU
    # operands (f32 accumulation) vs the pure-f32 reference.
    np.testing.assert_allclose(np.asarray(out), np.asarray(ref),
                               atol=7.5e-2, rtol=5e-2)
    print("KERNEL_OK")
</pallas_src>

<mosaic_0001>
module attributes {stable_mosaic.version = 11 : i64} {
  func.func @residual_block_kernel(%arg0: i32, %arg1: i32, %arg2: memref<1x1x12x18x128xbf16, #tpu.memory_space<vmem>>, %arg3: memref<3x3x128x128xbf16, #tpu.memory_space<vmem>>, %arg4: memref<3x3x128x128xbf16, #tpu.memory_space<vmem>>, %arg5: memref<1x128xf32, #tpu.memory_space<vmem>>, %arg6: memref<1x128xf32, #tpu.memory_space<vmem>>, %arg7: memref<1x128xf32, #tpu.memory_space<vmem>>, %arg8: memref<1x128xf32, #tpu.memory_space<vmem>>, %arg9: memref<1x8x16x128xbf16, #tpu.memory_space<vmem>>, %arg10: memref<10x18x128xbf16, #tpu.memory_space<vmem>>) attributes {dimension_semantics = [#tpu.dimension_semantics<parallel>, #tpu.dimension_semantics<parallel>], iteration_bounds = array<i64: 2, 2>, scalar_prefetch = 0 : i64, scratch_operands = 1 : i64, tpu.core_type = #tpu.core_type<tc>, window_params = [{transform_indices = @transform_0, window_bounds = array<i64: 1, 1, 12, 18, 128>}, {pipeline_mode = #tpu.pipeline_mode<synchronous>, transform_indices = @transform_1, window_bounds = array<i64: 3, 3, 128, 128>}, {pipeline_mode = #tpu.pipeline_mode<synchronous>, transform_indices = @transform_2, window_bounds = array<i64: 3, 3, 128, 128>}, {pipeline_mode = #tpu.pipeline_mode<synchronous>, transform_indices = @transform_3, window_bounds = array<i64: 1, 128>}, {pipeline_mode = #tpu.pipeline_mode<synchronous>, transform_indices = @transform_4, window_bounds = array<i64: 1, 128>}, {pipeline_mode = #tpu.pipeline_mode<synchronous>, transform_indices = @transform_5, window_bounds = array<i64: 1, 128>}, {pipeline_mode = #tpu.pipeline_mode<synchronous>, transform_indices = @transform_6, window_bounds = array<i64: 1, 128>}, {transform_indices = @transform_7, window_bounds = array<i64: 1, 8, 16, 128>}]} {
    %c0 = arith.constant 0 : index
    %c0_0 = arith.constant 0 : index
    %c0_1 = arith.constant 0 : index
    %c0_2 = arith.constant 0 : index
    %c0_3 = arith.constant 0 : index
    %0 = vector.load %arg2[%c0, %c0_0, %c0_1, %c0_2, %c0_3] : memref<1x1x12x18x128xbf16, #tpu.memory_space<vmem>>, vector<1x1x12x18x128xbf16>
    %1 = vector.shape_cast %0 : vector<1x1x12x18x128xbf16> to vector<12x18x128xbf16>
    %cst = arith.constant 0.000000e+00 : f32
    %2 = vector.broadcast %cst : f32 to vector<160x128xf32>
    %3 = vector.extract_strided_slice %1 {offsets = [0, 0, 0], sizes = [10, 16, 128], strides = [1, 1, 1]} : vector<12x18x128xbf16> to vector<10x16x128xbf16>
    %4 = vector.shape_cast %3 : vector<10x16x128xbf16> to vector<160x128xbf16>
    %c0_4 = arith.constant 0 : index
    %c0_5 = arith.constant 0 : index
    %c0_6 = arith.constant 0 : index
    %c0_7 = arith.constant 0 : index
    %5 = vector.load %arg3[%c0_4, %c0_5, %c0_6, %c0_7] : memref<3x3x128x128xbf16, #tpu.memory_space<vmem>>, vector<1x1x128x128xbf16>
    %6 = vector.shape_cast %5 : vector<1x1x128x128xbf16> to vector<128x128xbf16>
    %cst_8 = arith.constant dense<0.000000e+00> : vector<160x128xf32>
    %7 = tpu.matmul %4, %6, %cst_8 {dimension_numbers = #tpu.dot_dimension_numbers<[1], [0], [0], [1], [0, 0, 1, 1], [], []>} : vector<160x128xbf16>, vector<128x128xbf16>, vector<160x128xf32> -> vector<160x128xf32>
    %8 = arith.addf %2, %7 : vector<160x128xf32>
    %9 = vector.extract_strided_slice %1 {offsets = [0, 1, 0], sizes = [10, 16, 128], strides = [1, 1, 1]} : vector<12x18x128xbf16> to vector<10x16x128xbf16>
    %10 = vector.shape_cast %9 : vector<10x16x128xbf16> to vector<160x128xbf16>
    %c0_9 = arith.constant 0 : index
    %c1 = arith.constant 1 : index
    %c0_10 = arith.constant 0 : index
    %c0_11 = arith.constant 0 : index
    %11 = vector.load %arg3[%c0_9, %c1, %c0_10, %c0_11] : memref<3x3x128x128xbf16, #tpu.memory_space<vmem>>, vector<1x1x128x128xbf16>
    %12 = vector.shape_cast %11 : vector<1x1x128x128xbf16> to vector<128x128xbf16>
    %cst_12 = arith.constant dense<0.000000e+00> : vector<160x128xf32>
    %13 = tpu.matmul %10, %12, %cst_12 {dimension_numbers = #tpu.dot_dimension_numbers<[1], [0], [0], [1], [0, 0, 1, 1], [], []>} : vector<160x128xbf16>, vector<128x128xbf16>, vector<160x128xf32> -> vector<160x128xf32>
    %14 = arith.addf %8, %13 : vector<160x128xf32>
    %15 = vector.extract_strided_slice %1 {offsets = [0, 2, 0], sizes = [10, 16, 128], strides = [1, 1, 1]} : vector<12x18x128xbf16> to vector<10x16x128xbf16>
    %16 = vector.shape_cast %15 : vector<10x16x128xbf16> to vector<160x128xbf16>
    %c0_13 = arith.constant 0 : index
    %c2 = arith.constant 2 : index
    %c0_14 = arith.constant 0 : index
    %c0_15 = arith.constant 0 : index
    %17 = vector.load %arg3[%c0_13, %c2, %c0_14, %c0_15] : memref<3x3x128x128xbf16, #tpu.memory_space<vmem>>, vector<1x1x128x128xbf16>
    %18 = vector.shape_cast %17 : vector<1x1x128x128xbf16> to vector<128x128xbf16>
    %cst_16 = arith.constant dense<0.000000e+00> : vector<160x128xf32>
    %19 = tpu.matmul %16, %18, %cst_16 {dimension_numbers = #tpu.dot_dimension_numbers<[1], [0], [0], [1], [0, 0, 1, 1], [], []>} : vector<160x128xbf16>, vector<128x128xbf16>, vector<160x128xf32> -> vector<160x128xf32>
    %20 = arith.addf %14, %19 : vector<160x128xf32>
    %21 = vector.extract_strided_slice %1 {offsets = [1, 0, 0], sizes = [10, 16, 128], strides = [1, 1, 1]} : vector<12x18x128xbf16> to vector<10x16x128xbf16>
    %22 = vector.shape_cast %21 : vector<10x16x128xbf16> to vector<160x128xbf16>
    %c1_17 = arith.constant 1 : index
    %c0_18 = arith.constant 0 : index
    %c0_19 = arith.constant 0 : index
    %c0_20 = arith.constant 0 : index
    %23 = vector.load %arg3[%c1_17, %c0_18, %c0_19, %c0_20] : memref<3x3x128x128xbf16, #tpu.memory_space<vmem>>, vector<1x1x128x128xbf16>
    %24 = vector.shape_cast %23 : vector<1x1x128x128xbf16> to vector<128x128xbf16>
    %cst_21 = arith.constant dense<0.000000e+00> : vector<160x128xf32>
    %25 = tpu.matmul %22, %24, %cst_21 {dimension_numbers = #tpu.dot_dimension_numbers<[1], [0], [0], [1], [0, 0, 1, 1], [], []>} : vector<160x128xbf16>, vector<128x128xbf16>, vector<160x128xf32> -> vector<160x128xf32>
    %26 = arith.addf %20, %25 : vector<160x128xf32>
    %27 = vector.extract_strided_slice %1 {offsets = [1, 1, 0], sizes = [10, 16, 128], strides = [1, 1, 1]} : vector<12x18x128xbf16> to vector<10x16x128xbf16>
    %28 = vector.shape_cast %27 : vector<10x16x128xbf16> to vector<160x128xbf16>
    %c1_22 = arith.constant 1 : index
    %c1_23 = arith.constant 1 : index
    %c0_24 = arith.constant 0 : index
    %c0_25 = arith.constant 0 : index
    %29 = vector.load %arg3[%c1_22, %c1_23, %c0_24, %c0_25] : memref<3x3x128x128xbf16, #tpu.memory_space<vmem>>, vector<1x1x128x128xbf16>
    %30 = vector.shape_cast %29 : vector<1x1x128x128xbf16> to vector<128x128xbf16>
    %cst_26 = arith.constant dense<0.000000e+00> : vector<160x128xf32>
    %31 = tpu.matmul %28, %30, %cst_26 {dimension_numbers = #tpu.dot_dimension_numbers<[1], [0], [0], [1], [0, 0, 1, 1], [], []>} : vector<160x128xbf16>, vector<128x128xbf16>, vector<160x128xf32> -> vector<160x128xf32>
    %32 = arith.addf %26, %31 : vector<160x128xf32>
    %33 = vector.extract_strided_slice %1 {offsets = [1, 2, 0], sizes = [10, 16, 128], strides = [1, 1, 1]} : vector<12x18x128xbf16> to vector<10x16x128xbf16>
    %34 = vector.shape_cast %33 : vector<10x16x128xbf16> to vector<160x128xbf16>
    %c1_27 = arith.constant 1 : index
    %c2_28 = arith.constant 2 : index
    %c0_29 = arith.constant 0 : index
    %c0_30 = arith.constant 0 : index
    %35 = vector.load %arg3[%c1_27, %c2_28, %c0_29, %c0_30] : memref<3x3x128x128xbf16, #tpu.memory_space<vmem>>, vector<1x1x128x128xbf16>
    %36 = vector.shape_cast %35 : vector<1x1x128x128xbf16> to vector<128x128xbf16>
    %cst_31 = arith.constant dense<0.000000e+00> : vector<160x128xf32>
    %37 = tpu.matmul %34, %36, %cst_31 {dimension_numbers = #tpu.dot_dimension_numbers<[1], [0], [0], [1], [0, 0, 1, 1], [], []>} : vector<160x128xbf16>, vector<128x128xbf16>, vector<160x128xf32> -> vector<160x128xf32>
    %38 = arith.addf %32, %37 : vector<160x128xf32>
    %39 = vector.extract_strided_slice %1 {offsets = [2, 0, 0], sizes = [10, 16, 128], strides = [1, 1, 1]} : vector<12x18x128xbf16> to vector<10x16x128xbf16>
    %40 = vector.shape_cast %39 : vector<10x16x128xbf16> to vector<160x128xbf16>
    %c2_32 = arith.constant 2 : index
    %c0_33 = arith.constant 0 : index
    %c0_34 = arith.constant 0 : index
    %c0_35 = arith.constant 0 : index
    %41 = vector.load %arg3[%c2_32, %c0_33, %c0_34, %c0_35] : memref<3x3x128x128xbf16, #tpu.memory_space<vmem>>, vector<1x1x128x128xbf16>
    %42 = vector.shape_cast %41 : vector<1x1x128x128xbf16> to vector<128x128xbf16>
    %cst_36 = arith.constant dense<0.000000e+00> : vector<160x128xf32>
    %43 = tpu.matmul %40, %42, %cst_36 {dimension_numbers = #tpu.dot_dimension_numbers<[1], [0], [0], [1], [0, 0, 1, 1], [], []>} : vector<160x128xbf16>, vector<128x128xbf16>, vector<160x128xf32> -> vector<160x128xf32>
    %44 = arith.addf %38, %43 : vector<160x128xf32>
    %45 = vector.extract_strided_slice %1 {offsets = [2, 1, 0], sizes = [10, 16, 128], strides = [1, 1, 1]} : vector<12x18x128xbf16> to vector<10x16x128xbf16>
    %46 = vector.shape_cast %45 : vector<10x16x128xbf16> to vector<160x128xbf16>
    %c2_37 = arith.constant 2 : index
    %c1_38 = arith.constant 1 : index
    %c0_39 = arith.constant 0 : index
    %c0_40 = arith.constant 0 : index
    %47 = vector.load %arg3[%c2_37, %c1_38, %c0_39, %c0_40] : memref<3x3x128x128xbf16, #tpu.memory_space<vmem>>, vector<1x1x128x128xbf16>
    %48 = vector.shape_cast %47 : vector<1x1x128x128xbf16> to vector<128x128xbf16>
    %cst_41 = arith.constant dense<0.000000e+00> : vector<160x128xf32>
    %49 = tpu.matmul %46, %48, %cst_41 {dimension_numbers = #tpu.dot_dimension_numbers<[1], [0], [0], [1], [0, 0, 1, 1], [], []>} : vector<160x128xbf16>, vector<128x128xbf16>, vector<160x128xf32> -> vector<160x128xf32>
    %50 = arith.addf %44, %49 : vector<160x128xf32>
    %51 = vector.extract_strided_slice %1 {offsets = [2, 2, 0], sizes = [10, 16, 128], strides = [1, 1, 1]} : vector<12x18x128xbf16> to vector<10x16x128xbf16>
    %52 = vector.shape_cast %51 : vector<10x16x128xbf16> to vector<160x128xbf16>
    %c2_42 = arith.constant 2 : index
    %c2_43 = arith.constant 2 : index
    %c0_44 = arith.constant 0 : index
    %c0_45 = arith.constant 0 : index
    %53 = vector.load %arg3[%c2_42, %c2_43, %c0_44, %c0_45] : memref<3x3x128x128xbf16, #tpu.memory_space<vmem>>, vector<1x1x128x128xbf16>
    %54 = vector.shape_cast %53 : vector<1x1x128x128xbf16> to vector<128x128xbf16>
    %cst_46 = arith.constant dense<0.000000e+00> : vector<160x128xf32>
    %55 = tpu.matmul %52, %54, %cst_46 {dimension_numbers = #tpu.dot_dimension_numbers<[1], [0], [0], [1], [0, 0, 1, 1], [], []>} : vector<160x128xbf16>, vector<128x128xbf16>, vector<160x128xf32> -> vector<160x128xf32>
    %56 = arith.addf %50, %55 : vector<160x128xf32>
    %c0_47 = arith.constant 0 : index
    %c0_48 = arith.constant 0 : index
    %57 = vector.load %arg5[%c0_47, %c0_48] : memref<1x128xf32, #tpu.memory_space<vmem>>, vector<1x128xf32>
    %58 = vector.broadcast %57 : vector<1x128xf32> to vector<160x128xf32>
    %59 = arith.mulf %56, %58 : vector<160x128xf32>
    %c0_49 = arith.constant 0 : index
    %c0_50 = arith.constant 0 : index
    %60 = vector.load %arg6[%c0_49, %c0_50] : memref<1x128xf32, #tpu.memory_space<vmem>>, vector<1x128xf32>
    %61 = vector.broadcast %60 : vector<1x128xf32> to vector<160x128xf32>
    %62 = arith.addf %59, %61 : vector<160x128xf32>
    %cst_51 = arith.constant 0.000000e+00 : f32
    %63 = vector.broadcast %cst_51 : f32 to vector<160x128xf32>
    %64 = arith.maximumf %62, %63 : vector<160x128xf32>
    %65 = vector.shape_cast %64 : vector<160x128xf32> to vector<10x16x128xf32>
    %66 = arith.truncf %65 : vector<10x16x128xf32> to vector<10x16x128xbf16>
    %c0_52 = arith.constant 0 : index
    %c1_53 = arith.constant 1 : index
    %c0_54 = arith.constant 0 : index
    %67 = vector.load %arg10[%c0_52, %c1_53, %c0_54] : memref<10x18x128xbf16, #tpu.memory_space<vmem>>, vector<10x16x128xbf16>
    tpu.vector_store %arg10[%c0_52, %c1_53, %c0_54], %66 {strides = array<i32>} : memref<10x18x128xbf16, #tpu.memory_space<vmem>>, vector<10x16x128xbf16>,
    %cst_55 = arith.constant 0.000000e+00 : bf16
    %68 = vector.broadcast %cst_55 : bf16 to vector<10x1x128xbf16>
    %c0_56 = arith.constant 0 : index
    %c0_57 = arith.constant 0 : index
    %c0_58 = arith.constant 0 : index
    %69 = vector.load %arg10[%c0_56, %c0_57, %c0_58] : memref<10x18x128xbf16, #tpu.memory_space<vmem>>, vector<10x1x128xbf16>
    tpu.vector_store %arg10[%c0_56, %c0_57, %c0_58], %68 {strides = array<i32>} : memref<10x18x128xbf16, #tpu.memory_space<vmem>>, vector<10x1x128xbf16>,
    %c0_59 = arith.constant 0 : index
    %c17 = arith.constant 17 : index
    %c0_60 = arith.constant 0 : index
    %70 = vector.load %arg10[%c0_59, %c17, %c0_60] : memref<10x18x128xbf16, #tpu.memory_space<vmem>>, vector<10x1x128xbf16>
    tpu.vector_store %arg10[%c0_59, %c17, %c0_60], %68 {strides = array<i32>} : memref<10x18x128xbf16, #tpu.memory_space<vmem>>, vector<10x1x128xbf16>,
    %cst_61 = arith.constant 0.000000e+00 : bf16
    %71 = vector.broadcast %cst_61 : bf16 to vector<1x18x128xbf16>
    %c0_i32 = arith.constant 0 : i32
    %72 = arith.cmpi eq, %arg1, %c0_i32 : i32
    %73 = arith.extui %72 : i1 to i32
    %c0_i32_62 = arith.constant 0 : i32
    %74 = arith.cmpi ne, %73, %c0_i32_62 : i32
    scf.if %74 {
      %c0_122 = arith.constant 0 : index
      %c0_123 = arith.constant 0 : index
      %c0_124 = arith.constant 0 : index
      %149 = vector.load %arg10[%c0_122, %c0_123, %c0_124] : memref<10x18x128xbf16, #tpu.memory_space<vmem>>, vector<1x18x128xbf16>
      tpu.vector_store %arg10[%c0_122, %c0_123, %c0_124], %71 {strides = array<i32>} : memref<10x18x128xbf16, #tpu.memory_space<vmem>>, vector<1x18x128xbf16>,
    } else {
    }
    %c1_i32 = arith.constant 1 : i32
    %75 = arith.cmpi eq, %arg1, %c1_i32 : i32
    %76 = arith.extui %75 : i1 to i32
    %c0_i32_63 = arith.constant 0 : i32
    %77 = arith.cmpi ne, %76, %c0_i32_63 : i32
    scf.if %77 {
      %c9 = arith.constant 9 : index
      %c0_122 = arith.constant 0 : index
      %c0_123 = arith.constant 0 : index
      %149 = vector.load %arg10[%c9, %c0_122, %c0_123] : memref<10x18x128xbf16, #tpu.memory_space<vmem>>, vector<1x18x128xbf16>
      tpu.vector_store %arg10[%c9, %c0_122, %c0_123], %71 {strides = array<i32>} : memref<10x18x128xbf16, #tpu.memory_space<vmem>>, vector<1x18x128xbf16>,
    } else {
    }
    %c0_64 = arith.constant 0 : index
    %c0_65 = arith.constant 0 : index
    %c0_66 = arith.constant 0 : index
    %78 = vector.load %arg10[%c0_64, %c0_65, %c0_66] : memref<10x18x128xbf16, #tpu.memory_space<vmem>>, vector<10x18x128xbf16>
    %cst_67 = arith.constant 0.000000e+00 : f32
    %79 = vector.broadcast %cst_67 : f32 to vector<128x128xf32>
    %80 = vector.extract_strided_slice %78 {offsets = [0, 0, 0], sizes = [8, 16, 128], strides = [1, 1, 1]} : vector<10x18x128xbf16> to vector<8x16x128xbf16>
    %81 = vector.shape_cast %80 : vector<8x16x128xbf16> to vector<128x128xbf16>
    %c0_68 = arith.constant 0 : index
    %c0_69 = arith.constant 0 : index
    %c0_70 = arith.constant 0 : index
    %c0_71 = arith.constant 0 : index
    %82 = vector.load %arg4[%c0_68, %c0_69, %c0_70, %c0_71] : memref<3x3x128x128xbf16, #tpu.memory_space<vmem>>, vector<1x1x128x128xbf16>
    %83 = vector.shape_cast %82 : vector<1x1x128x128xbf16> to vector<128x128xbf16>
    %cst_72 = arith.constant dense<0.000000e+00> : vector<128x128xf32>
    %84 = tpu.matmul %81, %83, %cst_72 {dimension_numbers = #tpu.dot_dimension_numbers<[1], [0], [0], [1], [0, 0, 1, 1], [], []>} : vector<128x128xbf16>, vector<128x128xbf16>, vector<128x128xf32> -> vector<128x128xf32>
    %85 = arith.addf %79, %84 : vector<128x128xf32>
    %86 = vector.extract_strided_slice %78 {offsets = [0, 1, 0], sizes = [8, 16, 128], strides = [1, 1, 1]} : vector<10x18x128xbf16> to vector<8x16x128xbf16>
    %87 = vector.shape_cast %86 : vector<8x16x128xbf16> to vector<128x128xbf16>
    %c0_73 = arith.constant 0 : index
    %c1_74 = arith.constant 1 : index
    %c0_75 = arith.constant 0 : index
    %c0_76 = arith.constant 0 : index
    %88 = vector.load %arg4[%c0_73, %c1_74, %c0_75, %c0_76] : memref<3x3x128x128xbf16, #tpu.memory_space<vmem>>, vector<1x1x128x128xbf16>
    %89 = vector.shape_cast %88 : vector<1x1x128x128xbf16> to vector<128x128xbf16>
    %cst_77 = arith.constant dense<0.000000e+00> : vector<128x128xf32>
    %90 = tpu.matmul %87, %89, %cst_77 {dimension_numbers = #tpu.dot_dimension_numbers<[1], [0], [0], [1], [0, 0, 1, 1], [], []>} : vector<128x128xbf16>, vector<128x128xbf16>, vector<128x128xf32> -> vector<128x128xf32>
    %91 = arith.addf %85, %90 : vector<128x128xf32>
    %92 = vector.extract_strided_slice %78 {offsets = [0, 2, 0], sizes = [8, 16, 128], strides = [1, 1, 1]} : vector<10x18x128xbf16> to vector<8x16x128xbf16>
    %93 = vector.shape_cast %92 : vector<8x16x128xbf16> to vector<128x128xbf16>
    %c0_78 = arith.constant 0 : index
    %c2_79 = arith.constant 2 : index
    %c0_80 = arith.constant 0 : index
    %c0_81 = arith.constant 0 : index
    %94 = vector.load %arg4[%c0_78, %c2_79, %c0_80, %c0_81] : memref<3x3x128x128xbf16, #tpu.memory_space<vmem>>, vector<1x1x128x128xbf16>
    %95 = vector.shape_cast %94 : vector<1x1x128x128xbf16> to vector<128x128xbf16>
    %cst_82 = arith.constant dense<0.000000e+00> : vector<128x128xf32>
    %96 = tpu.matmul %93, %95, %cst_82 {dimension_numbers = #tpu.dot_dimension_numbers<[1], [0], [0], [1], [0, 0, 1, 1], [], []>} : vector<128x128xbf16>, vector<128x128xbf16>, vector<128x128xf32> -> vector<128x128xf32>
    %97 = arith.addf %91, %96 : vector<128x128xf32>
    %98 = vector.extract_strided_slice %78 {offsets = [1, 0, 0], sizes = [8, 16, 128], strides = [1, 1, 1]} : vector<10x18x128xbf16> to vector<8x16x128xbf16>
    %99 = vector.shape_cast %98 : vector<8x16x128xbf16> to vector<128x128xbf16>
    %c1_83 = arith.constant 1 : index
    %c0_84 = arith.constant 0 : index
    %c0_85 = arith.constant 0 : index
    %c0_86 = arith.constant 0 : index
    %100 = vector.load %arg4[%c1_83, %c0_84, %c0_85, %c0_86] : memref<3x3x128x128xbf16, #tpu.memory_space<vmem>>, vector<1x1x128x128xbf16>
    %101 = vector.shape_cast %100 : vector<1x1x128x128xbf16> to vector<128x128xbf16>
    %cst_87 = arith.constant dense<0.000000e+00> : vector<128x128xf32>
    %102 = tpu.matmul %99, %101, %cst_87 {dimension_numbers = #tpu.dot_dimension_numbers<[1], [0], [0], [1], [0, 0, 1, 1], [], []>} : vector<128x128xbf16>, vector<128x128xbf16>, vector<128x128xf32> -> vector<128x128xf32>
    %103 = arith.addf %97, %102 : vector<128x128xf32>
    %104 = vector.extract_strided_slice %78 {offsets = [1, 1, 0], sizes = [8, 16, 128], strides = [1, 1, 1]} : vector<10x18x128xbf16> to vector<8x16x128xbf16>
    %105 = vector.shape_cast %104 : vector<8x16x128xbf16> to vector<128x128xbf16>
    %c1_88 = arith.constant 1 : index
    %c1_89 = arith.constant 1 : index
    %c0_90 = arith.constant 0 : index
    %c0_91 = arith.constant 0 : index
    %106 = vector.load %arg4[%c1_88, %c1_89, %c0_90, %c0_91] : memref<3x3x128x128xbf16, #tpu.memory_space<vmem>>, vector<1x1x128x128xbf16>
    %107 = vector.shape_cast %106 : vector<1x1x128x128xbf16> to vector<128x128xbf16>
    %cst_92 = arith.constant dense<0.000000e+00> : vector<128x128xf32>
    %108 = tpu.matmul %105, %107, %cst_92 {dimension_numbers = #tpu.dot_dimension_numbers<[1], [0], [0], [1], [0, 0, 1, 1], [], []>} : vector<128x128xbf16>, vector<128x128xbf16>, vector<128x128xf32> -> vector<128x128xf32>
    %109 = arith.addf %103, %108 : vector<128x128xf32>
    %110 = vector.extract_strided_slice %78 {offsets = [1, 2, 0], sizes = [8, 16, 128], strides = [1, 1, 1]} : vector<10x18x128xbf16> to vector<8x16x128xbf16>
    %111 = vector.shape_cast %110 : vector<8x16x128xbf16> to vector<128x128xbf16>
    %c1_93 = arith.constant 1 : index
    %c2_94 = arith.constant 2 : index
    %c0_95 = arith.constant 0 : index
    %c0_96 = arith.constant 0 : index
    %112 = vector.load %arg4[%c1_93, %c2_94, %c0_95, %c0_96] : memref<3x3x128x128xbf16, #tpu.memory_space<vmem>>, vector<1x1x128x128xbf16>
    %113 = vector.shape_cast %112 : vector<1x1x128x128xbf16> to vector<128x128xbf16>
    %cst_97 = arith.constant dense<0.000000e+00> : vector<128x128xf32>
    %114 = tpu.matmul %111, %113, %cst_97 {dimension_numbers = #tpu.dot_dimension_numbers<[1], [0], [0], [1], [0, 0, 1, 1], [], []>} : vector<128x128xbf16>, vector<128x128xbf16>, vector<128x128xf32> -> vector<128x128xf32>
    %115 = arith.addf %109, %114 : vector<128x128xf32>
    %116 = vector.extract_strided_slice %78 {offsets = [2, 0, 0], sizes = [8, 16, 128], strides = [1, 1, 1]} : vector<10x18x128xbf16> to vector<8x16x128xbf16>
    %117 = vector.shape_cast %116 : vector<8x16x128xbf16> to vector<128x128xbf16>
    %c2_98 = arith.constant 2 : index
    %c0_99 = arith.constant 0 : index
    %c0_100 = arith.constant 0 : index
    %c0_101 = arith.constant 0 : index
    %118 = vector.load %arg4[%c2_98, %c0_99, %c0_100, %c0_101] : memref<3x3x128x128xbf16, #tpu.memory_space<vmem>>, vector<1x1x128x128xbf16>
    %119 = vector.shape_cast %118 : vector<1x1x128x128xbf16> to vector<128x128xbf16>
    %cst_102 = arith.constant dense<0.000000e+00> : vector<128x128xf32>
    %120 = tpu.matmul %117, %119, %cst_102 {dimension_numbers = #tpu.dot_dimension_numbers<[1], [0], [0], [1], [0, 0, 1, 1], [], []>} : vector<128x128xbf16>, vector<128x128xbf16>, vector<128x128xf32> -> vector<128x128xf32>
    %121 = arith.addf %115, %120 : vector<128x128xf32>
    %122 = vector.extract_strided_slice %78 {offsets = [2, 1, 0], sizes = [8, 16, 128], strides = [1, 1, 1]} : vector<10x18x128xbf16> to vector<8x16x128xbf16>
    %123 = vector.shape_cast %122 : vector<8x16x128xbf16> to vector<128x128xbf16>
    %c2_103 = arith.constant 2 : index
    %c1_104 = arith.constant 1 : index
    %c0_105 = arith.constant 0 : index
    %c0_106 = arith.constant 0 : index
    %124 = vector.load %arg4[%c2_103, %c1_104, %c0_105, %c0_106] : memref<3x3x128x128xbf16, #tpu.memory_space<vmem>>, vector<1x1x128x128xbf16>
    %125 = vector.shape_cast %124 : vector<1x1x128x128xbf16> to vector<128x128xbf16>
    %cst_107 = arith.constant dense<0.000000e+00> : vector<128x128xf32>
    %126 = tpu.matmul %123, %125, %cst_107 {dimension_numbers = #tpu.dot_dimension_numbers<[1], [0], [0], [1], [0, 0, 1, 1], [], []>} : vector<128x128xbf16>, vector<128x128xbf16>, vector<128x128xf32> -> vector<128x128xf32>
    %127 = arith.addf %121, %126 : vector<128x128xf32>
    %128 = vector.extract_strided_slice %78 {offsets = [2, 2, 0], sizes = [8, 16, 128], strides = [1, 1, 1]} : vector<10x18x128xbf16> to vector<8x16x128xbf16>
    %129 = vector.shape_cast %128 : vector<8x16x128xbf16> to vector<128x128xbf16>
    %c2_108 = arith.constant 2 : index
    %c2_109 = arith.constant 2 : index
    %c0_110 = arith.constant 0 : index
    %c0_111 = arith.constant 0 : index
    %130 = vector.load %arg4[%c2_108, %c2_109, %c0_110, %c0_111] : memref<3x3x128x128xbf16, #tpu.memory_space<vmem>>, vector<1x1x128x128xbf16>
    %131 = vector.shape_cast %130 : vector<1x1x128x128xbf16> to vector<128x128xbf16>
    %cst_112 = arith.constant dense<0.000000e+00> : vector<128x128xf32>
    %132 = tpu.matmul %129, %131, %cst_112 {dimension_numbers = #tpu.dot_dimension_numbers<[1], [0], [0], [1], [0, 0, 1, 1], [], []>} : vector<128x128xbf16>, vector<128x128xbf16>, vector<128x128xf32> -> vector<128x128xf32>
    %133 = arith.addf %127, %132 : vector<128x128xf32>
    %134 = vector.extract_strided_slice %1 {offsets = [2, 1, 0], sizes = [8, 16, 128], strides = [1, 1, 1]} : vector<12x18x128xbf16> to vector<8x16x128xbf16>
    %135 = vector.shape_cast %134 : vector<8x16x128xbf16> to vector<128x128xbf16>
    %136 = arith.extf %135 : vector<128x128xbf16> to vector<128x128xf32>
    %c0_113 = arith.constant 0 : index
    %c0_114 = arith.constant 0 : index
    %137 = vector.load %arg7[%c0_113, %c0_114] : memref<1x128xf32, #tpu.memory_space<vmem>>, vector<1x128xf32>
    %138 = vector.broadcast %137 : vector<1x128xf32> to vector<128x128xf32>
    %139 = arith.mulf %133, %138 : vector<128x128xf32>
    %c0_115 = arith.constant 0 : index
    %c0_116 = arith.constant 0 : index
    %140 = vector.load %arg8[%c0_115, %c0_116] : memref<1x128xf32, #tpu.memory_space<vmem>>, vector<1x128xf32>
    %141 = vector.broadcast %140 : vector<1x128xf32> to vector<128x128xf32>
    %142 = arith.addf %139, %141 : vector<128x128xf32>
    %143 = arith.addf %142, %136 : vector<128x128xf32>
    %cst_117 = arith.constant 0.000000e+00 : f32
    %144 = vector.broadcast %cst_117 : f32 to vector<128x128xf32>
    %145 = arith.maximumf %143, %144 : vector<128x128xf32>
    %146 = vector.shape_cast %145 : vector<128x128xf32> to vector<1x8x16x128xf32>
    %147 = arith.truncf %146 : vector<1x8x16x128xf32> to vector<1x8x16x128xbf16>
    %c0_118 = arith.constant 0 : index
    %c0_119 = arith.constant 0 : index
    %c0_120 = arith.constant 0 : index
    %c0_121 = arith.constant 0 : index
    %148 = vector.load %arg9[%c0_118, %c0_119, %c0_120, %c0_121] : memref<1x8x16x128xbf16, #tpu.memory_space<vmem>>, vector<1x8x16x128xbf16>
    tpu.vector_store %arg9[%c0_118, %c0_119, %c0_120, %c0_121], %147 {strides = array<i32>} : memref<1x8x16x128xbf16, #tpu.memory_space<vmem>>, vector<1x8x16x128xbf16>,
    return
  }
  func.func @transform_0(%arg0: i32, %arg1: i32) -> (i32, i32, i32, i32, i32) {
    %c0_i32 = arith.constant 0 : i32
    %c0_i32_0 = arith.constant 0 : i32
    %c0_i32_1 = arith.constant 0 : i32
    %c0_i32_2 = arith.constant 0 : i32
    return %arg0, %arg1, %c0_i32, %c0_i32_0, %c0_i32_1 : i32, i32, i32, i32, i32
  }
  func.func @transform_1(%arg0: i32, %arg1: i32) -> (i32, i32, i32, i32) {
    %c0_i32 = arith.constant 0 : i32
    %c0_i32_0 = arith.constant 0 : i32
    %c0_i32_1 = arith.constant 0 : i32
    %c0_i32_2 = arith.constant 0 : i32
    %c0_i32_3 = arith.constant 0 : i32
    return %c0_i32, %c0_i32_0, %c0_i32_1, %c0_i32_2 : i32, i32, i32, i32
  }
  func.func @transform_2(%arg0: i32, %arg1: i32) -> (i32, i32, i32, i32) {
    %c0_i32 = arith.constant 0 : i32
    %c0_i32_0 = arith.constant 0 : i32
    %c0_i32_1 = arith.constant 0 : i32
    %c0_i32_2 = arith.constant 0 : i32
    %c0_i32_3 = arith.constant 0 : i32
    return %c0_i32, %c0_i32_0, %c0_i32_1, %c0_i32_2 : i32, i32, i32, i32
  }
  func.func @transform_3(%arg0: i32, %arg1: i32) -> (i32, i32) {
    %c0_i32 = arith.constant 0 : i32
    %c0_i32_0 = arith.constant 0 : i32
    %c0_i32_1 = arith.constant 0 : i32
    return %c0_i32, %c0_i32_0 : i32, i32
  }
  func.func @transform_4(%arg0: i32, %arg1: i32) -> (i32, i32) {
    %c0_i32 = arith.constant 0 : i32
    %c0_i32_0 = arith.constant 0 : i32
    %c0_i32_1 = arith.constant 0 : i32
    return %c0_i32, %c0_i32_0 : i32, i32
  }
  func.func @transform_5(%arg0: i32, %arg1: i32) -> (i32, i32) {
    %c0_i32 = arith.constant 0 : i32
    %c0_i32_0 = arith.constant 0 : i32
    %c0_i32_1 = arith.constant 0 : i32
    return %c0_i32, %c0_i32_0 : i32, i32
  }
  func.func @transform_6(%arg0: i32, %arg1: i32) -> (i32, i32) {
    %c0_i32 = arith.constant 0 : i32
    %c0_i32_0 = arith.constant 0 : i32
    %c0_i32_1 = arith.constant 0 : i32
    return %c0_i32, %c0_i32_0 : i32, i32
  }
  func.func @transform_7(%arg0: i32, %arg1: i32) -> (i32, i32, i32, i32) {
    %c0_i32 = arith.constant 0 : i32
    %c0_i32_0 = arith.constant 0 : i32
    %c0_i32_1 = arith.constant 0 : i32
    return %arg0, %arg1, %c0_i32, %c0_i32_0 : i32, i32, i32, i32
  }
}

</mosaic_0001>

<llo_original>
// kernel: tpu_custom_call.1
$region0: #{tpu_custom_call.1}
  #allocation0 [shape = 'u32[]', space=smem, size = 0x4, offset = 0x4, fixed_abs, tag = 'smem constant byte address 0x4 - core index']
  #allocation1 [shape = 'u32[72,128]{1,0:T(1,128)}', space=vmem, size = 0x9000, scoped, tag = 'internal scratch']
  #allocation2 [shape = 'bf16[10,18,128]{2,1,0:T(8,128)(2,1)}', space=vmem, size = 0xf000, scoped, tag = 'scratch operand']
  %s0 = inlined_call_operand.vmem [shape: bf16[2,2,12,18,128], index: 0, kind: input, shape index: {}]
  %s1 = inlined_call_operand.vmem [shape: bf16[3,3,128,128], index: 1, kind: input, shape index: {}]
  %s2 = inlined_call_operand.hbm [shape: bf16[3,3,128,128], index: 2, kind: input, shape index: {}]
  %s3 = inlined_call_operand.vmem [shape: f32[1,128], index: 3, kind: input, shape index: {}]
  %s4 = inlined_call_operand.vmem [shape: f32[1,128], index: 4, kind: input, shape index: {}]
  %s5 = inlined_call_operand.vmem [shape: f32[1,128], index: 5, kind: input, shape index: {}]
  %s6 = inlined_call_operand.vmem [shape: f32[1,128], index: 6, kind: input, shape index: {}]
  %s7 = inlined_call_operand.hbm [shape: bf16[2,16,16,128], index: 7, kind: output, shape index: {}]
  %s8 = sld [smem:[#allocation0]]
  $region73: #{tpu_custom_call.1} parent=0
    _
  %s10 = ssub.s32 1, %s8
  %s11 = scalar_select 0, %s10, %s8
  $region1: #{tpu_custom_call.1} parent=0
    #allocation3 [shape = 'u8[294912]{0}', space=vmem, size = 0x48000, scoped, tag = 'input window, operand 2, single buffered']
    #allocation4 [shape = 's32[2]{0}', space=sflag, size = 0x8, scoped, tag = 'scoped memory for tpu_custom_call.1']
    #allocation5 [shape = 's32[2]{0}', space=sflag, size = 0x8, scoped, tag = 'scoped memory for tpu_custom_call.1']
    #allocation6 [shape = 'u8[65536]{0}', space=vmem, size = 0x10000, scoped, tag = 'output window, operand 0']
    %12 = vsyncpa [#allocation4], 0
    %13 = vsyncpa [#allocation5], 0
    %s14 = scalar_lea.sflag [#allocation5], 1
    %15 = vsyncpa %s14, 0
    loop: start=0, step=1, limit=6
    $region2: #{tpu_custom_call.1} parent=1 // loop_pre_header
      _
    $region3: #{tpu_custom_call.1} parent=1 // loop_header
      %s17 = sphi 0, %s21
      %p18 = scmp.ge.s32.totalorder %s17, 6
      %s24 = sphi 0, %s36
      %s25 = sphi 0, %s32
      %s26 = sphi 0, %s24
      %s27 = sphi 0, %s25
      %s28 = sphi 0, %s26
      %s29 = sphi 0, %s27
      %s41 = sphi 0, %s43
      %s44 = sphi 0, %s41
      %s45 = sphi 0, %s44
      %s61 = sphi 0, %s45
      %s65 = sphi 0, %s65
      %s67 = sphi 0, %s65
      %s68 = sphi 0, %s67
      %s82 = sphi 0, %s68
      %s86 = sphi 0, %s86
      %s88 = sphi 0, %s86
      %s89 = sphi 0, %s88
      %s103 = sphi 0, %s89
      %s107 = sphi 0, %s107
      %s109 = sphi 0, %s107
      %s110 = sphi 0, %s109
      %s124 = sphi 0, %s110
      %s128 = sphi 0, %s128
      %s130 = sphi 0, %s128
      %s131 = sphi 0, %s130
      %s145 = sphi 0, %s131
      %s149 = sphi 0, %s149
      %s151 = sphi 0, %s149
      %s152 = sphi 0, %s151
      %s166 = sphi 0, %s152
      %s170 = sphi 0, %s170
      %s172 = sphi 0, %s170
      %s173 = sphi 0, %s172
      %s187 = sphi 0, %s173
      %s195 = sphi 0, %s197
      %s198 = sphi 0, %s195
      %s199 = sphi 0, %s198
      %s215 = sphi 0, %s199
    $region4: #{tpu_custom_call.1} parent=1 // loop_header_branch
      %20 = sbr.rel (%p18) target = $region8
    $region5: #{tpu_custom_call.1} parent=1 // loop_body
      %s22 = ssub.s32 %s17, 1
      %s23 = ssub.s32 %s17, 2
      %s30 = sadd.s32 1, %s25
      %p31 = scmp.ge.s32.totalorder %s30, 2
      %s32 = scalar_select %p31, 0, %s30
      %s33 = sadd.s32 1, %s24
      %s34 = scalar_select %p31, %s33, %s24
      %p35 = scmp.ge.s32.totalorder %s34, 2
      %s36 = scalar_select %p35, 0, %s34
      %s37 = ssub.s32 %s24, %s36
      %s38 = ssub.s32 %s25, %s32
      %s39 = sor.u32 %s37, %s38
      %p40 = scmp.eq.s32.totalorder %s39, 0
      %s42 = sadd.s32 %s41, 1
      %s43 = scalar_select %p40, %s41, %s42
      %p46 = pneg %p40
      %p47 = scmp.eq.s32.totalorder %s17, 3
      %p48 = por %p46, %p47
      %p49 = scmp.ne.s32.totalorder %s41, %s44
      %p50 = scmp.eq.s32.totalorder %s17, 0
      %p51 = por %p49, %p50
      %p52 = scmp.ne.s32.totalorder %s41, %s44
      %p53 = scmp.eq.s32.totalorder %s22, 3
      %p54 = por %p52, %p53
      %p55 = scmp.ne.s32.totalorder %s44, %s45
      %p56 = scmp.eq.s32.totalorder %s22, 0
      %p57 = por %p55, %p56
      %p58 = scmp.ne.s32.totalorder %s44, %s45
      %p59 = scmp.eq.s32.totalorder %s23, 3
      %p60 = por %p58, %p59
      %p62 = scmp.ne.s32.totalorder %s45, %s61
      %p63 = scmp.eq.s32.totalorder %s23, 0
      %p64 = por %p62, %p63
      %s66 = sadd.s32 %s65, 1
      %p69 = scmp.eq.s32.totalorder %s17, 3
      %p70 = scmp.ne.s32.totalorder %s65, %s67
      %p71 = scmp.eq.s32.totalorder %s17, 0
      %p72 = por %p70, %p71
      %p73 = scmp.ne.s32.totalorder %s65, %s67
      %p74 = scmp.eq.s32.totalorder %s22, 3
      %p75 = por %p73, %p74
      %p76 = scmp.ne.s32.totalorder %s67, %s68
      %p77 = scmp.eq.s32.totalorder %s22, 0
      %p78 = por %p76, %p77
      %p79 = scmp.ne.s32.totalorder %s67, %s68
      %p80 = scmp.eq.s32.totalorder %s23, 3
      %p81 = por %p79, %p80
      %p83 = scmp.ne.s32.totalorder %s68, %s82
      %p84 = scmp.eq.s32.totalorder %s23, 0
      %p85 = por %p83, %p84
      %s87 = sadd.s32 %s86, 1
      %p90 = scmp.eq.s32.totalorder %s17, 3
      %p91 = scmp.ne.s32.totalorder %s86, %s88
      %p92 = scmp.eq.s32.totalorder %s17, 0
      %p93 = por %p91, %p92
      %p94 = scmp.ne.s32.totalorder %s86, %s88
      %p95 = scmp.eq.s32.totalorder %s22, 3
      %p96 = por %p94, %p95
      %p97 = scmp.ne.s32.totalorder %s88, %s89
      %p98 = scmp.eq.s32.totalorder %s22, 0
      %p99 = por %p97, %p98
      %p100 = scmp.ne.s32.totalorder %s88, %s89
      %p101 = scmp.eq.s32.totalorder %s23, 3
      %p102 = por %p100, %p101
      %p104 = scmp.ne.s32.totalorder %s89, %s103
      %p105 = scmp.eq.s32.totalorder %s23, 0
      %p106 = por %p104, %p105
      %s108 = sadd.s32 %s107, 1
      %p111 = scmp.eq.s32.totalorder %s17, 3
      %p112 = scmp.ne.s32.totalorder %s107, %s109
      %p113 = scmp.eq.s32.totalorder %s17, 0
      %p114 = por %p112, %p113
      %p115 = scmp.ne.s32.totalorder %s107, %s109
      %p116 = scmp.eq.s32.totalorder %s22, 3
      %p117 = por %p115, %p116
      %p118 = scmp.ne.s32.totalorder %s109, %s110
      %p119 = scmp.eq.s32.totalorder %s22, 0
      %p120 = por %p118, %p119
      %p121 = scmp.ne.s32.totalorder %s109, %s110
      %p122 = scmp.eq.s32.totalorder %s23, 3
      %p123 = por %p121, %p122
      %p125 = scmp.ne.s32.totalorder %s110, %s124
      %p126 = scmp.eq.s32.totalorder %s23, 0
      %p127 = por %p125, %p126
      %s129 = sadd.s32 %s128, 1
      %p132 = scmp.eq.s32.totalorder %s17, 3
      %p133 = scmp.ne.s32.totalorder %s128, %s130
      %p134 = scmp.eq.s32.totalorder %s17, 0
      %p135 = por %p133, %p134
      %p136 = scmp.ne.s32.totalorder %s128, %s130
      %p137 = scmp.eq.s32.totalorder %s22, 3
      %p138 = por %p136, %p137
      %p139 = scmp.ne.s32.totalorder %s130, %s131
      %p140 = scmp.eq.s32.totalorder %s22, 0
      %p141 = por %p139, %p140
      %p142 = scmp.ne.s32.totalorder %s130, %s131
      %p143 = scmp.eq.s32.totalorder %s23, 3
      %p144 = por %p142, %p143
      %p146 = scmp.ne.s32.totalorder %s131, %s145
      %p147 = scmp.eq.s32.totalorder %s23, 0
      %p148 = por %p146, %p147
      %s150 = sadd.s32 %s149, 1
      %p153 = scmp.eq.s32.totalorder %s17, 3
      %p154 = scmp.ne.s32.totalorder %s149, %s151
      %p155 = scmp.eq.s32.totalorder %s17, 0
      %p156 = por %p154, %p155
      %p157 = scmp.ne.s32.totalorder %s149, %s151
      %p158 = scmp.eq.s32.totalorder %s22, 3
      %p159 = por %p157, %p158
      %p160 = scmp.ne.s32.totalorder %s151, %s152
      %p161 = scmp.eq.s32.totalorder %s22, 0
      %p162 = por %p160, %p161
      %p163 = scmp.ne.s32.totalorder %s151, %s152
      %p164 = scmp.eq.s32.totalorder %s23, 3
      %p165 = por %p163, %p164
      %p167 = scmp.ne.s32.totalorder %s152, %s166
      %p168 = scmp.eq.s32.totalorder %s23, 0
      %p169 = por %p167, %p168
      %s171 = sadd.s32 %s170, 1
      %p174 = scmp.eq.s32.totalorder %s17, 3
      %p175 = scmp.ne.s32.totalorder %s170, %s172
      %p176 = scmp.eq.s32.totalorder %s17, 0
      %p177 = por %p175, %p176
      %p178 = scmp.ne.s32.totalorder %s170, %s172
      %p179 = scmp.eq.s32.totalorder %s22, 3
      %p180 = por %p178, %p179
      %p181 = scmp.ne.s32.totalorder %s172, %s173
      %p182 = scmp.eq.s32.totalorder %s22, 0
      %p183 = por %p181, %p182
      %p184 = scmp.ne.s32.totalorder %s172, %s173
      %p185 = scmp.eq.s32.totalorder %s23, 3
      %p186 = por %p184, %p185
      %p188 = scmp.ne.s32.totalorder %s173, %s187
      %p189 = scmp.eq.s32.totalorder %s23, 0
      %p190 = por %p188, %p189
      %s191 = ssub.s32 %s24, %s36
      %s192 = ssub.s32 %s25, %s32
      %s193 = sor.u32 %s191, %s192
      %p194 = scmp.eq.s32.totalorder %s193, 0
      %s196 = sadd.s32 %s195, 1
      %s197 = scalar_select %p194, %s195, %s196
      %p200 = pneg %p194
      %p201 = scmp.eq.s32.totalorder %s17, 3
      %p202 = por %p200, %p201
      %p203 = scmp.ne.s32.totalorder %s195, %s198
      %p204 = scmp.eq.s32.totalorder %s17, 0
      %p205 = por %p203, %p204
      %p206 = scmp.ne.s32.totalorder %s195, %s198
      %p207 = scmp.eq.s32.totalorder %s22, 3
      %p208 = por %p206, %p207
      %p209 = scmp.ne.s32.totalorder %s198, %s199
      %p210 = scmp.eq.s32.totalorder %s22, 0
      %p211 = por %p209, %p210
      %p212 = scmp.ne.s32.totalorder %s198, %s199
      %p213 = scmp.eq.s32.totalorder %s23, 3
      %p214 = por %p212, %p213
      %p216 = scmp.ne.s32.totalorder %s199, %s215
      %p217 = scmp.eq.s32.totalorder %s23, 0
      %p218 = por %p216, %p217
      %p219 = scmp.le.s32.totalorder 1, %s17
      %p220 = scmp.lt.s32.totalorder %s17, 5
      %p221 = pnand %p219, %p220
      %p222 = pneg %p221
      // Predicated region
      $region9: #{tpu_custom_call.1} parent=5 // pred_check
        _
      $region10: #{tpu_custom_call.1} parent=5 // pred_check_branch
        %224 = sbr.rel (%p221) target = $region12
      $region11: #{tpu_custom_call.1} parent=5 // pred_region
        %s225 = ssub.s32 %s17, 1
        // Predicated region
        $region13: #{tpu_custom_call.1} parent=11 // pred_check
          %p226 = pneg %p78
        $region14: #{tpu_custom_call.1} parent=11 // pred_check_branch
          %228 = sbr.rel (%p226) target = $region16
        $region15: #{tpu_custom_call.1} parent=11 // pred_region
          _
        $region16: #{tpu_custom_call.1} parent=11 // pred_fallthru
          _
        // Predicated region
        $region17: #{tpu_custom_call.1} parent=11 // pred_check
          %p229 = pneg %p99
        $region18: #{tpu_custom_call.1} parent=11 // pred_check_branch
          %231 = sbr.rel (%p229) target = $region20
        $region19: #{tpu_custom_call.1} parent=11 // pred_region
          %233 = vsyncadd [#allocation4], 0
          %s234 = sshll.u32 %s2, 4
          %s235 = int_to_ptr.hbm [resolvable:$true] %s234
          %s236 = sshll.u32 [#allocation3], 4
          %s237 = int_to_ptr.vmem [resolvable:$true] %s236
          %242 = dma.hbm_to_vmem [thread:$0]  %s235, 9216, %s237, [#allocation4], 64, 64, 4
        $region20: #{tpu_custom_call.1} parent=11 // pred_fallthru
          _
        // Predicated region
        $region21: #{tpu_custom_call.1} parent=11 // pred_check
          %p243 = pneg %p120
        $region22: #{tpu_custom_call.1} parent=11 // pred_check_branch
          %245 = sbr.rel (%p243) target = $region24
        $region23: #{tpu_custom_call.1} parent=11 // pred_region
          _
        $region24: #{tpu_custom_call.1} parent=11 // pred_fallthru
          _
        // Predicated region
        $region25: #{tpu_custom_call.1} parent=11 // pred_check
          %p246 = pneg %p141
        $region26: #{tpu_custom_call.1} parent=11 // pred_check_branch
          %248 = sbr.rel (%p246) target = $region28
        $region27: #{tpu_custom_call.1} parent=11 // pred_region
          _
        $region28: #{tpu_custom_call.1} parent=11 // pred_fallthru
          _
        // Predicated region
        $region29: #{tpu_custom_call.1} parent=11 // pred_check
          %p249 = pneg %p162
        $region30: #{tpu_custom_call.1} parent=11 // pred_check_branch
          %251 = sbr.rel (%p249) target = $region32
        $region31: #{tpu_custom_call.1} parent=11 // pred_region
          _
        $region32: #{tpu_custom_call.1} parent=11 // pred_fallthru
          _
        // Predicated region
        $region33: #{tpu_custom_call.1} parent=11 // pred_check
          %p252 = pneg %p183
        $region34: #{tpu_custom_call.1} parent=11 // pred_check_branch
          %254 = sbr.rel (%p252) target = $region36
        $region35: #{tpu_custom_call.1} parent=11 // pred_region
          _
        $region36: #{tpu_custom_call.1} parent=11 // pred_fallthru
          _
      $region12: #{tpu_custom_call.1} parent=5 // pred_fallthru
        _
      %p255 = scmp.lt.s32.totalorder %s17, 4
      // Predicated region
      $region37: #{tpu_custom_call.1} parent=5 // pred_check
        %p256 = pneg %p255
      $region38: #{tpu_custom_call.1} parent=5 // pred_check_branch
        %258 = sbr.rel (%p256) target = $region40
      $region39: #{tpu_custom_call.1} parent=5 // pred_region
        // Predicated region
        $region41: #{tpu_custom_call.1} parent=39 // pred_check
          %p259 = pneg %p51
        $region42: #{tpu_custom_call.1} parent=39 // pred_check_branch
          %261 = sbr.rel (%p259) target = $region44
        $region43: #{tpu_custom_call.1} parent=39 // pred_region
          %p262 = scmp.lt.s32.totalorder %s24, 1
          %s263 = scalar_select %p262, %s24, 1
          %p264 = scmp.lt.s32.totalorder %s25, 1
          %s265 = scalar_select %p264, %s25, 1
          %s266 = smul.addr %s265, 36
          %s267 = smul.addr %s263, 72
          %s268 = sadd.s32 %s266, %s267
          %s269 = smul.addr %s268, 4
          %s270 = scalar_lea.vmem %s0, %s269
        $region44: #{tpu_custom_call.1} parent=39 // pred_fallthru
          _
      $region40: #{tpu_custom_call.1} parent=5 // pred_fallthru
        _
      %p271 = scmp.le.s32.totalorder 1, %s17
      %p272 = scmp.lt.s32.totalorder %s17, 5
      %p273 = pnand %p271, %p272
      %p274 = pneg %p273
      // Predicated region
      $region45: #{tpu_custom_call.1} parent=5 // pred_check
        _
      $region46: #{tpu_custom_call.1} parent=5 // pred_check_branch
        %276 = sbr.rel (%p273) target = $region48
      $region47: #{tpu_custom_call.1} parent=5 // pred_region
        %s277 = ssub.s32 %s17, 1
        // Predicated region
        $region49: #{tpu_custom_call.1} parent=47 // pred_check
          %p278 = pneg %p99
        $region50: #{tpu_custom_call.1} parent=47 // pred_check_branch
          %280 = sbr.rel (%p278) target = $region52
        $region51: #{tpu_custom_call.1} parent=47 // pred_region
          %282 = dma.done [#allocation4], 9216
        $region52: #{tpu_custom_call.1} parent=47 // pred_fallthru
          _
        %p283 = scmp.lt.s32.totalorder %s26, 1
        %s284 = scalar_select %p283, %s26, 1
        %p285 = scmp.lt.s32.totalorder %s27, 1
        %s286 = scalar_select %p285, %s27, 1
        %s287 = smul.addr %s286, 36
        %s288 = smul.addr %s284, 72
        %s289 = sadd.s32 %s287, %s288
        %s290 = smul.addr %s289, 4
        %s291 = scalar_lea.vmem %s0, %s290
        %p292 = pneg %p57
        %p293 = pneg %p54
        %p294 = pneg %p78
        %p295 = pneg %p75
        %p296 = pneg %p99
        %p297 = pneg %p96
        %p298 = pneg %p120
        %p299 = pneg %p117
        %p300 = pneg %p141
        %p301 = pneg %p138
        %p302 = pneg %p162
        %p303 = pneg %p159
        %p304 = pneg %p183
        %p305 = pneg %p180
        %p306 = pneg %p211
        %p307 = pneg %p208
        %s308 = sand.u32 %s198, 1
        %s309 = scalar_lea.sflag [#allocation5], %s308
        %s310 = sand.u32 %s198, 1
        %s311 = smul.addr %s310, 64
        %s312 = scalar_lea.vmem [#allocation6], %s311
        %p313 = scmp.lt.s32.totalorder %s26, 1
        %s314 = scalar_select %p313, %s26, 1
        %p315 = scmp.lt.s32.totalorder %s27, 1
        %s316 = scalar_select %p315, %s27, 1
        %s317 = smul.addr %s316, 36
        %s318 = smul.addr %s314, 72
        %s319 = sadd.s32 %s317, %s318
        %s320 = smul.addr %s319, 4
        %s321 = scalar_lea.vmem %s0, %s320
        %s322 = smul.u32 8, %s27
        %v324 = vld [vmem:[%s321] sm:$0xf]
        %v325 = vld [vmem:[%s321 + $0x4] sm:$0xf]
        %v326 = vld [vmem:[%s321 + $0x8] sm:$0x1]
        %v327 = vld [vmem:[%s321 + $0xc] sm:$0xf]
        %v328 = vld [vmem:[%s321 + $0x10] sm:$0xf]
        %v329 = vld [vmem:[%s321 + $0x14] sm:$0x1]
        %v330 = vld [vmem:[%s321 + $0x18] sm:$0xf]
        %v331 = vld [vmem:[%s321 + $0x1c] sm:$0xf]
        %v332 = vld [vmem:[%s321 + $0x20] sm:$0x1]
        %v333 = vld [vmem:[%s321 + $0x24] sm:$0xf]
        %v334 = vld [vmem:[%s321 + $0x28] sm:$0xf]
        %v335 = vld [vmem:[%s321 + $0x2c] sm:$0x1]
        %v336 = vld [vmem:[%s321 + $0x30] sm:$0xf]
        %v337 = vld [vmem:[%s321 + $0x34] sm:$0xf]
        %v338 = vld [vmem:[%s321 + $0x38] sm:$0x1]
        %v339 = vld [vmem:[%s321 + $0x3c] sm:$0xf]
        %v340 = vld [vmem:[%s321 + $0x40] sm:$0xf]
        %v341 = vld [vmem:[%s321 + $0x44] sm:$0x1]
        %v342 = vld [vmem:[%s321 + $0x48] sm:$0xf]
        %v343 = vld [vmem:[%s321 + $0x4c] sm:$0xf]
        %v344 = vld [vmem:[%s321 + $0x50] sm:$0x1]
        %v345 = vld [vmem:[%s321 + $0x54] sm:$0xf]
        %v346 = vld [vmem:[%s321 + $0x58] sm:$0xf]
        %v347 = vld [vmem:[%s321 + $0x5c] sm:$0x1]
        %v348 = vld [vmem:[%s321 + $0x60] sm:$0xf]
        %v349 = vld [vmem:[%s321 + $0x64] sm:$0xf]
        %v350 = vld [vmem:[%s321 + $0x68] sm:$0x1]
        %v351 = vld [vmem:[%s321 + $0x6c] sm:$0xf]
        %v352 = vld [vmem:[%s321 + $0x70] sm:$0xf]
        %v353 = vld [vmem:[%s321 + $0x74] sm:$0x1]
        %v354 = vld [vmem:[%s321 + $0x78] sm:$0xf]
        %v355 = vld [vmem:[%s321 + $0x7c] sm:$0xf]
        %v356 = vld [vmem:[%s321 + $0x80] sm:$0x1]
        %v357 = vld [vmem:[%s321 + $0x84] sm:$0xf]
        %v358 = vld [vmem:[%s321 + $0x88] sm:$0xf]
        %v359 = vld [vmem:[%s321 + $0x8c] sm:$0x1]
        %v360 = vld [vmem:[%s1] sm:$0xf]
        %v361 = vld [vmem:[%s1 + $0x4] sm:$0xf]
        %v362 = vld [vmem:[%s1 + $0x8] sm:$0xf]
        %v363 = vld [vmem:[%s1 + $0xc] sm:$0xf]
        %v364 = vld [vmem:[%s1 + $0x10] sm:$0xf]
        %v365 = vld [vmem:[%s1 + $0x14] sm:$0xf]
        %v366 = vld [vmem:[%s1 + $0x18] sm:$0xf]
        %v367 = vld [vmem:[%s1 + $0x1c] sm:$0xf]
        %v368 = vld [vmem:[%s1 + $0x20] sm:$0xf]
        %v369 = vld [vmem:[%s1 + $0x24] sm:$0xf]
        %v370 = vld [vmem:[%s1 + $0x28] sm:$0xf]
        %v371 = vld [vmem:[%s1 + $0x2c] sm:$0xf]
        %v372 = vld [vmem:[%s1 + $0x30] sm:$0xf]
        %v373 = vld [vmem:[%s1 + $0x34] sm:$0xf]
        %v374 = vld [vmem:[%s1 + $0x38] sm:$0xf]
        %v375 = vld [vmem:[%s1 + $0x3c] sm:$0xf]
        %vm376 = vsmask.f32 3328
        %vm377 = vsmask.f32 7440
        %vm378 = vmor %vm376, %vm377
        %v380 = vshrl.u32 %v324, 16
        %v382 = vrot.slane %v380, 4
        %v383 = vshll.u32 %v324, 16
        %v385 = vrot.slane %v383, 5
        %v386 = vor.u32 %v382, %v385
        %v387 = vrot.slane %v386, 4
        %v389 = vshll.u32 %v325, 16
        %v391 = vrot.slane %v389, 5
        %v392 = vsel %vm378, %v387, %v391
        %v393 = vshrl.u32 %v325, 16
        %v395 = vrot.slane %v393, 4
        %v396 = vor.u32 %v395, %v391
        %v397 = vrot.slane %v396, 4
        %v399 = vshll.u32 %v326, 16
        %v401 = vrot.slane %v399, 5
        %v402 = vsel %vm378, %v397, %v401
        %v404 = vshrl.u32 %v327, 16
        %v406 = vrot.slane %v404, 4
        %v407 = vshll.u32 %v327, 16
        %v409 = vrot.slane %v407, 5
        %v410 = vor.u32 %v406, %v409
        %v411 = vrot.slane %v410, 4
        %v413 = vshll.u32 %v328, 16
        %v415 = vrot.slane %v413, 5
        %v416 = vsel %vm378, %v411, %v415
        %v417 = vshrl.u32 %v328, 16
        %v419 = vrot.slane %v417, 4
        %v420 = vor.u32 %v419, %v415
        %v421 = vrot.slane %v420, 4
        %v423 = vshll.u32 %v329, 16
        %v425 = vrot.slane %v423, 5
        %v426 = vsel %vm378, %v421, %v425
        %v428 = vshrl.u32 %v330, 16
        %v430 = vrot.slane %v428, 4
        %v431 = vshll.u32 %v330, 16
        %v433 = vrot.slane %v431, 5
        %v434 = vor.u32 %v430, %v433
        %v435 = vrot.slane %v434, 4
        %v437 = vshll.u32 %v331, 16
        %v439 = vrot.slane %v437, 5
        %v440 = vsel %vm378, %v435, %v439
        %v441 = vshrl.u32 %v331, 16
        %v443 = vrot.slane %v441, 4
        %v444 = vor.u32 %v443, %v439
        %v445 = vrot.slane %v444, 4
        %v447 = vshll.u32 %v332, 16
        %v449 = vrot.slane %v447, 5
        %v450 = vsel %vm378, %v445, %v449
        %v452 = vshrl.u32 %v333, 16
        %v454 = vrot.slane %v452, 4
        %v455 = vshll.u32 %v333, 16
        %v457 = vrot.slane %v455, 5
        %v458 = vor.u32 %v454, %v457
        %v459 = vrot.slane %v458, 4
        %v461 = vshll.u32 %v334, 16
        %v463 = vrot.slane %v461, 5
        %v464 = vsel %vm378, %v459, %v463
        %v465 = vshrl.u32 %v334, 16
        %v467 = vrot.slane %v465, 4
        %v468 = vor.u32 %v467, %v463
        %v469 = vrot.slane %v468, 4
        %v471 = vshll.u32 %v335, 16
        %v473 = vrot.slane %v471, 5
        %v474 = vsel %vm378, %v469, %v473
        %v476 = vshrl.u32 %v336, 16
        %v478 = vrot.slane %v476, 4
        %v479 = vshll.u32 %v336, 16
        %v481 = vrot.slane %v479, 5
        %v482 = vor.u32 %v478, %v481
        %v483 = vrot.slane %v482, 4
        %v485 = vshll.u32 %v337, 16
        %v487 = vrot.slane %v485, 5
        %v488 = vsel %vm378, %v483, %v487
        %v489 = vshrl.u32 %v337, 16
        %v491 = vrot.slane %v489, 4
        %v492 = vor.u32 %v491, %v487
        %v493 = vrot.slane %v492, 4
        %v495 = vshll.u32 %v338, 16
        %v497 = vrot.slane %v495, 5
        %v498 = vsel %vm378, %v493, %v497
        %v500 = vshrl.u32 %v339, 16
        %v502 = vrot.slane %v500, 4
        %v503 = vshll.u32 %v339, 16
        %v505 = vrot.slane %v503, 5
        %v506 = vor.u32 %v502, %v505
        %v507 = vrot.slane %v506, 4
        %v509 = vshll.u32 %v340, 16
        %v511 = vrot.slane %v509, 5
        %v512 = vsel %vm378, %v507, %v511
        %v513 = vshrl.u32 %v340, 16
        %v515 = vrot.slane %v513, 4
        %v516 = vor.u32 %v515, %v511
        %v517 = vrot.slane %v516, 4
        %v519 = vshll.u32 %v341, 16
        %v521 = vrot.slane %v519, 5
        %v522 = vsel %vm378, %v517, %v521
        %v524 = vshrl.u32 %v342, 16
        %v526 = vrot.slane %v524, 4
        %v527 = vshll.u32 %v342, 16
        %v529 = vrot.slane %v527, 5
        %v530 = vor.u32 %v526, %v529
        %v531 = vrot.slane %v530, 4
        %v533 = vshll.u32 %v343, 16
        %v535 = vrot.slane %v533, 5
        %v536 = vsel %vm378, %v531, %v535
        %v537 = vshrl.u32 %v343, 16
        %v539 = vrot.slane %v537, 4
        %v540 = vor.u32 %v539, %v535
        %v541 = vrot.slane %v540, 4
        %v543 = vshll.u32 %v344, 16
        %v545 = vrot.slane %v543, 5
        %v546 = vsel %vm378, %v541, %v545
        %v548 = vshrl.u32 %v345, 16
        %v550 = vrot.slane %v548, 4
        %v551 = vshll.u32 %v345, 16
        %v553 = vrot.slane %v551, 5
        %v554 = vor.u32 %v550, %v553
        %v555 = vrot.slane %v554, 4
        %v557 = vshll.u32 %v346, 16
        %v559 = vrot.slane %v557, 5
        %v560 = vsel %vm378, %v555, %v559
        %v561 = vshrl.u32 %v346, 16
        %v563 = vrot.slane %v561, 4
        %v564 = vor.u32 %v563, %v559
        %v565 = vrot.slane %v564, 4
        %v567 = vshll.u32 %v347, 16
        %v569 = vrot.slane %v567, 5
        %v570 = vsel %vm378, %v565, %v569
        %v572 = vshrl.u32 %v348, 16
        %v574 = vrot.slane %v572, 4
        %v575 = vshll.u32 %v348, 16
        %v577 = vrot.slane %v575, 5
        %v578 = vor.u32 %v574, %v577
        %v579 = vrot.slane %v578, 4
        %v581 = vshll.u32 %v349, 16
        %v583 = vrot.slane %v581, 5
        %v584 = vsel %vm378, %v579, %v583
        %v585 = vshrl.u32 %v349, 16
        %v587 = vrot.slane %v585, 4
        %v588 = vor.u32 %v587, %v583
        %v589 = vrot.slane %v588, 4
        %v591 = vshll.u32 %v350, 16
        %v593 = vrot.slane %v591, 5
        %v594 = vsel %vm378, %v589, %v593
        %v596 = vshrl.u32 %v351, 16
        %v598 = vrot.slane %v596, 4
        %v599 = vshll.u32 %v351, 16
        %v601 = vrot.slane %v599, 5
        %v602 = vor.u32 %v598, %v601
        %v603 = vrot.slane %v602, 4
        %v605 = vshll.u32 %v352, 16
        %v607 = vrot.slane %v605, 5
        %v608 = vsel %vm378, %v603, %v607
        %v609 = vshrl.u32 %v352, 16
        %v611 = vrot.slane %v609, 4
        %v612 = vor.u32 %v611, %v607
        %v613 = vrot.slane %v612, 4
        %v615 = vshll.u32 %v353, 16
        %v617 = vrot.slane %v615, 5
        %v618 = vsel %vm378, %v613, %v617
        %s619 = scalar_lea.vmem %s1, 64
        %v620 = vld [vmem:[%s619] sm:$0xf]
        %v621 = vld [vmem:[%s619 + $0x4] sm:$0xf]
        %v622 = vld [vmem:[%s619 + $0x8] sm:$0xf]
        %v623 = vld [vmem:[%s619 + $0xc] sm:$0xf]
        %v624 = vld [vmem:[%s619 + $0x10] sm:$0xf]
        %v625 = vld [vmem:[%s619 + $0x14] sm:$0xf]
        %v626 = vld [vmem:[%s619 + $0x18] sm:$0xf]
        %v627 = vld [vmem:[%s619 + $0x1c] sm:$0xf]
        %v628 = vld [vmem:[%s619 + $0x20] sm:$0xf]
        %v629 = vld [vmem:[%s619 + $0x24] sm:$0xf]
        %v630 = vld [vmem:[%s619 + $0x28] sm:$0xf]
        %v631 = vld [vmem:[%s619 + $0x2c] sm:$0xf]
        %v632 = vld [vmem:[%s619 + $0x30] sm:$0xf]
        %v633 = vld [vmem:[%s619 + $0x34] sm:$0xf]
        %v634 = vld [vmem:[%s619 + $0x38] sm:$0xf]
        %v635 = vld [vmem:[%s619 + $0x3c] sm:$0xf]
        %v636 = vunpack.c.l.b16 %v392
        %v637 = vunpack.c.l.b16 %v402
        %v638 = vunpack.c.l.b16 %v416
        %v639 = vunpack.c.l.b16 %v426
        %v640 = vunpack.c.l.b16 %v440
        %v641 = vunpack.c.l.b16 %v450
        %v642 = vunpack.c.l.b16 %v464
        %v643 = vunpack.c.l.b16 %v474
        %v644 = vunpack.c.l.b16 %v488
        %v645 = vunpack.c.l.b16 %v498
        %v646 = vunpack.c.l.b16 %v512
        %v647 = vunpack.c.l.b16 %v522
        %v648 = vunpack.c.l.b16 %v536
        %v649 = vunpack.c.l.b16 %v546
        %v650 = vunpack.c.l.b16 %v560
        %v651 = vunpack.c.l.b16 %v570
        %v652 = vunpack.c.l.b16 %v584
        %v653 = vunpack.c.l.b16 %v594
        %v654 = vunpack.c.l.b16 %v608
        %v655 = vunpack.c.l.b16 %v618
        %v656 = vpack.c.b16 %v637, %v636
        %v657 = vpack.c.b16 %v639, %v638
        %v658 = vpack.c.b16 %v641, %v640
        %v659 = vpack.c.b16 %v643, %v642
        %v660 = vpack.c.b16 %v645, %v644
        %v661 = vpack.c.b16 %v647, %v646
        %v662 = vpack.c.b16 %v649, %v648
        %v663 = vpack.c.b16 %v651, %v650
        %v664 = vpack.c.b16 %v653, %v652
        %v665 = vpack.c.b16 %v655, %v654
        %v692 = vunpack.c.l.b16 %v620
        %v693 = vunpack.c.l.b16 %v621
        %v694 = vunpack.c.l.b16 %v622
        %v695 = vunpack.c.l.b16 %v623
        %v696 = vunpack.c.l.b16 %v624
        %v697 = vunpack.c.l.b16 %v625
        %v698 = vunpack.c.l.b16 %v626
        %v699 = vunpack.c.l.b16 %v627
        %v700 = vunpack.c.l.b16 %v628
        %v701 = vunpack.c.l.b16 %v629
        %v702 = vunpack.c.l.b16 %v630
        %v703 = vunpack.c.l.b16 %v631
        %v704 = vunpack.c.l.b16 %v632
        %v705 = vunpack.c.l.b16 %v633
        %v706 = vunpack.c.l.b16 %v634
        %v707 = vunpack.c.l.b16 %v635
        %v708 = vpack.c.b16 %v693, %v692
        %v709 = vpack.c.b16 %v695, %v694
        %v710 = vpack.c.b16 %v697, %v696
        %v711 = vpack.c.b16 %v699, %v698
        %v712 = vpack.c.b16 %v701, %v700
        %v713 = vpack.c.b16 %v703, %v702
        %v714 = vpack.c.b16 %v705, %v704
        %v715 = vpack.c.b16 %v707, %v706
        %724 = vmatpush.bf16.msra.mxu0 %v715
        %725 = vmatpush.bf16.msra.mxu0 %v714
        %726 = vmatpush.bf16.msra.mxu0 %v713
        %727 = vmatpush.bf16.msra.mxu0 %v712
        %728 = vmatpush.bf16.msra.mxu0 %v711
        %729 = vmatpush.bf16.msra.mxu0 %v710
        %730 = vmatpush.bf16.msra.mxu0 %v709
        %731 = vmatpush.bf16.msra.mxu0 %v708
        %732 = vmatmul.bf16.gmra.mxu0 %v656
        %v733 = vpop.f32.mrf.mxu0
        %v734 = vadd.f32 0.0, %v733
        %v735 = vpop.f32.mrf.mxu0
        %v736 = vadd.f32 0.0, %v735
        %737 = vmatmul.bf16.gmra.mxu0 %v657
        %v738 = vpop.f32.mrf.mxu0
        %v739 = vadd.f32 0.0, %v738
        %v740 = vpop.f32.mrf.mxu0
        %v741 = vadd.f32 0.0, %v740
        %742 = vmatmul.bf16.gmra.mxu0 %v658
        %v743 = vpop.f32.mrf.mxu0
        %v744 = vadd.f32 0.0, %v743
        %v745 = vpop.f32.mrf.mxu0
        %v746 = vadd.f32 0.0, %v745
        %747 = vmatmul.bf16.gmra.mxu0 %v659
        %v748 = vpop.f32.mrf.mxu0
        %v749 = vadd.f32 0.0, %v748
        %v750 = vpop.f32.mrf.mxu0
        %v751 = vadd.f32 0.0, %v750
        %752 = vmatmul.bf16.gmra.mxu0 %v660
        %v753 = vpop.f32.mrf.mxu0
        %v754 = vadd.f32 0.0, %v753
        %v755 = vpop.f32.mrf.mxu0
        %v756 = vadd.f32 0.0, %v755
        %757 = vmatmul.bf16.gmra.mxu0 %v661
        %v758 = vpop.f32.mrf.mxu0
        %v759 = vadd.f32 0.0, %v758
        %v760 = vpop.f32.mrf.mxu0
        %v761 = vadd.f32 0.0, %v760
        %762 = vmatmul.bf16.gmra.mxu0 %v662
        %v763 = vpop.f32.mrf.mxu0
        %v764 = vadd.f32 0.0, %v763
        %v765 = vpop.f32.mrf.mxu0
        %v766 = vadd.f32 0.0, %v765
        %767 = vmatmul.bf16.gmra.mxu0 %v663
        %v768 = vpop.f32.mrf.mxu0
        %v769 = vadd.f32 0.0, %v768
        %v770 = vpop.f32.mrf.mxu0
        %v771 = vadd.f32 0.0, %v770
        %772 = vmatmul.bf16.gmra.mxu0 %v664
        %v773 = vpop.f32.mrf.mxu0
        %v774 = vadd.f32 0.0, %v773
        %v775 = vpop.f32.mrf.mxu0
        %v776 = vadd.f32 0.0, %v775
        %777 = vmatmul.bf16.gmra.mxu0 %v665
        %v778 = vpop.f32.mrf.mxu0
        %v779 = vadd.f32 0.0, %v778
        %v780 = vpop.f32.mrf.mxu0
        %v781 = vadd.f32 0.0, %v780
        %782 = vdwg.mxu0
        %v803 = vunpack.c.l.b16 %v324
        %v804 = vunpack.c.l.b16 %v325
        %v805 = vunpack.c.l.b16 %v327
        %v806 = vunpack.c.l.b16 %v328
        %v807 = vunpack.c.l.b16 %v330
        %v808 = vunpack.c.l.b16 %v331
        %v809 = vunpack.c.l.b16 %v333
        %v810 = vunpack.c.l.b16 %v334
        %v811 = vunpack.c.l.b16 %v336
        %v812 = vunpack.c.l.b16 %v337
        %v813 = vunpack.c.l.b16 %v339
        %v814 = vunpack.c.l.b16 %v340
        %v815 = vunpack.c.l.b16 %v342
        %v816 = vunpack.c.l.b16 %v343
        %v817 = vunpack.c.l.b16 %v345
        %v818 = vunpack.c.l.b16 %v346
        %v819 = vunpack.c.l.b16 %v348
        %v820 = vunpack.c.l.b16 %v349
        %v821 = vunpack.c.l.b16 %v351
        %v822 = vunpack.c.l.b16 %v352
        %v823 = vpack.c.b16 %v804, %v803
        %v824 = vpack.c.b16 %v806, %v805
        %v825 = vpack.c.b16 %v808, %v807
        %v826 = vpack.c.b16 %v810, %v809
        %v827 = vpack.c.b16 %v812, %v811
        %v828 = vpack.c.b16 %v814, %v813
        %v829 = vpack.c.b16 %v816, %v815
        %v830 = vpack.c.b16 %v818, %v817
        %v831 = vpack.c.b16 %v820, %v819
        %v832 = vpack.c.b16 %v822, %v821
        %v859 = vunpack.c.l.b16 %v360
        %v860 = vunpack.c.l.b16 %v361
        %v861 = vunpack.c.l.b16 %v362
        %v862 = vunpack.c.l.b16 %v363
        %v863 = vunpack.c.l.b16 %v364
        %v864 = vunpack.c.l.b16 %v365
        %v865 = vunpack.c.l.b16 %v366
        %v866 = vunpack.c.l.b16 %v367
        %v867 = vunpack.c.l.b16 %v368
        %v868 = vunpack.c.l.b16 %v369
        %v869 = vunpack.c.l.b16 %v370
        %v870 = vunpack.c.l.b16 %v371
        %v871 = vunpack.c.l.b16 %v372
        %v872 = vunpack.c.l.b16 %v373
        %v873 = vunpack.c.l.b16 %v374
        %v874 = vunpack.c.l.b16 %v375
        %v875 = vpack.c.b16 %v860, %v859
        %v876 = vpack.c.b16 %v862, %v861
        %v877 = vpack.c.b16 %v864, %v863
        %v878 = vpack.c.b16 %v866, %v865
        %v879 = vpack.c.b16 %v868, %v867
        %v880 = vpack.c.b16 %v870, %v869
        %v881 = vpack.c.b16 %v872, %v871
        %v882 = vpack.c.b16 %v874, %v873
        %891 = vmatpush.bf16.msra.mxu0 %v882
        %892 = vmatpush.bf16.msra.mxu0 %v881
        %893 = vmatpush.bf16.msra.mxu0 %v880
        %894 = vmatpush.bf16.msra.mxu0 %v879
        %895 = vmatpush.bf16.msra.mxu0 %v878
        %896 = vmatpush.bf16.msra.mxu0 %v877
        %897 = vmatpush.bf16.msra.mxu0 %v876
        %898 = vmatpush.bf16.msra.mxu0 %v875
        %899 = vmatmul.bf16.gmra.mxu0 %v823
        %v900 = vpop.f32.mrf.mxu0
        %v901 = vadd.f32 %v734, %v900
        %v902 = vpop.f32.mrf.mxu0
        %v903 = vadd.f32 %v736, %v902
        %904 = vmatmul.bf16.gmra.mxu0 %v824
        %v905 = vpop.f32.mrf.mxu0
        %v906 = vadd.f32 %v739, %v905
        %v907 = vpop.f32.mrf.mxu0
        %v908 = vadd.f32 %v741, %v907
        %909 = vmatmul.bf16.gmra.mxu0 %v825
        %v910 = vpop.f32.mrf.mxu0
        %v911 = vadd.f32 %v744, %v910
        %v912 = vpop.f32.mrf.mxu0
        %v913 = vadd.f32 %v746, %v912
        %914 = vmatmul.bf16.gmra.mxu0 %v826
        %v915 = vpop.f32.mrf.mxu0
        %v916 = vadd.f32 %v749, %v915
        %v917 = vpop.f32.mrf.mxu0
        %v918 = vadd.f32 %v751, %v917
        %919 = vmatmul.bf16.gmra.mxu0 %v827
        %v920 = vpop.f32.mrf.mxu0
        %v921 = vadd.f32 %v754, %v920
        %v922 = vpop.f32.mrf.mxu0
        %v923 = vadd.f32 %v756, %v922
        %924 = vmatmul.bf16.gmra.mxu0 %v828
        %v925 = vpop.f32.mrf.mxu0
        %v926 = vadd.f32 %v759, %v925
        %v927 = vpop.f32.mrf.mxu0
        %v928 = vadd.f32 %v761, %v927
        %929 = vmatmul.bf16.gmra.mxu0 %v829
        %v930 = vpop.f32.mrf.mxu0
        %v931 = vadd.f32 %v764, %v930
        %v932 = vpop.f32.mrf.mxu0
        %v933 = vadd.f32 %v766, %v932
        %934 = vmatmul.bf16.gmra.mxu0 %v830
        %v935 = vpop.f32.mrf.mxu0
        %v936 = vadd.f32 %v769, %v935
        %v937 = vpop.f32.mrf.mxu0
        %v938 = vadd.f32 %v771, %v937
        %939 = vmatmul.bf16.gmra.mxu0 %v831
        %v940 = vpop.f32.mrf.mxu0
        %v941 = vadd.f32 %v774, %v940
        %v942 = vpop.f32.mrf.mxu0
        %v943 = vadd.f32 %v776, %v942
        %944 = vmatmul.bf16.gmra.mxu0 %v832
        %v945 = vpop.f32.mrf.mxu0
        %v946 = vadd.f32 %v779, %v945
        %v947 = vpop.f32.mrf.mxu0
        %v948 = vadd.f32 %v781, %v947
        %949 = vdwg.mxu0
        %vm960 = vcmask 1042432
        %vm961 = vcmask 1046532
        %vm962 = vmor %vm960, %vm961
        %v963 = vrot.slane %v324, 5
        %v964 = vrot.slane %v963, 4
        %v965 = vrot.slane %v325, 5
        %v966 = vsel %vm962, %v964, %v965
        %v967 = vrot.slane %v965, 4
        %v968 = vrot.slane %v326, 5
        %v969 = vsel %vm962, %v967, %v968
        %v970 = vrot.slane %v327, 5
        %v971 = vrot.slane %v970, 4
        %v972 = vrot.slane %v328, 5
        %v973 = vsel %vm962, %v971, %v972
        %v974 = vrot.slane %v972, 4
        %v975 = vrot.slane %v329, 5
        %v976 = vsel %vm962, %v974, %v975
        %v977 = vrot.slane %v330, 5
        %v978 = vrot.slane %v977, 4
        %v979 = vrot.slane %v331, 5
        %v980 = vsel %vm962, %v978, %v979
        %v981 = vrot.slane %v979, 4
        %v982 = vrot.slane %v332, 5
        %v983 = vsel %vm962, %v981, %v982
        %v984 = vrot.slane %v333, 5
        %v985 = vrot.slane %v984, 4
        %v986 = vrot.slane %v334, 5
        %v987 = vsel %vm962, %v985, %v986
        %v988 = vrot.slane %v986, 4
        %v989 = vrot.slane %v335, 5
        %v990 = vsel %vm962, %v988, %v989
        %v991 = vrot.slane %v336, 5
        %v992 = vrot.slane %v991, 4
        %v993 = vrot.slane %v337, 5
        %v994 = vsel %vm962, %v992, %v993
        %v995 = vrot.slane %v993, 4
        %v996 = vrot.slane %v338, 5
        %v997 = vsel %vm962, %v995, %v996
        %v998 = vrot.slane %v339, 5
        %v999 = vrot.slane %v998, 4
        %v1000 = vrot.slane %v340, 5
        %v1001 = vsel %vm962, %v999, %v1000
        %v1002 = vrot.slane %v1000, 4
        %v1003 = vrot.slane %v341, 5
        %v1004 = vsel %vm962, %v1002, %v1003
        %v1005 = vrot.slane %v342, 5
        %v1006 = vrot.slane %v1005, 4
        %v1007 = vrot.slane %v343, 5
        %v1008 = vsel %vm962, %v1006, %v1007
        %v1009 = vrot.slane %v1007, 4
        %v1010 = vrot.slane %v344, 5
        %v1011 = vsel %vm962, %v1009, %v1010
        %v1012 = vrot.slane %v345, 5
        %v1013 = vrot.slane %v1012, 4
        %v1014 = vrot.slane %v346, 5
        %v1015 = vsel %vm962, %v1013, %v1014
        %v1016 = vrot.slane %v1014, 4
        %v1017 = vrot.slane %v347, 5
        %v1018 = vsel %vm962, %v1016, %v1017
        %v1019 = vrot.slane %v348, 5
        %v1020 = vrot.slane %v1019, 4
        %v1021 = vrot.slane %v349, 5
        %v1022 = vsel %vm962, %v1020, %v1021
        %v1023 = vrot.slane %v1021, 4
        %v1024 = vrot.slane %v350, 5
        %v1025 = vsel %vm962, %v1023, %v1024
        %v1026 = vrot.slane %v351, 5
        %v1027 = vrot.slane %v1026, 4
        %v1028 = vrot.slane %v352, 5
        %v1029 = vsel %vm962, %v1027, %v1028
        %v1030 = vrot.slane %v1028, 4
        %v1031 = vrot.slane %v353, 5
        %v1032 = vsel %vm962, %v1030, %v1031
        %s1033 = scalar_lea.vmem %s1, 128
        %v1034 = vld [vmem:[%s1033] sm:$0xf]
        %v1035 = vld [vmem:[%s1033 + $0x4] sm:$0xf]
        %v1036 = vld [vmem:[%s1033 + $0x8] sm:$0xf]
        %v1037 = vld [vmem:[%s1033 + $0xc] sm:$0xf]
        %v1038 = vld [vmem:[%s1033 + $0x10] sm:$0xf]
        %v1039 = vld [vmem:[%s1033 + $0x14] sm:$0xf]
        %v1040 = vld [vmem:[%s1033 + $0x18] sm:$0xf]
        %v1041 = vld [vmem:[%s1033 + $0x1c] sm:$0xf]
        %v1042 = vld [vmem:[%s1033 + $0x20] sm:$0xf]
        %v1043 = vld [vmem:[%s1033 + $0x24] sm:$0xf]
        %v1044 = vld [vmem:[%s1033 + $0x28] sm:$0xf]
        %v1045 = vld [vmem:[%s1033 + $0x2c] sm:$0xf]
        %v1046 = vld [vmem:[%s1033 + $0x30] sm:$0xf]
        %v1047 = vld [vmem:[%s1033 + $0x34] sm:$0xf]
        %v1048 = vld [vmem:[%s1033 + $0x38] sm:$0xf]
        %v1049 = vld [vmem:[%s1033 + $0x3c] sm:$0xf]
        %v1050 = vunpack.c.l.b16 %v966
        %v1051 = vunpack.c.l.b16 %v969
        %v1052 = vunpack.c.l.b16 %v973
        %v1053 = vunpack.c.l.b16 %v976
        %v1054 = vunpack.c.l.b16 %v980
        %v1055 = vunpack.c.l.b16 %v983
        %v1056 = vunpack.c.l.b16 %v987
        %v1057 = vunpack.c.l.b16 %v990
        %v1058 = vunpack.c.l.b16 %v994
        %v1059 = vunpack.c.l.b16 %v997
        %v1060 = vunpack.c.l.b16 %v1001
        %v1061 = vunpack.c.l.b16 %v1004
        %v1062 = vunpack.c.l.b16 %v1008
        %v1063 = vunpack.c.l.b16 %v1011
        %v1064 = vunpack.c.l.b16 %v1015
        %v1065 = vunpack.c.l.b16 %v1018
        %v1066 = vunpack.c.l.b16 %v1022
        %v1067 = vunpack.c.l.b16 %v1025
        %v1068 = vunpack.c.l.b16 %v1029
        %v1069 = vunpack.c.l.b16 %v1032
        %v1070 = vpack.c.b16 %v1051, %v1050
        %v1071 = vpack.c.b16 %v1053, %v1052
        %v1072 = vpack.c.b16 %v1055, %v1054
        %v1073 = vpack.c.b16 %v1057, %v1056
        %v1074 = vpack.c.b16 %v1059, %v1058
        %v1075 = vpack.c.b16 %v1061, %v1060
        %v1076 = vpack.c.b16 %v1063, %v1062
        %v1077 = vpack.c.b16 %v1065, %v1064
        %v1078 = vpack.c.b16 %v1067, %v1066
        %v1079 = vpack.c.b16 %v1069, %v1068
        %v1106 = vunpack.c.l.b16 %v1034
        %v1107 = vunpack.c.l.b16 %v1035
        %v1108 = vunpack.c.l.b16 %v1036
        %v1109 = vunpack.c.l.b16 %v1037
        %v1110 = vunpack.c.l.b16 %v1038
        %v1111 = vunpack.c.l.b16 %v1039
        %v1112 = vunpack.c.l.b16 %v1040
        %v1113 = vunpack.c.l.b16 %v1041
        %v1114 = vunpack.c.l.b16 %v1042
        %v1115 = vunpack.c.l.b16 %v1043
        %v1116 = vunpack.c.l.b16 %v1044
        %v1117 = vunpack.c.l.b16 %v1045
        %v1118 = vunpack.c.l.b16 %v1046
        %v1119 = vunpack.c.l.b16 %v1047
        %v1120 = vunpack.c.l.b16 %v1048
        %v1121 = vunpack.c.l.b16 %v1049
        %v1122 = vpack.c.b16 %v1107, %v1106
        %v1123 = vpack.c.b16 %v1109, %v1108
        %v1124 = vpack.c.b16 %v1111, %v1110
        %v1125 = vpack.c.b16 %v1113, %v1112
        %v1126 = vpack.c.b16 %v1115, %v1114
        %v1127 = vpack.c.b16 %v1117, %v1116
        %v1128 = vpack.c.b16 %v1119, %v1118
        %v1129 = vpack.c.b16 %v1121, %v1120
        %1138 = vmatpush.bf16.msra.mxu0 %v1129
        %1139 = vmatpush.bf16.msra.mxu0 %v1128
        %1140 = vmatpush.bf16.msra.mxu0 %v1127
        %1141 = vmatpush.bf16.msra.mxu0 %v1126
        %1142 = vmatpush.bf16.msra.mxu0 %v1125
        %1143 = vmatpush.bf16.msra.mxu0 %v1124
        %1144 = vmatpush.bf16.msra.mxu0 %v1123
        %1145 = vmatpush.bf16.msra.mxu0 %v1122
        %1146 = vmatmul.bf16.gmra.mxu0 %v1070
        %v1147 = vpop.f32.mrf.mxu0
        %v1148 = vadd.f32 0.0, %v1147
        %v1149 = vpop.f32.mrf.mxu0
        %v1150 = vadd.f32 0.0, %v1149
        %1151 = vmatmul.bf16.gmra.mxu0 %v1071
        %v1152 = vpop.f32.mrf.mxu0
        %v1153 = vadd.f32 0.0, %v1152
        %v1154 = vpop.f32.mrf.mxu0
        %v1155 = vadd.f32 0.0, %v1154
        %1156 = vmatmul.bf16.gmra.mxu0 %v1072
        %v1157 = vpop.f32.mrf.mxu0
        %v1158 = vadd.f32 0.0, %v1157
        %v1159 = vpop.f32.mrf.mxu0
        %v1160 = vadd.f32 0.0, %v1159
        %1161 = vmatmul.bf16.gmra.mxu0 %v1073
        %v1162 = vpop.f32.mrf.mxu0
        %v1163 = vadd.f32 0.0, %v1162
        %v1164 = vpop.f32.mrf.mxu0
        %v1165 = vadd.f32 0.0, %v1164
        %1166 = vmatmul.bf16.gmra.mxu0 %v1074
        %v1167 = vpop.f32.mrf.mxu0
        %v1168 = vadd.f32 0.0, %v1167
        %v1169 = vpop.f32.mrf.mxu0
        %v1170 = vadd.f32 0.0, %v1169
        %1171 = vmatmul.bf16.gmra.mxu0 %v1075
        %v1172 = vpop.f32.mrf.mxu0
        %v1173 = vadd.f32 0.0, %v1172
        %v1174 = vpop.f32.mrf.mxu0
        %v1175 = vadd.f32 0.0, %v1174
        %1176 = vmatmul.bf16.gmra.mxu0 %v1076
        %v1177 = vpop.f32.mrf.mxu0
        %v1178 = vadd.f32 0.0, %v1177
        %v1179 = vpop.f32.mrf.mxu0
        %v1180 = vadd.f32 0.0, %v1179
        %1181 = vmatmul.bf16.gmra.mxu0 %v1077
        %v1182 = vpop.f32.mrf.mxu0
        %v1183 = vadd.f32 0.0, %v1182
        %v1184 = vpop.f32.mrf.mxu0
        %v1185 = vadd.f32 0.0, %v1184
        %1186 = vmatmul.bf16.gmra.mxu0 %v1078
        %v1187 = vpop.f32.mrf.mxu0
        %v1188 = vadd.f32 0.0, %v1187
        %v1189 = vpop.f32.mrf.mxu0
        %v1190 = vadd.f32 0.0, %v1189
        %1191 = vmatmul.bf16.gmra.mxu0 %v1079
        %v1192 = vpop.f32.mrf.mxu0
        %v1193 = vadd.f32 0.0, %v1192
        %v1194 = vpop.f32.mrf.mxu0
        %v1195 = vadd.f32 0.0, %v1194
        %1196 = vdwg.mxu0
        %v1197 = vadd.f32 %v901, %v1148
        %v1198 = vadd.f32 %v903, %v1150
        %v1199 = vadd.f32 %v906, %v1153
        %v1200 = vadd.f32 %v908, %v1155
        %v1201 = vadd.f32 %v911, %v1158
        %v1202 = vadd.f32 %v913, %v1160
        %v1203 = vadd.f32 %v916, %v1163
        %v1204 = vadd.f32 %v918, %v1165
        %v1205 = vadd.f32 %v921, %v1168
        %v1206 = vadd.f32 %v923, %v1170
        %v1207 = vadd.f32 %v926, %v1173
        %v1208 = vadd.f32 %v928, %v1175
        %v1209 = vadd.f32 %v931, %v1178
        %v1210 = vadd.f32 %v933, %v1180
        %v1211 = vadd.f32 %v936, %v1183
        %v1212 = vadd.f32 %v938, %v1185
        %v1213 = vadd.f32 %v941, %v1188
        %v1214 = vadd.f32 %v943, %v1190
        %v1215 = vadd.f32 %v946, %v1193
        %v1216 = vadd.f32 %v948, %v1195
        %s1217 = scalar_lea.vmem %s1, 192
        %v1218 = vld [vmem:[%s1217] sm:$0xf]
        %v1219 = vld [vmem:[%s1217 + $0x4] sm:$0xf]
        %v1220 = vld [vmem:[%s1217 + $0x8] sm:$0xf]
        %v1221 = vld [vmem:[%s1217 + $0xc] sm:$0xf]
        %v1222 = vld [vmem:[%s1217 + $0x10] sm:$0xf]
        %v1223 = vld [vmem:[%s1217 + $0x14] sm:$0xf]
        %v1224 = vld [vmem:[%s1217 + $0x18] sm:$0xf]
        %v1225 = vld [vmem:[%s1217 + $0x1c] sm:$0xf]
        %v1226 = vld [vmem:[%s1217 + $0x20] sm:$0xf]
        %v1227 = vld [vmem:[%s1217 + $0x24] sm:$0xf]
        %v1228 = vld [vmem:[%s1217 + $0x28] sm:$0xf]
        %v1229 = vld [vmem:[%s1217 + $0x2c] sm:$0xf]
        %v1230 = vld [vmem:[%s1217 + $0x30] sm:$0xf]
        %v1231 = vld [vmem:[%s1217 + $0x34] sm:$0xf]
        %v1232 = vld [vmem:[%s1217 + $0x38] sm:$0xf]
        %v1233 = vld [vmem:[%s1217 + $0x3c] sm:$0xf]
        %v1236 = vunpack.c.l.b16 %v354
        %v1237 = vunpack.c.l.b16 %v355
        %v1238 = vpack.c.b16 %v1237, %v1236
        %v1256 = vunpack.c.l.b16 %v1218
        %v1257 = vunpack.c.l.b16 %v1219
        %v1258 = vunpack.c.l.b16 %v1220
        %v1259 = vunpack.c.l.b16 %v1221
        %v1260 = vunpack.c.l.b16 %v1222
        %v1261 = vunpack.c.l.b16 %v1223
        %v1262 = vunpack.c.l.b16 %v1224
        %v1263 = vunpack.c.l.b16 %v1225
        %v1264 = vunpack.c.l.b16 %v1226
        %v1265 = vunpack.c.l.b16 %v1227
        %v1266 = vunpack.c.l.b16 %v1228
        %v1267 = vunpack.c.l.b16 %v1229
        %v1268 = vunpack.c.l.b16 %v1230
        %v1269 = vunpack.c.l.b16 %v1231
        %v1270 = vunpack.c.l.b16 %v1232
        %v1271 = vunpack.c.l.b16 %v1233
        %v1272 = vpack.c.b16 %v1257, %v1256
        %v1273 = vpack.c.b16 %v1259, %v1258
        %v1274 = vpack.c.b16 %v1261, %v1260
        %v1275 = vpack.c.b16 %v1263, %v1262
        %v1276 = vpack.c.b16 %v1265, %v1264
        %v1277 = vpack.c.b16 %v1267, %v1266
        %v1278 = vpack.c.b16 %v1269, %v1268
        %v1279 = vpack.c.b16 %v1271, %v1270
        %1288 = vmatpush.bf16.msra.mxu0 %v1279
        %1289 = vmatpush.bf16.msra.mxu0 %v1278
        %1290 = vmatpush.bf16.msra.mxu0 %v1277
        %1291 = vmatpush.bf16.msra.mxu0 %v1276
        %1292 = vmatpush.bf16.msra.mxu0 %v1275
        %1293 = vmatpush.bf16.msra.mxu0 %v1274
        %1294 = vmatpush.bf16.msra.mxu0 %v1273
        %1295 = vmatpush.bf16.msra.mxu0 %v1272
        %1296 = vmatmul.bf16.gmra.mxu0 %v824
        %v1297 = vpop.f32.mrf.mxu0
        %v1298 = vadd.f32 0.0, %v1297
        %v1299 = vpop.f32.mrf.mxu0
        %v1300 = vadd.f32 0.0, %v1299
        %1301 = vmatmul.bf16.gmra.mxu0 %v825
        %v1302 = vpop.f32.mrf.mxu0
        %v1303 = vadd.f32 0.0, %v1302
        %v1304 = vpop.f32.mrf.mxu0
        %v1305 = vadd.f32 0.0, %v1304
        %1306 = vmatmul.bf16.gmra.mxu0 %v826
        %v1307 = vpop.f32.mrf.mxu0
        %v1308 = vadd.f32 0.0, %v1307
        %v1309 = vpop.f32.mrf.mxu0
        %v1310 = vadd.f32 0.0, %v1309
        %1311 = vmatmul.bf16.gmra.mxu0 %v827
        %v1312 = vpop.f32.mrf.mxu0
        %v1313 = vadd.f32 0.0, %v1312
        %v1314 = vpop.f32.mrf.mxu0
        %v1315 = vadd.f32 0.0, %v1314
        %1316 = vmatmul.bf16.gmra.mxu0 %v828
        %v1317 = vpop.f32.mrf.mxu0
        %v1318 = vadd.f32 0.0, %v1317
        %v1319 = vpop.f32.mrf.mxu0
        %v1320 = vadd.f32 0.0, %v1319
        %1321 = vmatmul.bf16.gmra.mxu0 %v829
        %v1322 = vpop.f32.mrf.mxu0
        %v1323 = vadd.f32 0.0, %v1322
        %v1324 = vpop.f32.mrf.mxu0
        %v1325 = vadd.f32 0.0, %v1324
        %1326 = vmatmul.bf16.gmra.mxu0 %v830
        %v1327 = vpop.f32.mrf.mxu0
        %v1328 = vadd.f32 0.0, %v1327
        %v1329 = vpop.f32.mrf.mxu0
        %v1330 = vadd.f32 0.0, %v1329
        %1331 = vmatmul.bf16.gmra.mxu0 %v831
        %v1332 = vpop.f32.mrf.mxu0
        %v1333 = vadd.f32 0.0, %v1332
        %v1334 = vpop.f32.mrf.mxu0
        %v1335 = vadd.f32 0.0, %v1334
        %1336 = vmatmul.bf16.gmra.mxu0 %v832
        %v1337 = vpop.f32.mrf.mxu0
        %v1338 = vadd.f32 0.0, %v1337
        %v1339 = vpop.f32.mrf.mxu0
        %v1340 = vadd.f32 0.0, %v1339
        %1341 = vmatmul.bf16.gmra.mxu0 %v1238
        %v1342 = vpop.f32.mrf.mxu0
        %v1343 = vadd.f32 0.0, %v1342
        %v1344 = vpop.f32.mrf.mxu0
        %v1345 = vadd.f32 0.0, %v1344
        %1346 = vdwg.mxu0
        %v1347 = vadd.f32 %v1197, %v1298
        %v1348 = vadd.f32 %v1198, %v1300
        %v1349 = vadd.f32 %v1199, %v1303
        %v1350 = vadd.f32 %v1200, %v1305
        %v1351 = vadd.f32 %v1201, %v1308
        %v1352 = vadd.f32 %v1202, %v1310
        %v1353 = vadd.f32 %v1203, %v1313
        %v1354 = vadd.f32 %v1204, %v1315
        %v1355 = vadd.f32 %v1205, %v1318
        %v1356 = vadd.f32 %v1206, %v1320
        %v1357 = vadd.f32 %v1207, %v1323
        %v1358 = vadd.f32 %v1208, %v1325
        %v1359 = vadd.f32 %v1209, %v1328
        %v1360 = vadd.f32 %v1210, %v1330
        %v1361 = vadd.f32 %v1211, %v1333
        %v1362 = vadd.f32 %v1212, %v1335
        %v1363 = vadd.f32 %v1213, %v1338
        %v1364 = vadd.f32 %v1214, %v1340
        %v1365 = vadd.f32 %v1215, %v1343
        %v1366 = vadd.f32 %v1216, %v1345
        %v1368 = vshrl.u32 %v354, 16
        %v1370 = vrot.slane %v1368, 4
        %v1371 = vshll.u32 %v354, 16
        %v1373 = vrot.slane %v1371, 5
        %v1374 = vor.u32 %v1370, %v1373
        %v1375 = vrot.slane %v1374, 4
        %v1377 = vshll.u32 %v355, 16
        %v1379 = vrot.slane %v1377, 5
        %v1380 = vsel %vm378, %v1375, %v1379
        %v1381 = vshrl.u32 %v355, 16
        %v1383 = vrot.slane %v1381, 4
        %v1384 = vor.u32 %v1383, %v1379
        %v1385 = vrot.slane %v1384, 4
        %v1387 = vshll.u32 %v356, 16
        %v1389 = vrot.slane %v1387, 5
        %v1390 = vsel %vm378, %v1385, %v1389
        %s1391 = scalar_lea.vmem %s1, 256
        %v1392 = vld [vmem:[%s1391] sm:$0xf]
        %v1393 = vld [vmem:[%s1391 + $0x4] sm:$0xf]
        %v1394 = vld [vmem:[%s1391 + $0x8] sm:$0xf]
        %v1395 = vld [vmem:[%s1391 + $0xc] sm:$0xf]
        %v1396 = vld [vmem:[%s1391 + $0x10] sm:$0xf]
        %v1397 = vld [vmem:[%s1391 + $0x14] sm:$0xf]
        %v1398 = vld [vmem:[%s1391 + $0x18] sm:$0xf]
        %v1399 = vld [vmem:[%s1391 + $0x1c] sm:$0xf]
        %v1400 = vld [vmem:[%s1391 + $0x20] sm:$0xf]
        %v1401 = vld [vmem:[%s1391 + $0x24] sm:$0xf]
        %v1402 = vld [vmem:[%s1391 + $0x28] sm:$0xf]
        %v1403 = vld [vmem:[%s1391 + $0x2c] sm:$0xf]
        %v1404 = vld [vmem:[%s1391 + $0x30] sm:$0xf]
        %v1405 = vld [vmem:[%s1391 + $0x34] sm:$0xf]
        %v1406 = vld [vmem:[%s1391 + $0x38] sm:$0xf]
        %v1407 = vld [vmem:[%s1391 + $0x3c] sm:$0xf]
        %v1408 = vunpack.c.l.b16 %v1380
        %v1409 = vunpack.c.l.b16 %v1390
        %v1410 = vpack.c.b16 %v1409, %v1408
        %v1428 = vunpack.c.l.b16 %v1392
        %v1429 = vunpack.c.l.b16 %v1393
        %v1430 = vunpack.c.l.b16 %v1394
        %v1431 = vunpack.c.l.b16 %v1395
        %v1432 = vunpack.c.l.b16 %v1396
        %v1433 = vunpack.c.l.b16 %v1397
        %v1434 = vunpack.c.l.b16 %v1398
        %v1435 = vunpack.c.l.b16 %v1399
        %v1436 = vunpack.c.l.b16 %v1400
        %v1437 = vunpack.c.l.b16 %v1401
        %v1438 = vunpack.c.l.b16 %v1402
        %v1439 = vunpack.c.l.b16 %v1403
        %v1440 = vunpack.c.l.b16 %v1404
        %v1441 = vunpack.c.l.b16 %v1405
        %v1442 = vunpack.c.l.b16 %v1406
        %v1443 = vunpack.c.l.b16 %v1407
        %v1444 = vpack.c.b16 %v1429, %v1428
        %v1445 = vpack.c.b16 %v1431, %v1430
        %v1446 = vpack.c.b16 %v1433, %v1432
        %v1447 = vpack.c.b16 %v1435, %v1434
        %v1448 = vpack.c.b16 %v1437, %v1436
        %v1449 = vpack.c.b16 %v1439, %v1438
        %v1450 = vpack.c.b16 %v1441, %v1440
        %v1451 = vpack.c.b16 %v1443, %v1442
        %1460 = vmatpush.bf16.msra.mxu0 %v1451
        %1461 = vmatpush.bf16.msra.mxu0 %v1450
        %1462 = vmatpush.bf16.msra.mxu0 %v1449
        %1463 = vmatpush.bf16.msra.mxu0 %v1448
        %1464 = vmatpush.bf16.msra.mxu0 %v1447
        %1465 = vmatpush.bf16.msra.mxu0 %v1446
        %1466 = vmatpush.bf16.msra.mxu0 %v1445
        %1467 = vmatpush.bf16.msra.mxu0 %v1444
        %1468 = vmatmul.bf16.gmra.mxu0 %v657
        %v1469 = vpop.f32.mrf.mxu0
        %v1470 = vadd.f32 0.0, %v1469
        %v1471 = vpop.f32.mrf.mxu0
        %v1472 = vadd.f32 0.0, %v1471
        %1473 = vmatmul.bf16.gmra.mxu0 %v658
        %v1474 = vpop.f32.mrf.mxu0
        %v1475 = vadd.f32 0.0, %v1474
        %v1476 = vpop.f32.mrf.mxu0
        %v1477 = vadd.f32 0.0, %v1476
        %1478 = vmatmul.bf16.gmra.mxu0 %v659
        %v1479 = vpop.f32.mrf.mxu0
        %v1480 = vadd.f32 0.0, %v1479
        %v1481 = vpop.f32.mrf.mxu0
        %v1482 = vadd.f32 0.0, %v1481
        %1483 = vmatmul.bf16.gmra.mxu0 %v660
        %v1484 = vpop.f32.mrf.mxu0
        %v1485 = vadd.f32 0.0, %v1484
        %v1486 = vpop.f32.mrf.mxu0
        %v1487 = vadd.f32 0.0, %v1486
        %1488 = vmatmul.bf16.gmra.mxu0 %v661
        %v1489 = vpop.f32.mrf.mxu0
        %v1490 = vadd.f32 0.0, %v1489
        %v1491 = vpop.f32.mrf.mxu0
        %v1492 = vadd.f32 0.0, %v1491
        %1493 = vmatmul.bf16.gmra.mxu0 %v662
        %v1494 = vpop.f32.mrf.mxu0
        %v1495 = vadd.f32 0.0, %v1494
        %v1496 = vpop.f32.mrf.mxu0
        %v1497 = vadd.f32 0.0, %v1496
        %1498 = vmatmul.bf16.gmra.mxu0 %v663
        %v1499 = vpop.f32.mrf.mxu0
        %v1500 = vadd.f32 0.0, %v1499
        %v1501 = vpop.f32.mrf.mxu0
        %v1502 = vadd.f32 0.0, %v1501
        %1503 = vmatmul.bf16.gmra.mxu0 %v664
        %v1504 = vpop.f32.mrf.mxu0
        %v1505 = vadd.f32 0.0, %v1504
        %v1506 = vpop.f32.mrf.mxu0
        %v1507 = vadd.f32 0.0, %v1506
        %1508 = vmatmul.bf16.gmra.mxu0 %v665
        %v1509 = vpop.f32.mrf.mxu0
        %v1510 = vadd.f32 0.0, %v1509
        %v1511 = vpop.f32.mrf.mxu0
        %v1512 = vadd.f32 0.0, %v1511
        %1513 = vmatmul.bf16.gmra.mxu0 %v1410
        %v1514 = vpop.f32.mrf.mxu0
        %v1515 = vadd.f32 0.0, %v1514
        %v1516 = vpop.f32.mrf.mxu0
        %v1517 = vadd.f32 0.0, %v1516
        %1518 = vdwg.mxu0
        %v1519 = vadd.f32 %v1347, %v1470
        %v1520 = vadd.f32 %v1348, %v1472
        %v1521 = vadd.f32 %v1349, %v1475
        %v1522 = vadd.f32 %v1350, %v1477
        %v1523 = vadd.f32 %v1351, %v1480
        %v1524 = vadd.f32 %v1352, %v1482
        %v1525 = vadd.f32 %v1353, %v1485
        %v1526 = vadd.f32 %v1354, %v1487
        %v1527 = vadd.f32 %v1355, %v1490
        %v1528 = vadd.f32 %v1356, %v1492
        %v1529 = vadd.f32 %v1357, %v1495
        %v1530 = vadd.f32 %v1358, %v1497
        %v1531 = vadd.f32 %v1359, %v1500
        %v1532 = vadd.f32 %v1360, %v1502
        %v1533 = vadd.f32 %v1361, %v1505
        %v1534 = vadd.f32 %v1362, %v1507
        %v1535 = vadd.f32 %v1363, %v1510
        %v1536 = vadd.f32 %v1364, %v1512
        %v1537 = vadd.f32 %v1365, %v1515
        %v1538 = vadd.f32 %v1366, %v1517
        %v1540 = vrot.slane %v354, 5
        %v1541 = vrot.slane %v1540, 4
        %v1542 = vrot.slane %v355, 5
        %v1543 = vsel %vm962, %v1541, %v1542
        %v1544 = vrot.slane %v1542, 4
        %v1545 = vrot.slane %v356, 5
        %v1546 = vsel %vm962, %v1544, %v1545
        %s1547 = scalar_lea.vmem %s1, 320
        %v1548 = vld [vmem:[%s1547] sm:$0xf]
        %v1549 = vld [vmem:[%s1547 + $0x4] sm:$0xf]
        %v1550 = vld [vmem:[%s1547 + $0x8] sm:$0xf]
        %v1551 = vld [vmem:[%s1547 + $0xc] sm:$0xf]
        %v1552 = vld [vmem:[%s1547 + $0x10] sm:$0xf]
        %v1553 = vld [vmem:[%s1547 + $0x14] sm:$0xf]
        %v1554 = vld [vmem:[%s1547 + $0x18] sm:$0xf]
        %v1555 = vld [vmem:[%s1547 + $0x1c] sm:$0xf]
        %v1556 = vld [vmem:[%s1547 + $0x20] sm:$0xf]
        %v1557 = vld [vmem:[%s1547 + $0x24] sm:$0xf]
        %v1558 = vld [vmem:[%s1547 + $0x28] sm:$0xf]
        %v1559 = vld [vmem:[%s1547 + $0x2c] sm:$0xf]
        %v1560 = vld [vmem:[%s1547 + $0x30] sm:$0xf]
        %v1561 = vld [vmem:[%s1547 + $0x34] sm:$0xf]
        %v1562 = vld [vmem:[%s1547 + $0x38] sm:$0xf]
        %v1563 = vld [vmem:[%s1547 + $0x3c] sm:$0xf]
        %v1564 = vunpack.c.l.b16 %v1543
        %v1565 = vunpack.c.l.b16 %v1546
        %v1566 = vpack.c.b16 %v1565, %v1564
        %v1584 = vunpack.c.l.b16 %v1548
        %v1585 = vunpack.c.l.b16 %v1549
        %v1586 = vunpack.c.l.b16 %v1550
        %v1587 = vunpack.c.l.b16 %v1551
        %v1588 = vunpack.c.l.b16 %v1552
        %v1589 = vunpack.c.l.b16 %v1553
        %v1590 = vunpack.c.l.b16 %v1554
        %v1591 = vunpack.c.l.b16 %v1555
        %v1592 = vunpack.c.l.b16 %v1556
        %v1593 = vunpack.c.l.b16 %v1557
        %v1594 = vunpack.c.l.b16 %v1558
        %v1595 = vunpack.c.l.b16 %v1559
        %v1596 = vunpack.c.l.b16 %v1560
        %v1597 = vunpack.c.l.b16 %v1561
        %v1598 = vunpack.c.l.b16 %v1562
        %v1599 = vunpack.c.l.b16 %v1563
        %v1600 = vpack.c.b16 %v1585, %v1584
        %v1601 = vpack.c.b16 %v1587, %v1586
        %v1602 = vpack.c.b16 %v1589, %v1588
        %v1603 = vpack.c.b16 %v1591, %v1590
        %v1604 = vpack.c.b16 %v1593, %v1592
        %v1605 = vpack.c.b16 %v1595, %v1594
        %v1606 = vpack.c.b16 %v1597, %v1596
        %v1607 = vpack.c.b16 %v1599, %v1598
        %1616 = vmatpush.bf16.msra.mxu0 %v1607
        %1617 = vmatpush.bf16.msra.mxu0 %v1606
        %1618 = vmatpush.bf16.msra.mxu0 %v1605
        %1619 = vmatpush.bf16.msra.mxu0 %v1604
        %1620 = vmatpush.bf16.msra.mxu0 %v1603
        %1621 = vmatpush.bf16.msra.mxu0 %v1602
        %1622 = vmatpush.bf16.msra.mxu0 %v1601
        %1623 = vmatpush.bf16.msra.mxu0 %v1600
        %1624 = vmatmul.bf16.gmra.mxu0 %v1071
        %v1625 = vpop.f32.mrf.mxu0
        %v1626 = vadd.f32 0.0, %v1625
        %v1627 = vpop.f32.mrf.mxu0
        %v1628 = vadd.f32 0.0, %v1627
        %1629 = vmatmul.bf16.gmra.mxu0 %v1072
        %v1630 = vpop.f32.mrf.mxu0
        %v1631 = vadd.f32 0.0, %v1630
        %v1632 = vpop.f32.mrf.mxu0
        %v1633 = vadd.f32 0.0, %v1632
        %1634 = vmatmul.bf16.gmra.mxu0 %v1073
        %v1635 = vpop.f32.mrf.mxu0
        %v1636 = vadd.f32 0.0, %v1635
        %v1637 = vpop.f32.mrf.mxu0
        %v1638 = vadd.f32 0.0, %v1637
        %1639 = vmatmul.bf16.gmra.mxu0 %v1074
        %v1640 = vpop.f32.mrf.mxu0
        %v1641 = vadd.f32 0.0, %v1640
        %v1642 = vpop.f32.mrf.mxu0
        %v1643 = vadd.f32 0.0, %v1642
        %1644 = vmatmul.bf16.gmra.mxu0 %v1075
        %v1645 = vpop.f32.mrf.mxu0
        %v1646 = vadd.f32 0.0, %v1645
        %v1647 = vpop.f32.mrf.mxu0
        %v1648 = vadd.f32 0.0, %v1647
        %1649 = vmatmul.bf16.gmra.mxu0 %v1076
        %v1650 = vpop.f32.mrf.mxu0
        %v1651 = vadd.f32 0.0, %v1650
        %v1652 = vpop.f32.mrf.mxu0
        %v1653 = vadd.f32 0.0, %v1652
        %1654 = vmatmul.bf16.gmra.mxu0 %v1077
        %v1655 = vpop.f32.mrf.mxu0
        %v1656 = vadd.f32 0.0, %v1655
        %v1657 = vpop.f32.mrf.mxu0
        %v1658 = vadd.f32 0.0, %v1657
        %1659 = vmatmul.bf16.gmra.mxu0 %v1078
        %v1660 = vpop.f32.mrf.mxu0
        %v1661 = vadd.f32 0.0, %v1660
        %v1662 = vpop.f32.mrf.mxu0
        %v1663 = vadd.f32 0.0, %v1662
        %1664 = vmatmul.bf16.gmra.mxu0 %v1079
        %v1665 = vpop.f32.mrf.mxu0
        %v1666 = vadd.f32 0.0, %v1665
        %v1667 = vpop.f32.mrf.mxu0
        %v1668 = vadd.f32 0.0, %v1667
        %1669 = vmatmul.bf16.gmra.mxu0 %v1566
        %v1670 = vpop.f32.mrf.mxu0
        %v1671 = vadd.f32 0.0, %v1670
        %v1672 = vpop.f32.mrf.mxu0
        %v1673 = vadd.f32 0.0, %v1672
        %1674 = vdwg.mxu0
        %v1675 = vadd.f32 %v1519, %v1626
        %v1676 = vadd.f32 %v1520, %v1628
        %v1677 = vadd.f32 %v1521, %v1631
        %v1678 = vadd.f32 %v1522, %v1633
        %v1679 = vadd.f32 %v1523, %v1636
        %v1680 = vadd.f32 %v1524, %v1638
        %v1681 = vadd.f32 %v1525, %v1641
        %v1682 = vadd.f32 %v1526, %v1643
        %v1683 = vadd.f32 %v1527, %v1646
        %v1684 = vadd.f32 %v1528, %v1648
        %v1685 = vadd.f32 %v1529, %v1651
        %v1686 = vadd.f32 %v1530, %v1653
        %v1687 = vadd.f32 %v1531, %v1656
        %v1688 = vadd.f32 %v1532, %v1658
        %v1689 = vadd.f32 %v1533, %v1661
        %v1690 = vadd.f32 %v1534, %v1663
        %v1691 = vadd.f32 %v1535, %v1666
        %v1692 = vadd.f32 %v1536, %v1668
        %v1693 = vadd.f32 %v1537, %v1671
        %v1694 = vadd.f32 %v1538, %v1673
        %s1695 = scalar_lea.vmem %s1, 384
        %v1696 = vld [vmem:[%s1695] sm:$0xf]
        %v1697 = vld [vmem:[%s1695 + $0x4] sm:$0xf]
        %v1698 = vld [vmem:[%s1695 + $0x8] sm:$0xf]
        %v1699 = vld [vmem:[%s1695 + $0xc] sm:$0xf]
        %v1700 = vld [vmem:[%s1695 + $0x10] sm:$0xf]
        %v1701 = vld [vmem:[%s1695 + $0x14] sm:$0xf]
        %v1702 = vld [vmem:[%s1695 + $0x18] sm:$0xf]
        %v1703 = vld [vmem:[%s1695 + $0x1c] sm:$0xf]
        %v1704 = vld [vmem:[%s1695 + $0x20] sm:$0xf]
        %v1705 = vld [vmem:[%s1695 + $0x24] sm:$0xf]
        %v1706 = vld [vmem:[%s1695 + $0x28] sm:$0xf]
        %v1707 = vld [vmem:[%s1695 + $0x2c] sm:$0xf]
        %v1708 = vld [vmem:[%s1695 + $0x30] sm:$0xf]
        %v1709 = vld [vmem:[%s1695 + $0x34] sm:$0xf]
        %v1710 = vld [vmem:[%s1695 + $0x38] sm:$0xf]
        %v1711 = vld [vmem:[%s1695 + $0x3c] sm:$0xf]
        %v1714 = vunpack.c.l.b16 %v357
        %v1715 = vunpack.c.l.b16 %v358
        %v1716 = vpack.c.b16 %v1715, %v1714
        %v1734 = vunpack.c.l.b16 %v1696
        %v1735 = vunpack.c.l.b16 %v1697
        %v1736 = vunpack.c.l.b16 %v1698
        %v1737 = vunpack.c.l.b16 %v1699
        %v1738 = vunpack.c.l.b16 %v1700
        %v1739 = vunpack.c.l.b16 %v1701
        %v1740 = vunpack.c.l.b16 %v1702
        %v1741 = vunpack.c.l.b16 %v1703
        %v1742 = vunpack.c.l.b16 %v1704
        %v1743 = vunpack.c.l.b16 %v1705
        %v1744 = vunpack.c.l.b16 %v1706
        %v1745 = vunpack.c.l.b16 %v1707
        %v1746 = vunpack.c.l.b16 %v1708
        %v1747 = vunpack.c.l.b16 %v1709
        %v1748 = vunpack.c.l.b16 %v1710
        %v1749 = vunpack.c.l.b16 %v1711
        %v1750 = vpack.c.b16 %v1735, %v1734
        %v1751 = vpack.c.b16 %v1737, %v1736
        %v1752 = vpack.c.b16 %v1739, %v1738
        %v1753 = vpack.c.b16 %v1741, %v1740
        %v1754 = vpack.c.b16 %v1743, %v1742
        %v1755 = vpack.c.b16 %v1745, %v1744
        %v1756 = vpack.c.b16 %v1747, %v1746
        %v1757 = vpack.c.b16 %v1749, %v1748
        %1766 = vmatpush.bf16.msra.mxu0 %v1757
        %1767 = vmatpush.bf16.msra.mxu0 %v1756
        %1768 = vmatpush.bf16.msra.mxu0 %v1755
        %1769 = vmatpush.bf16.msra.mxu0 %v1754
        %1770 = vmatpush.bf16.msra.mxu0 %v1753
        %1771 = vmatpush.bf16.msra.mxu0 %v1752
        %1772 = vmatpush.bf16.msra.mxu0 %v1751
        %1773 = vmatpush.bf16.msra.mxu0 %v1750
        %1774 = vmatmul.bf16.gmra.mxu0 %v825
        %v1775 = vpop.f32.mrf.mxu0
        %v1776 = vadd.f32 0.0, %v1775
        %v1777 = vpop.f32.mrf.mxu0
        %v1778 = vadd.f32 0.0, %v1777
        %1779 = vmatmul.bf16.gmra.mxu0 %v826
        %v1780 = vpop.f32.mrf.mxu0
        %v1781 = vadd.f32 0.0, %v1780
        %v1782 = vpop.f32.mrf.mxu0
        %v1783 = vadd.f32 0.0, %v1782
        %1784 = vmatmul.bf16.gmra.mxu0 %v827
        %v1785 = vpop.f32.mrf.mxu0
        %v1786 = vadd.f32 0.0, %v1785
        %v1787 = vpop.f32.mrf.mxu0
        %v1788 = vadd.f32 0.0, %v1787
        %1789 = vmatmul.bf16.gmra.mxu0 %v828
        %v1790 = vpop.f32.mrf.mxu0
        %v1791 = vadd.f32 0.0, %v1790
        %v1792 = vpop.f32.mrf.mxu0
        %v1793 = vadd.f32 0.0, %v1792
        %1794 = vmatmul.bf16.gmra.mxu0 %v829
        %v1795 = vpop.f32.mrf.mxu0
        %v1796 = vadd.f32 0.0, %v1795
        %v1797 = vpop.f32.mrf.mxu0
        %v1798 = vadd.f32 0.0, %v1797
        %1799 = vmatmul.bf16.gmra.mxu0 %v830
        %v1800 = vpop.f32.mrf.mxu0
        %v1801 = vadd.f32 0.0, %v1800
        %v1802 = vpop.f32.mrf.mxu0
        %v1803 = vadd.f32 0.0, %v1802
        %1804 = vmatmul.bf16.gmra.mxu0 %v831
        %v1805 = vpop.f32.mrf.mxu0
        %v1806 = vadd.f32 0.0, %v1805
        %v1807 = vpop.f32.mrf.mxu0
        %v1808 = vadd.f32 0.0, %v1807
        %1809 = vmatmul.bf16.gmra.mxu0 %v832
        %v1810 = vpop.f32.mrf.mxu0
        %v1811 = vadd.f32 0.0, %v1810
        %v1812 = vpop.f32.mrf.mxu0
        %v1813 = vadd.f32 0.0, %v1812
        %1814 = vmatmul.bf16.gmra.mxu0 %v1238
        %v1815 = vpop.f32.mrf.mxu0
        %v1816 = vadd.f32 0.0, %v1815
        %v1817 = vpop.f32.mrf.mxu0
        %v1818 = vadd.f32 0.0, %v1817
        %1819 = vmatmul.bf16.gmra.mxu0 %v1716
        %v1820 = vpop.f32.mrf.mxu0
        %v1821 = vadd.f32 0.0, %v1820
        %v1822 = vpop.f32.mrf.mxu0
        %v1823 = vadd.f32 0.0, %v1822
        %1824 = vdwg.mxu0
        %v1825 = vadd.f32 %v1675, %v1776
        %v1826 = vadd.f32 %v1676, %v1778
        %v1827 = vadd.f32 %v1677, %v1781
        %v1828 = vadd.f32 %v1678, %v1783
        %v1829 = vadd.f32 %v1679, %v1786
        %v1830 = vadd.f32 %v1680, %v1788
        %v1831 = vadd.f32 %v1681, %v1791
        %v1832 = vadd.f32 %v1682, %v1793
        %v1833 = vadd.f32 %v1683, %v1796
        %v1834 = vadd.f32 %v1684, %v1798
        %v1835 = vadd.f32 %v1685, %v1801
        %v1836 = vadd.f32 %v1686, %v1803
        %v1837 = vadd.f32 %v1687, %v1806
        %v1838 = vadd.f32 %v1688, %v1808
        %v1839 = vadd.f32 %v1689, %v1811
        %v1840 = vadd.f32 %v1690, %v1813
        %v1841 = vadd.f32 %v1691, %v1816
        %v1842 = vadd.f32 %v1692, %v1818
        %v1843 = vadd.f32 %v1693, %v1821
        %v1844 = vadd.f32 %v1694, %v1823
        %v1846 = vshrl.u32 %v357, 16
        %v1848 = vrot.slane %v1846, 4
        %v1849 = vshll.u32 %v357, 16
        %v1851 = vrot.slane %v1849, 5
        %v1852 = vor.u32 %v1848, %v1851
        %v1853 = vrot.slane %v1852, 4
        %v1855 = vshll.u32 %v358, 16
        %v1857 = vrot.slane %v1855, 5
        %v1858 = vsel %vm378, %v1853, %v1857
        %v1859 = vshrl.u32 %v358, 16
        %v1861 = vrot.slane %v1859, 4
        %v1862 = vor.u32 %v1861, %v1857
        %v1863 = vrot.slane %v1862, 4
        %v1865 = vshll.u32 %v359, 16
        %v1867 = vrot.slane %v1865, 5
        %v1868 = vsel %vm378, %v1863, %v1867
        %s1869 = scalar_lea.vmem %s1, 448
        %v1870 = vld [vmem:[%s1869] sm:$0xf]
        %v1871 = vld [vmem:[%s1869 + $0x4] sm:$0xf]
        %v1872 = vld [vmem:[%s1869 + $0x8] sm:$0xf]
        %v1873 = vld [vmem:[%s1869 + $0xc] sm:$0xf]
        %v1874 = vld [vmem:[%s1869 + $0x10] sm:$0xf]
        %v1875 = vld [vmem:[%s1869 + $0x14] sm:$0xf]
        %v1876 = vld [vmem:[%s1869 + $0x18] sm:$0xf]
        %v1877 = vld [vmem:[%s1869 + $0x1c] sm:$0xf]
        %v1878 = vld [vmem:[%s1869 + $0x20] sm:$0xf]
        %v1879 = vld [vmem:[%s1869 + $0x24] sm:$0xf]
        %v1880 = vld [vmem:[%s1869 + $0x28] sm:$0xf]
        %v1881 = vld [vmem:[%s1869 + $0x2c] sm:$0xf]
        %v1882 = vld [vmem:[%s1869 + $0x30] sm:$0xf]
        %v1883 = vld [vmem:[%s1869 + $0x34] sm:$0xf]
        %v1884 = vld [vmem:[%s1869 + $0x38] sm:$0xf]
        %v1885 = vld [vmem:[%s1869 + $0x3c] sm:$0xf]
        %v1886 = vunpack.c.l.b16 %v1858
        %v1887 = vunpack.c.l.b16 %v1868
        %v1888 = vpack.c.b16 %v1887, %v1886
        %v1906 = vunpack.c.l.b16 %v1870
        %v1907 = vunpack.c.l.b16 %v1871
        %v1908 = vunpack.c.l.b16 %v1872
        %v1909 = vunpack.c.l.b16 %v1873
        %v1910 = vunpack.c.l.b16 %v1874
        %v1911 = vunpack.c.l.b16 %v1875
        %v1912 = vunpack.c.l.b16 %v1876
        %v1913 = vunpack.c.l.b16 %v1877
        %v1914 = vunpack.c.l.b16 %v1878
        %v1915 = vunpack.c.l.b16 %v1879
        %v1916 = vunpack.c.l.b16 %v1880
        %v1917 = vunpack.c.l.b16 %v1881
        %v1918 = vunpack.c.l.b16 %v1882
        %v1919 = vunpack.c.l.b16 %v1883
        %v1920 = vunpack.c.l.b16 %v1884
        %v1921 = vunpack.c.l.b16 %v1885
        %v1922 = vpack.c.b16 %v1907, %v1906
        %v1923 = vpack.c.b16 %v1909, %v1908
        %v1924 = vpack.c.b16 %v1911, %v1910
        %v1925 = vpack.c.b16 %v1913, %v1912
        %v1926 = vpack.c.b16 %v1915, %v1914
        %v1927 = vpack.c.b16 %v1917, %v1916
        %v1928 = vpack.c.b16 %v1919, %v1918
        %v1929 = vpack.c.b16 %v1921, %v1920
        %1938 = vmatpush.bf16.msra.mxu0 %v1929
        %1939 = vmatpush.bf16.msra.mxu0 %v1928
        %1940 = vmatpush.bf16.msra.mxu0 %v1927
        %1941 = vmatpush.bf16.msra.mxu0 %v1926
        %1942 = vmatpush.bf16.msra.mxu0 %v1925
        %1943 = vmatpush.bf16.msra.mxu0 %v1924
        %1944 = vmatpush.bf16.msra.mxu0 %v1923
        %1945 = vmatpush.bf16.msra.mxu0 %v1922
        %1946 = vmatmul.bf16.gmra.mxu0 %v658
        %v1947 = vpop.f32.mrf.mxu0
        %v1948 = vadd.f32 0.0, %v1947
        %v1949 = vpop.f32.mrf.mxu0
        %v1950 = vadd.f32 0.0, %v1949
        %1951 = vmatmul.bf16.gmra.mxu0 %v659
        %v1952 = vpop.f32.mrf.mxu0
        %v1953 = vadd.f32 0.0, %v1952
        %v1954 = vpop.f32.mrf.mxu0
        %v1955 = vadd.f32 0.0, %v1954
        %1956 = vmatmul.bf16.gmra.mxu0 %v660
        %v1957 = vpop.f32.mrf.mxu0
        %v1958 = vadd.f32 0.0, %v1957
        %v1959 = vpop.f32.mrf.mxu0
        %v1960 = vadd.f32 0.0, %v1959
        %1961 = vmatmul.bf16.gmra.mxu0 %v661
        %v1962 = vpop.f32.mrf.mxu0
        %v1963 = vadd.f32 0.0, %v1962
        %v1964 = vpop.f32.mrf.mxu0
        %v1965 = vadd.f32 0.0, %v1964
        %1966 = vmatmul.bf16.gmra.mxu0 %v662
        %v1967 = vpop.f32.mrf.mxu0
        %v1968 = vadd.f32 0.0, %v1967
        %v1969 = vpop.f32.mrf.mxu0
        %v1970 = vadd.f32 0.0, %v1969
        %1971 = vmatmul.bf16.gmra.mxu0 %v663
        %v1972 = vpop.f32.mrf.mxu0
        %v1973 = vadd.f32 0.0, %v1972
        %v1974 = vpop.f32.mrf.mxu0
        %v1975 = vadd.f32 0.0, %v1974
        %1976 = vmatmul.bf16.gmra.mxu0 %v664
        %v1977 = vpop.f32.mrf.mxu0
        %v1978 = vadd.f32 0.0, %v1977
        %v1979 = vpop.f32.mrf.mxu0
        %v1980 = vadd.f32 0.0, %v1979
        %1981 = vmatmul.bf16.gmra.mxu0 %v665
        %v1982 = vpop.f32.mrf.mxu0
        %v1983 = vadd.f32 0.0, %v1982
        %v1984 = vpop.f32.mrf.mxu0
        %v1985 = vadd.f32 0.0, %v1984
        %1986 = vmatmul.bf16.gmra.mxu0 %v1410
        %v1987 = vpop.f32.mrf.mxu0
        %v1988 = vadd.f32 0.0, %v1987
        %v1989 = vpop.f32.mrf.mxu0
        %v1990 = vadd.f32 0.0, %v1989
        %1991 = vmatmul.bf16.gmra.mxu0 %v1888
        %v1992 = vpop.f32.mrf.mxu0
        %v1993 = vadd.f32 0.0, %v1992
        %v1994 = vpop.f32.mrf.mxu0
        %v1995 = vadd.f32 0.0, %v1994
        %1996 = vdwg.mxu0
        %v1997 = vadd.f32 %v1825, %v1948
        %v1998 = vadd.f32 %v1826, %v1950
        %v1999 = vadd.f32 %v1827, %v1953
        %v2000 = vadd.f32 %v1828, %v1955
        %v2001 = vadd.f32 %v1829, %v1958
        %v2002 = vadd.f32 %v1830, %v1960
        %v2003 = vadd.f32 %v1831, %v1963
        %v2004 = vadd.f32 %v1832, %v1965
        %v2005 = vadd.f32 %v1833, %v1968
        %v2006 = vadd.f32 %v1834, %v1970
        %v2007 = vadd.f32 %v1835, %v1973
        %v2008 = vadd.f32 %v1836, %v1975
        %v2009 = vadd.f32 %v1837, %v1978
        %v2010 = vadd.f32 %v1838, %v1980
        %v2011 = vadd.f32 %v1839, %v1983
        %v2012 = vadd.f32 %v1840, %v1985
        %v2013 = vadd.f32 %v1841, %v1988
        %v2014 = vadd.f32 %v1842, %v1990
        %v2015 = vadd.f32 %v1843, %v1993
        %v2016 = vadd.f32 %v1844, %v1995
        %v2018 = vrot.slane %v357, 5
        %v2019 = vrot.slane %v2018, 4
        %v2020 = vrot.slane %v358, 5
        %v2021 = vsel %vm962, %v2019, %v2020
        %v2022 = vrot.slane %v2020, 4
        %v2023 = vrot.slane %v359, 5
        %v2024 = vsel %vm962, %v2022, %v2023
        %s2025 = scalar_lea.vmem %s1, 512
        %v2026 = vld [vmem:[%s2025] sm:$0xf]
        %v2027 = vld [vmem:[%s2025 + $0x4] sm:$0xf]
        %v2028 = vld [vmem:[%s2025 + $0x8] sm:$0xf]
        %v2029 = vld [vmem:[%s2025 + $0xc] sm:$0xf]
        %v2030 = vld [vmem:[%s2025 + $0x10] sm:$0xf]
        %v2031 = vld [vmem:[%s2025 + $0x14] sm:$0xf]
        %v2032 = vld [vmem:[%s2025 + $0x18] sm:$0xf]
        %v2033 = vld [vmem:[%s2025 + $0x1c] sm:$0xf]
        %v2034 = vld [vmem:[%s2025 + $0x20] sm:$0xf]
        %v2035 = vld [vmem:[%s2025 + $0x24] sm:$0xf]
        %v2036 = vld [vmem:[%s2025 + $0x28] sm:$0xf]
        %v2037 = vld [vmem:[%s2025 + $0x2c] sm:$0xf]
        %v2038 = vld [vmem:[%s2025 + $0x30] sm:$0xf]
        %v2039 = vld [vmem:[%s2025 + $0x34] sm:$0xf]
        %v2040 = vld [vmem:[%s2025 + $0x38] sm:$0xf]
        %v2041 = vld [vmem:[%s2025 + $0x3c] sm:$0xf]
        %v2042 = vunpack.c.l.b16 %v2021
        %v2043 = vunpack.c.l.b16 %v2024
        %v2044 = vpack.c.b16 %v2043, %v2042
        %v2062 = vunpack.c.l.b16 %v2026
        %v2063 = vunpack.c.l.b16 %v2027
        %v2064 = vunpack.c.l.b16 %v2028
        %v2065 = vunpack.c.l.b16 %v2029
        %v2066 = vunpack.c.l.b16 %v2030
        %v2067 = vunpack.c.l.b16 %v2031
        %v2068 = vunpack.c.l.b16 %v2032
        %v2069 = vunpack.c.l.b16 %v2033
        %v2070 = vunpack.c.l.b16 %v2034
        %v2071 = vunpack.c.l.b16 %v2035
        %v2072 = vunpack.c.l.b16 %v2036
        %v2073 = vunpack.c.l.b16 %v2037
        %v2074 = vunpack.c.l.b16 %v2038
        %v2075 = vunpack.c.l.b16 %v2039
        %v2076 = vunpack.c.l.b16 %v2040
        %v2077 = vunpack.c.l.b16 %v2041
        %v2078 = vpack.c.b16 %v2063, %v2062
        %v2079 = vpack.c.b16 %v2065, %v2064
        %v2080 = vpack.c.b16 %v2067, %v2066
        %v2081 = vpack.c.b16 %v2069, %v2068
        %v2082 = vpack.c.b16 %v2071, %v2070
        %v2083 = vpack.c.b16 %v2073, %v2072
        %v2084 = vpack.c.b16 %v2075, %v2074
        %v2085 = vpack.c.b16 %v2077, %v2076
        %2094 = vmatpush.bf16.msra.mxu0 %v2085
        %2095 = vmatpush.bf16.msra.mxu0 %v2084
        %2096 = vmatpush.bf16.msra.mxu0 %v2083
        %2097 = vmatpush.bf16.msra.mxu0 %v2082
        %2098 = vmatpush.bf16.msra.mxu0 %v2081
        %2099 = vmatpush.bf16.msra.mxu0 %v2080
        %2100 = vmatpush.bf16.msra.mxu0 %v2079
        %2101 = vmatpush.bf16.msra.mxu0 %v2078
        %2102 = vmatmul.bf16.gmra.mxu0 %v1072
        %v2103 = vpop.f32.mrf.mxu0
        %v2104 = vadd.f32 0.0, %v2103
        %v2105 = vpop.f32.mrf.mxu0
        %v2106 = vadd.f32 0.0, %v2105
        %2107 = vmatmul.bf16.gmra.mxu0 %v1073
        %v2108 = vpop.f32.mrf.mxu0
        %v2109 = vadd.f32 0.0, %v2108
        %v2110 = vpop.f32.mrf.mxu0
        %v2111 = vadd.f32 0.0, %v2110
        %2112 = vmatmul.bf16.gmra.mxu0 %v1074
        %v2113 = vpop.f32.mrf.mxu0
        %v2114 = vadd.f32 0.0, %v2113
        %v2115 = vpop.f32.mrf.mxu0
        %v2116 = vadd.f32 0.0, %v2115
        %2117 = vmatmul.bf16.gmra.mxu0 %v1075
        %v2118 = vpop.f32.mrf.mxu0
        %v2119 = vadd.f32 0.0, %v2118
        %v2120 = vpop.f32.mrf.mxu0
        %v2121 = vadd.f32 0.0, %v2120
        %2122 = vmatmul.bf16.gmra.mxu0 %v1076
        %v2123 = vpop.f32.mrf.mxu0
        %v2124 = vadd.f32 0.0, %v2123
        %v2125 = vpop.f32.mrf.mxu0
        %v2126 = vadd.f32 0.0, %v2125
        %2127 = vmatmul.bf16.gmra.mxu0 %v1077
        %v2128 = vpop.f32.mrf.mxu0
        %v2129 = vadd.f32 0.0, %v2128
        %v2130 = vpop.f32.mrf.mxu0
        %v2131 = vadd.f32 0.0, %v2130
        %2132 = vmatmul.bf16.gmra.mxu0 %v1078
        %v2133 = vpop.f32.mrf.mxu0
        %v2134 = vadd.f32 0.0, %v2133
        %v2135 = vpop.f32.mrf.mxu0
        %v2136 = vadd.f32 0.0, %v2135
        %2137 = vmatmul.bf16.gmra.mxu0 %v1079
        %v2138 = vpop.f32.mrf.mxu0
        %v2139 = vadd.f32 0.0, %v2138
        %v2140 = vpop.f32.mrf.mxu0
        %v2141 = vadd.f32 0.0, %v2140
        %2142 = vmatmul.bf16.gmra.mxu0 %v1566
        %v2143 = vpop.f32.mrf.mxu0
        %v2144 = vadd.f32 0.0, %v2143
        %v2145 = vpop.f32.mrf.mxu0
        %v2146 = vadd.f32 0.0, %v2145
        %2147 = vmatmul.bf16.gmra.mxu0 %v2044
        %v2148 = vpop.f32.mrf.mxu0
        %v2149 = vadd.f32 0.0, %v2148
        %v2150 = vpop.f32.mrf.mxu0
        %v2151 = vadd.f32 0.0, %v2150
        %2152 = vdwg.mxu0
        %v2153 = vadd.f32 %v1997, %v2104
        %v2154 = vadd.f32 %v1998, %v2106
        %v2155 = vadd.f32 %v1999, %v2109
        %v2156 = vadd.f32 %v2000, %v2111
        %v2157 = vadd.f32 %v2001, %v2114
        %v2158 = vadd.f32 %v2002, %v2116
        %v2159 = vadd.f32 %v2003, %v2119
        %v2160 = vadd.f32 %v2004, %v2121
        %v2161 = vadd.f32 %v2005, %v2124
        %v2162 = vadd.f32 %v2006, %v2126
        %v2163 = vadd.f32 %v2007, %v2129
        %v2164 = vadd.f32 %v2008, %v2131
        %v2165 = vadd.f32 %v2009, %v2134
        %v2166 = vadd.f32 %v2010, %v2136
        %v2167 = vadd.f32 %v2011, %v2139
        %v2168 = vadd.f32 %v2012, %v2141
        %v2169 = vadd.f32 %v2013, %v2144
        %v2170 = vadd.f32 %v2014, %v2146
        %v2171 = vadd.f32 %v2015, %v2149
        %v2172 = vadd.f32 %v2016, %v2151
        %v2173 = vld [vmem:[%s3] sm:$0x1]
        %v2175 = vperm.slane %v2173, 0
        %v2177 = vmul.f32 %v2153, %v2175
        %v2178 = vmul.f32 %v2154, %v2175
        %v2179 = vmul.f32 %v2155, %v2175
        %v2180 = vmul.f32 %v2156, %v2175
        %v2181 = vmul.f32 %v2157, %v2175
        %v2182 = vmul.f32 %v2158, %v2175
        %v2183 = vmul.f32 %v2159, %v2175
        %v2184 = vmul.f32 %v2160, %v2175
        %v2185 = vmul.f32 %v2161, %v2175
        %v2186 = vmul.f32 %v2162, %v2175
        %v2187 = vmul.f32 %v2163, %v2175
        %v2188 = vmul.f32 %v2164, %v2175
        %v2189 = vmul.f32 %v2165, %v2175
        %v2190 = vmul.f32 %v2166, %v2175
        %v2191 = vmul.f32 %v2167, %v2175
        %v2192 = vmul.f32 %v2168, %v2175
        %v2193 = vmul.f32 %v2169, %v2175
        %v2194 = vmul.f32 %v2170, %v2175
        %v2195 = vmul.f32 %v2171, %v2175
        %v2196 = vmul.f32 %v2172, %v2175
        %v2197 = vld [vmem:[%s4] sm:$0x1]
        %v2199 = vperm.slane %v2197, 0
        %v2201 = vadd.f32 %v2177, %v2199
        %v2202 = vadd.f32 %v2178, %v2199
        %v2203 = vadd.f32 %v2179, %v2199
        %v2204 = vadd.f32 %v2180, %v2199
        %v2205 = vadd.f32 %v2181, %v2199
        %v2206 = vadd.f32 %v2182, %v2199
        %v2207 = vadd.f32 %v2183, %v2199
        %v2208 = vadd.f32 %v2184, %v2199
        %v2209 = vadd.f32 %v2185, %v2199
        %v2210 = vadd.f32 %v2186, %v2199
        %v2211 = vadd.f32 %v2187, %v2199
        %v2212 = vadd.f32 %v2188, %v2199
        %v2213 = vadd.f32 %v2189, %v2199
        %v2214 = vadd.f32 %v2190, %v2199
        %v2215 = vadd.f32 %v2191, %v2199
        %v2216 = vadd.f32 %v2192, %v2199
        %v2217 = vadd.f32 %v2193, %v2199
        %v2218 = vadd.f32 %v2194, %v2199
        %v2219 = vadd.f32 %v2195, %v2199
        %v2220 = vadd.f32 %v2196, %v2199
        %v2221 = vmax.f32 %v2201, 0.0
        %v2222 = vmax.f32 %v2202, 0.0
        %v2223 = vmax.f32 %v2203, 0.0
        %v2224 = vmax.f32 %v2204, 0.0
        %v2225 = vmax.f32 %v2205, 0.0
        %v2226 = vmax.f32 %v2206, 0.0
        %v2227 = vmax.f32 %v2207, 0.0
        %v2228 = vmax.f32 %v2208, 0.0
        %v2229 = vmax.f32 %v2209, 0.0
        %v2230 = vmax.f32 %v2210, 0.0
        %v2231 = vmax.f32 %v2211, 0.0
        %v2232 = vmax.f32 %v2212, 0.0
        %v2233 = vmax.f32 %v2213, 0.0
        %v2234 = vmax.f32 %v2214, 0.0
        %v2235 = vmax.f32 %v2215, 0.0
        %v2236 = vmax.f32 %v2216, 0.0
        %v2237 = vmax.f32 %v2217, 0.0
        %v2238 = vmax.f32 %v2218, 0.0
        %v2239 = vmax.f32 %v2219, 0.0
        %v2240 = vmax.f32 %v2220, 0.0
        %v2241 = vpack.c.bf16 %v2221, %v2221
        %v2242 = vpack.c.bf16 %v2222, %v2222
        %v2243 = vpack.c.bf16 %v2223, %v2223
        %v2244 = vpack.c.bf16 %v2224, %v2224
        %v2245 = vpack.c.bf16 %v2225, %v2225
        %v2246 = vpack.c.bf16 %v2226, %v2226
        %v2247 = vpack.c.bf16 %v2227, %v2227
        %v2248 = vpack.c.bf16 %v2228, %v2228
        %v2249 = vpack.c.bf16 %v2229, %v2229
        %v2250 = vpack.c.bf16 %v2230, %v2230
        %v2251 = vpack.c.bf16 %v2231, %v2231
        %v2252 = vpack.c.bf16 %v2232, %v2232
        %v2253 = vpack.c.bf16 %v2233, %v2233
        %v2254 = vpack.c.bf16 %v2234, %v2234
        %v2255 = vpack.c.bf16 %v2235, %v2235
        %v2256 = vpack.c.bf16 %v2236, %v2236
        %v2257 = vpack.c.bf16 %v2237, %v2237
        %v2258 = vpack.c.bf16 %v2238, %v2238
        %v2259 = vpack.c.bf16 %v2239, %v2239
        %v2260 = vpack.c.bf16 %v2240, %v2240
        %vm2261 = vsmask.f32 256
        %vm2262 = vsmask.f32 4368
        %vm2263 = vmor %vm2261, %vm2262
        %v2265 = vshrl.u32 %v2241, 16
        %v2267 = vrot.slane %v2265, 7
        %v2268 = vshll.u32 %v2241, 16
        %v2270 = vor.u32 %v2267, %v2268
        %v2271 = vrot.slane %v2267, 4
        %v2273 = vshrl.u32 %v2242, 16
        %v2275 = vrot.slane %v2273, 7
        %v2276 = vshll.u32 %v2242, 16
        %v2278 = vor.u32 %v2275, %v2276
        %v2279 = vsel %vm2263, %v2271, %v2278
        %v2280 = vrot.slane %v2275, 4
        %v2282 = vshrl.u32 %v2243, 16
        %v2284 = vrot.slane %v2282, 7
        %v2285 = vshll.u32 %v2243, 16
        %v2287 = vor.u32 %v2284, %v2285
        %v2288 = vrot.slane %v2284, 4
        %v2290 = vshrl.u32 %v2244, 16
        %v2292 = vrot.slane %v2290, 7
        %v2293 = vshll.u32 %v2244, 16
        %v2295 = vor.u32 %v2292, %v2293
        %v2296 = vsel %vm2263, %v2288, %v2295
        %v2297 = vrot.slane %v2292, 4
        %v2299 = vshrl.u32 %v2245, 16
        %v2301 = vrot.slane %v2299, 7
        %v2302 = vshll.u32 %v2245, 16
        %v2304 = vor.u32 %v2301, %v2302
        %v2305 = vrot.slane %v2301, 4
        %v2307 = vshrl.u32 %v2246, 16
        %v2309 = vrot.slane %v2307, 7
        %v2310 = vshll.u32 %v2246, 16
        %v2312 = vor.u32 %v2309, %v2310
        %v2313 = vsel %vm2263, %v2305, %v2312
        %v2314 = vrot.slane %v2309, 4
        %v2316 = vshrl.u32 %v2247, 16
        %v2318 = vrot.slane %v2316, 7
        %v2319 = vshll.u32 %v2247, 16
        %v2321 = vor.u32 %v2318, %v2319
        %v2322 = vrot.slane %v2318, 4
        %v2324 = vshrl.u32 %v2248, 16
        %v2326 = vrot.slane %v2324, 7
        %v2327 = vshll.u32 %v2248, 16
        %v2329 = vor.u32 %v2326, %v2327
        %v2330 = vsel %vm2263, %v2322, %v2329
        %v2331 = vrot.slane %v2326, 4
        %v2333 = vshrl.u32 %v2249, 16
        %v2335 = vrot.slane %v2333, 7
        %v2336 = vshll.u32 %v2249, 16
        %v2338 = vor.u32 %v2335, %v2336
        %v2339 = vrot.slane %v2335, 4
        %v2341 = vshrl.u32 %v2250, 16
        %v2343 = vrot.slane %v2341, 7
        %v2344 = vshll.u32 %v2250, 16
        %v2346 = vor.u32 %v2343, %v2344
        %v2347 = vsel %vm2263, %v2339, %v2346
        %v2348 = vrot.slane %v2343, 4
        %v2350 = vshrl.u32 %v2251, 16
        %v2352 = vrot.slane %v2350, 7
        %v2353 = vshll.u32 %v2251, 16
        %v2355 = vor.u32 %v2352, %v2353
        %v2356 = vrot.slane %v2352, 4
        %v2358 = vshrl.u32 %v2252, 16
        %v2360 = vrot.slane %v2358, 7
        %v2361 = vshll.u32 %v2252, 16
        %v2363 = vor.u32 %v2360, %v2361
        %v2364 = vsel %vm2263, %v2356, %v2363
        %v2365 = vrot.slane %v2360, 4
        %v2367 = vshrl.u32 %v2253, 16
        %v2369 = vrot.slane %v2367, 7
        %v2370 = vshll.u32 %v2253, 16
        %v2372 = vor.u32 %v2369, %v2370
        %v2373 = vrot.slane %v2369, 4
        %v2375 = vshrl.u32 %v2254, 16
        %v2377 = vrot.slane %v2375, 7
        %v2378 = vshll.u32 %v2254, 16
        %v2380 = vor.u32 %v2377, %v2378
        %v2381 = vsel %vm2263, %v2373, %v2380
        %v2382 = vrot.slane %v2377, 4
        %v2384 = vshrl.u32 %v2255, 16
        %v2386 = vrot.slane %v2384, 7
        %v2387 = vshll.u32 %v2255, 16
        %v2389 = vor.u32 %v2386, %v2387
        %v2390 = vrot.slane %v2386, 4
        %v2392 = vshrl.u32 %v2256, 16
        %v2394 = vrot.slane %v2392, 7
        %v2395 = vshll.u32 %v2256, 16
        %v2397 = vor.u32 %v2394, %v2395
        %v2398 = vsel %vm2263, %v2390, %v2397
        %v2399 = vrot.slane %v2394, 4
        %v2401 = vshrl.u32 %v2257, 16
        %v2403 = vrot.slane %v2401, 7
        %v2404 = vshll.u32 %v2257, 16
        %v2406 = vor.u32 %v2403, %v2404
        %v2407 = vrot.slane %v2403, 4
        %v2409 = vshrl.u32 %v2258, 16
        %v2411 = vrot.slane %v2409, 7
        %v2412 = vshll.u32 %v2258, 16
        %v2414 = vor.u32 %v2411, %v2412
        %v2415 = vsel %vm2263, %v2407, %v2414
        %v2416 = vrot.slane %v2411, 4
        %v2418 = vshrl.u32 %v2259, 16
        %v2420 = vrot.slane %v2418, 7
        %v2421 = vshll.u32 %v2259, 16
        %v2423 = vor.u32 %v2420, %v2421
        %v2424 = vrot.slane %v2420, 4
        %v2426 = vshrl.u32 %v2260, 16
        %v2428 = vrot.slane %v2426, 7
        %v2429 = vshll.u32 %v2260, 16
        %v2431 = vor.u32 %v2428, %v2429
        %v2432 = vsel %vm2263, %v2424, %v2431
        %v2433 = vrot.slane %v2428, 4
        %vm2464 = vcmask 1043456
        %vm2465 = vsmask.f32 7938
        %vm2466 = vmand %vm2464, %vm2465
        %v2467 = vld [vmem:[#allocation2] sm:$0xf]
        %v2468 = vsel %vm2466, %v2270, %v2467
        %2469 = vst [vmem:[#allocation2] sm:$0xf] %v2468
        %2470 = vst [vmem:[#allocation2 + $0x4] sm:$0xf] %v2279
        %vm2471 = vcmask 1040384
        %vm2472 = vmand %vm2471, %vm2261
        %v2473 = vld [vmem:[#allocation2 + $0x8] sm:$0x1]
        %v2474 = vsel %vm2472, %v2280, %v2473
        %2475 = vst [vmem:[#allocation2 + $0x8] sm:$0x1] %v2474
        %v2476 = vld [vmem:[#allocation2 + $0xc] sm:$0xf]
        %v2477 = vsel %vm2466, %v2287, %v2476
        %2478 = vst [vmem:[#allocation2 + $0xc] sm:$0xf] %v2477
        %2479 = vst [vmem:[#allocation2 + $0x10] sm:$0xf] %v2296
        %v2480 = vld [vmem:[#allocation2 + $0x14] sm:$0x1]
        %v2481 = vsel %vm2472, %v2297, %v2480
        %2482 = vst [vmem:[#allocation2 + $0x14] sm:$0x1] %v2481
        %v2483 = vld [vmem:[#allocation2 + $0x18] sm:$0xf]
        %v2484 = vsel %vm2466, %v2304, %v2483
        %2485 = vst [vmem:[#allocation2 + $0x18] sm:$0xf] %v2484
        %2486 = vst [vmem:[#allocation2 + $0x1c] sm:$0xf] %v2313
        %v2487 = vld [vmem:[#allocation2 + $0x20] sm:$0x1]
        %v2488 = vsel %vm2472, %v2314, %v2487
        %2489 = vst [vmem:[#allocation2 + $0x20] sm:$0x1] %v2488
        %v2490 = vld [vmem:[#allocation2 + $0x24] sm:$0xf]
        %v2491 = vsel %vm2466, %v2321, %v2490
        %2492 = vst [vmem:[#allocation2 + $0x24] sm:$0xf] %v2491
        %2493 = vst [vmem:[#allocation2 + $0x28] sm:$0xf] %v2330
        %v2494 = vld [vmem:[#allocation2 + $0x2c] sm:$0x1]
        %v2495 = vsel %vm2472, %v2331, %v2494
        %2496 = vst [vmem:[#allocation2 + $0x2c] sm:$0x1] %v2495
        %v2497 = vld [vmem:[#allocation2 + $0x30] sm:$0xf]
        %v2498 = vsel %vm2466, %v2338, %v2497
        %2499 = vst [vmem:[#allocation2 + $0x30] sm:$0xf] %v2498
        %2500 = vst [vmem:[#allocation2 + $0x34] sm:$0xf] %v2347
        %v2501 = vld [vmem:[#allocation2 + $0x38] sm:$0x1]
        %v2502 = vsel %vm2472, %v2348, %v2501
        %2503 = vst [vmem:[#allocation2 + $0x38] sm:$0x1] %v2502
        %v2504 = vld [vmem:[#allocation2 + $0x3c] sm:$0xf]
        %v2505 = vsel %vm2466, %v2355, %v2504
        %2506 = vst [vmem:[#allocation2 + $0x3c] sm:$0xf] %v2505
        %2507 = vst [vmem:[#allocation2 + $0x40] sm:$0xf] %v2364
        %v2508 = vld [vmem:[#allocation2 + $0x44] sm:$0x1]
        %v2509 = vsel %vm2472, %v2365, %v2508
        %2510 = vst [vmem:[#allocation2 + $0x44] sm:$0x1] %v2509
        %v2511 = vld [vmem:[#allocation2 + $0x48] sm:$0xf]
        %v2512 = vsel %vm2466, %v2372, %v2511
        %2513 = vst [vmem:[#allocation2 + $0x48] sm:$0xf] %v2512
        %2514 = vst [vmem:[#allocation2 + $0x4c] sm:$0xf] %v2381
        %v2515 = vld [vmem:[#allocation2 + $0x50] sm:$0x1]
        %v2516 = vsel %vm2472, %v2382, %v2515
        %2517 = vst [vmem:[#allocation2 + $0x50] sm:$0x1] %v2516
        %v2518 = vld [vmem:[#allocation2 + $0x54] sm:$0xf]
        %v2519 = vsel %vm2466, %v2389, %v2518
        %2520 = vst [vmem:[#allocation2 + $0x54] sm:$0xf] %v2519
        %2521 = vst [vmem:[#allocation2 + $0x58] sm:$0xf] %v2398
        %v2522 = vld [vmem:[#allocation2 + $0x5c] sm:$0x1]
        %v2523 = vsel %vm2472, %v2399, %v2522
        %2524 = vst [vmem:[#allocation2 + $0x5c] sm:$0x1] %v2523
        %v2525 = vld [vmem:[#allocation2 + $0x60] sm:$0xf]
        %v2526 = vsel %vm2466, %v2406, %v2525
        %2527 = vst [vmem:[#allocation2 + $0x60] sm:$0xf] %v2526
        %2528 = vst [vmem:[#allocation2 + $0x64] sm:$0xf] %v2415
        %v2529 = vld [vmem:[#allocation2 + $0x68] sm:$0x1]
        %v2530 = vsel %vm2472, %v2416, %v2529
        %2531 = vst [vmem:[#allocation2 + $0x68] sm:$0x1] %v2530
        %v2532 = vld [vmem:[#allocation2 + $0x6c] sm:$0xf]
        %v2533 = vsel %vm2466, %v2423, %v2532
        %2534 = vst [vmem:[#allocation2 + $0x6c] sm:$0xf] %v2533
        %2535 = vst [vmem:[#allocation2 + $0x70] sm:$0xf] %v2432
        %v2536 = vld [vmem:[#allocation2 + $0x74] sm:$0x1]
        %v2537 = vsel %vm2472, %v2433, %v2536
        %2538 = vst [vmem:[#allocation2 + $0x74] sm:$0x1] %v2537
        %v2539 = vld [vmem:[#allocation2] sm:$0x1]
        %v2540 = vsel %vm2472, 0, %v2539
        %2541 = vst [vmem:[#allocation2] sm:$0x1] %v2540
        %v2542 = vld [vmem:[#allocation2 + $0xc] sm:$0x1]
        %v2543 = vsel %vm2472, 0, %v2542
        %2544 = vst [vmem:[#allocation2 + $0xc] sm:$0x1] %v2543
        %v2545 = vld [vmem:[#allocation2 + $0x18] sm:$0x1]
        %v2546 = vsel %vm2472, 0, %v2545
        %2547 = vst [vmem:[#allocation2 + $0x18] sm:$0x1] %v2546
        %v2548 = vld [vmem:[#allocation2 + $0x24] sm:$0x1]
        %v2549 = vsel %vm2472, 0, %v2548
        %2550 = vst [vmem:[#allocation2 + $0x24] sm:$0x1] %v2549
        %v2551 = vld [vmem:[#allocation2 + $0x30] sm:$0x1]
        %v2552 = vsel %vm2472, 0, %v2551
        %2553 = vst [vmem:[#allocation2 + $0x30] sm:$0x1] %v2552
        %v2554 = vld [vmem:[#allocation2 + $0x3c] sm:$0x1]
        %v2555 = vsel %vm2472, 0, %v2554
        %2556 = vst [vmem:[#allocation2 + $0x3c] sm:$0x1] %v2555
        %v2557 = vld [vmem:[#allocation2 + $0x48] sm:$0x1]
        %v2558 = vsel %vm2472, 0, %v2557
        %2559 = vst [vmem:[#allocation2 + $0x48] sm:$0x1] %v2558
        %v2560 = vld [vmem:[#allocation2 + $0x54] sm:$0x1]
        %v2561 = vsel %vm2472, 0, %v2560
        %2562 = vst [vmem:[#allocation2 + $0x54] sm:$0x1] %v2561
        %v2563 = vld [vmem:[#allocation2 + $0x60] sm:$0x1]
        %v2564 = vsel %vm2472, 0, %v2563
        %2565 = vst [vmem:[#allocation2 + $0x60] sm:$0x1] %v2564
        %v2566 = vld [vmem:[#allocation2 + $0x6c] sm:$0x1]
        %v2567 = vsel %vm2472, 0, %v2566
        %2568 = vst [vmem:[#allocation2 + $0x6c] sm:$0x1] %v2567
        %vm2569 = vmand %vm2471, %vm2465
        %v2570 = vld [vmem:[#allocation2 + $0x8] sm:$0x1]
        %v2571 = vsel %vm2569, 0, %v2570
        %2572 = vst [vmem:[#allocation2 + $0x8] sm:$0x1] %v2571
        %v2573 = vld [vmem:[#allocation2 + $0x14] sm:$0x1]
        %v2574 = vsel %vm2569, 0, %v2573
        %2575 = vst [vmem:[#allocation2 + $0x14] sm:$0x1] %v2574
        %v2576 = vld [vmem:[#allocation2 + $0x20] sm:$0x1]
        %v2577 = vsel %vm2569, 0, %v2576
        %2578 = vst [vmem:[#allocation2 + $0x20] sm:$0x1] %v2577
        %v2579 = vld [vmem:[#allocation2 + $0x2c] sm:$0x1]
        %v2580 = vsel %vm2569, 0, %v2579
        %2581 = vst [vmem:[#allocation2 + $0x2c] sm:$0x1] %v2580
        %v2582 = vld [vmem:[#allocation2 + $0x38] sm:$0x1]
        %v2583 = vsel %vm2569, 0, %v2582
        %2584 = vst [vmem:[#allocation2 + $0x38] sm:$0x1] %v2583
        %v2585 = vld [vmem:[#allocation2 + $0x44] sm:$0x1]
        %v2586 = vsel %vm2569, 0, %v2585
        %2587 = vst [vmem:[#allocation2 + $0x44] sm:$0x1] %v2586
        %v2588 = vld [vmem:[#allocation2 + $0x50] sm:$0x1]
        %v2589 = vsel %vm2569, 0, %v2588
        %2590 = vst [vmem:[#allocation2 + $0x50] sm:$0x1] %v2589
        %v2591 = vld [vmem:[#allocation2 + $0x5c] sm:$0x1]
        %v2592 = vsel %vm2569, 0, %v2591
        %2593 = vst [vmem:[#allocation2 + $0x5c] sm:$0x1] %v2592
        %v2594 = vld [vmem:[#allocation2 + $0x68] sm:$0x1]
        %v2595 = vsel %vm2569, 0, %v2594
        %2596 = vst [vmem:[#allocation2 + $0x68] sm:$0x1] %v2595
        %v2597 = vld [vmem:[#allocation2 + $0x74] sm:$0x1]
        %v2598 = vsel %vm2569, 0, %v2597
        %2599 = vst [vmem:[#allocation2 + $0x74] sm:$0x1] %v2598
        %p2600 = scmp.eq.s32.totalorder %s27, 0
        // Predicated region
        $region53: #{tpu_custom_call.1} parent=47 // pred_check
          %p2601 = pneg %p2600
        $region54: #{tpu_custom_call.1} parent=47 // pred_check_branch
          %2603 = sbr.rel (%p2601) target = $region56
        $region55: #{tpu_custom_call.1} parent=47 // pred_region
          %2604 = vst [vmem:[#allocation2] sm:$0xf] 0
          %2605 = vst [vmem:[#allocation2 + $0x4] sm:$0xf] 0
          %2606 = vst [vmem:[#allocation2 + $0x8] sm:$0x1] 0
        $region56: #{tpu_custom_call.1} parent=47 // pred_fallthru
          _
        %p2607 = scmp.eq.s32.totalorder %s27, 1
        // Predicated region
        $region57: #{tpu_custom_call.1} parent=47 // pred_check
          %p2608 = pneg %p2607
        $region58: #{tpu_custom_call.1} parent=47 // pred_check_branch
          %2610 = sbr.rel (%p2608) target = $region60
        $region59: #{tpu_custom_call.1} parent=47 // pred_region
          %s2611 = scalar_lea.vmem [#allocation2], 108
          %2612 = vst [vmem:[%s2611] sm:$0xf] 0
          %2613 = vst [vmem:[%s2611 + $0x4] sm:$0xf] 0
          %2614 = vst [vmem:[%s2611 + $0x8] sm:$0x1] 0
        $region60: #{tpu_custom_call.1} parent=47 // pred_fallthru
          _
        %v2615 = vld [vmem:[#allocation2] sm:$0xf]
        %v2616 = vld [vmem:[#allocation2 + $0x4] sm:$0xf]
        %v2617 = vld [vmem:[#allocation2 + $0x8] sm:$0x1]
        %v2618 = vld [vmem:[#allocation2 + $0xc] sm:$0xf]
        %v2619 = vld [vmem:[#allocation2 + $0x10] sm:$0xf]
        %v2620 = vld [vmem:[#allocation2 + $0x14] sm:$0x1]
        %v2621 = vld [vmem:[#allocation2 + $0x18] sm:$0xf]
        %v2622 = vld [vmem:[#allocation2 + $0x1c] sm:$0xf]
        %v2623 = vld [vmem:[#allocation2 + $0x20] sm:$0x1]
        %v2624 = vld [vmem:[#allocation2 + $0x24] sm:$0xf]
        %v2625 = vld [vmem:[#allocation2 + $0x28] sm:$0xf]
        %v2626 = vld [vmem:[#allocation2 + $0x2c] sm:$0x1]
        %v2627 = vld [vmem:[#allocation2 + $0x30] sm:$0xf]
        %v2628 = vld [vmem:[#allocation2 + $0x34] sm:$0xf]
        %v2629 = vld [vmem:[#allocation2 + $0x38] sm:$0x1]
        %v2630 = vld [vmem:[#allocation2 + $0x3c] sm:$0xf]
        %v2631 = vld [vmem:[#allocation2 + $0x40] sm:$0xf]
        %v2632 = vld [vmem:[#allocation2 + $0x44] sm:$0x1]
        %v2633 = vld [vmem:[#allocation2 + $0x48] sm:$0xf]
        %v2634 = vld [vmem:[#allocation2 + $0x4c] sm:$0xf]
        %v2635 = vld [vmem:[#allocation2 + $0x50] sm:$0x1]
        %v2636 = vld [vmem:[#allocation2 + $0x54] sm:$0xf]
        %v2637 = vld [vmem:[#allocation2 + $0x58] sm:$0xf]
        %v2638 = vld [vmem:[#allocation2 + $0x5c] sm:$0x1]
        %v2639 = vld [vmem:[#allocation2 + $0x60] sm:$0xf]
        %v2640 = vld [vmem:[#allocation2 + $0x64] sm:$0xf]
        %v2641 = vld [vmem:[#allocation2 + $0x68] sm:$0x1]
        %v2642 = vld [vmem:[#allocation2 + $0x6c] sm:$0xf]
        %v2643 = vld [vmem:[#allocation2 + $0x70] sm:$0xf]
        %v2644 = vld [vmem:[#allocation2 + $0x74] sm:$0x1]
        %v2645 = vld [vmem:[#allocation3] sm:$0xf]
        %v2646 = vld [vmem:[#allocation3 + $0x4] sm:$0xf]
        %v2647 = vld [vmem:[#allocation3 + $0x8] sm:$0xf]
        %v2648 = vld [vmem:[#allocation3 + $0xc] sm:$0xf]
        %v2649 = vld [vmem:[#allocation3 + $0x10] sm:$0xf]
        %v2650 = vld [vmem:[#allocation3 + $0x14] sm:$0xf]
        %v2651 = vld [vmem:[#allocation3 + $0x18] sm:$0xf]
        %v2652 = vld [vmem:[#allocation3 + $0x1c] sm:$0xf]
        %v2653 = vld [vmem:[#allocation3 + $0x20] sm:$0xf]
        %v2654 = vld [vmem:[#allocation3 + $0x24] sm:$0xf]
        %v2655 = vld [vmem:[#allocation3 + $0x28] sm:$0xf]
        %v2656 = vld [vmem:[#allocation3 + $0x2c] sm:$0xf]
        %v2657 = vld [vmem:[#allocation3 + $0x30] sm:$0xf]
        %v2658 = vld [vmem:[#allocation3 + $0x34] sm:$0xf]
        %v2659 = vld [vmem:[#allocation3 + $0x38] sm:$0xf]
        %v2660 = vld [vmem:[#allocation3 + $0x3c] sm:$0xf]
        %v2662 = vshrl.u32 %v2615, 16
        %v2664 = vrot.slane %v2662, 4
        %v2665 = vshll.u32 %v2615, 16
        %v2667 = vrot.slane %v2665, 5
        %v2668 = vor.u32 %v2664, %v2667
        %v2669 = vrot.slane %v2668, 4
        %v2671 = vshll.u32 %v2616, 16
        %v2673 = vrot.slane %v2671, 5
        %v2674 = vsel %vm378, %v2669, %v2673
        %v2675 = vshrl.u32 %v2616, 16
        %v2677 = vrot.slane %v2675, 4
        %v2678 = vor.u32 %v2677, %v2673
        %v2679 = vrot.slane %v2678, 4
        %v2681 = vshll.u32 %v2617, 16
        %v2683 = vrot.slane %v2681, 5
        %v2684 = vsel %vm378, %v2679, %v2683
        %v2686 = vshrl.u32 %v2618, 16
        %v2688 = vrot.slane %v2686, 4
        %v2689 = vshll.u32 %v2618, 16
        %v2691 = vrot.slane %v2689, 5
        %v2692 = vor.u32 %v2688, %v2691
        %v2693 = vrot.slane %v2692, 4
        %v2695 = vshll.u32 %v2619, 16
        %v2697 = vrot.slane %v2695, 5
        %v2698 = vsel %vm378, %v2693, %v2697
        %v2699 = vshrl.u32 %v2619, 16
        %v2701 = vrot.slane %v2699, 4
        %v2702 = vor.u32 %v2701, %v2697
        %v2703 = vrot.slane %v2702, 4
        %v2705 = vshll.u32 %v2620, 16
        %v2707 = vrot.slane %v2705, 5
        %v2708 = vsel %vm378, %v2703, %v2707
        %v2710 = vshrl.u32 %v2621, 16
        %v2712 = vrot.slane %v2710, 4
        %v2713 = vshll.u32 %v2621, 16
        %v2715 = vrot.slane %v2713, 5
        %v2716 = vor.u32 %v2712, %v2715
        %v2717 = vrot.slane %v2716, 4
        %v2719 = vshll.u32 %v2622, 16
        %v2721 = vrot.slane %v2719, 5
        %v2722 = vsel %vm378, %v2717, %v2721
        %v2723 = vshrl.u32 %v2622, 16
        %v2725 = vrot.slane %v2723, 4
        %v2726 = vor.u32 %v2725, %v2721
        %v2727 = vrot.slane %v2726, 4
        %v2729 = vshll.u32 %v2623, 16
        %v2731 = vrot.slane %v2729, 5
        %v2732 = vsel %vm378, %v2727, %v2731
        %v2734 = vshrl.u32 %v2624, 16
        %v2736 = vrot.slane %v2734, 4
        %v2737 = vshll.u32 %v2624, 16
        %v2739 = vrot.slane %v2737, 5
        %v2740 = vor.u32 %v2736, %v2739
        %v2741 = vrot.slane %v2740, 4
        %v2743 = vshll.u32 %v2625, 16
        %v2745 = vrot.slane %v2743, 5
        %v2746 = vsel %vm378, %v2741, %v2745
        %v2747 = vshrl.u32 %v2625, 16
        %v2749 = vrot.slane %v2747, 4
        %v2750 = vor.u32 %v2749, %v2745
        %v2751 = vrot.slane %v2750, 4
        %v2753 = vshll.u32 %v2626, 16
        %v2755 = vrot.slane %v2753, 5
        %v2756 = vsel %vm378, %v2751, %v2755
        %v2758 = vshrl.u32 %v2627, 16
        %v2760 = vrot.slane %v2758, 4
        %v2761 = vshll.u32 %v2627, 16
        %v2763 = vrot.slane %v2761, 5
        %v2764 = vor.u32 %v2760, %v2763
        %v2765 = vrot.slane %v2764, 4
        %v2767 = vshll.u32 %v2628, 16
        %v2769 = vrot.slane %v2767, 5
        %v2770 = vsel %vm378, %v2765, %v2769
        %v2771 = vshrl.u32 %v2628, 16
        %v2773 = vrot.slane %v2771, 4
        %v2774 = vor.u32 %v2773, %v2769
        %v2775 = vrot.slane %v2774, 4
        %v2777 = vshll.u32 %v2629, 16
        %v2779 = vrot.slane %v2777, 5
        %v2780 = vsel %vm378, %v2775, %v2779
        %v2782 = vshrl.u32 %v2630, 16
        %v2784 = vrot.slane %v2782, 4
        %v2785 = vshll.u32 %v2630, 16
        %v2787 = vrot.slane %v2785, 5
        %v2788 = vor.u32 %v2784, %v2787
        %v2789 = vrot.slane %v2788, 4
        %v2791 = vshll.u32 %v2631, 16
        %v2793 = vrot.slane %v2791, 5
        %v2794 = vsel %vm378, %v2789, %v2793
        %v2795 = vshrl.u32 %v2631, 16
        %v2797 = vrot.slane %v2795, 4
        %v2798 = vor.u32 %v2797, %v2793
        %v2799 = vrot.slane %v2798, 4
        %v2801 = vshll.u32 %v2632, 16
        %v2803 = vrot.slane %v2801, 5
        %v2804 = vsel %vm378, %v2799, %v2803
        %v2806 = vshrl.u32 %v2633, 16
        %v2808 = vrot.slane %v2806, 4
        %v2809 = vshll.u32 %v2633, 16
        %v2811 = vrot.slane %v2809, 5
        %v2812 = vor.u32 %v2808, %v2811
        %v2813 = vrot.slane %v2812, 4
        %v2815 = vshll.u32 %v2634, 16
        %v2817 = vrot.slane %v2815, 5
        %v2818 = vsel %vm378, %v2813, %v2817
        %v2819 = vshrl.u32 %v2634, 16
        %v2821 = vrot.slane %v2819, 4
        %v2822 = vor.u32 %v2821, %v2817
        %v2823 = vrot.slane %v2822, 4
        %v2825 = vshll.u32 %v2635, 16
        %v2827 = vrot.slane %v2825, 5
        %v2828 = vsel %vm378, %v2823, %v2827
        %v2830 = vshrl.u32 %v2636, 16
        %v2832 = vrot.slane %v2830, 4
        %v2833 = vshll.u32 %v2636, 16
        %v2835 = vrot.slane %v2833, 5
        %v2836 = vor.u32 %v2832, %v2835
        %v2837 = vrot.slane %v2836, 4
        %v2839 = vshll.u32 %v2637, 16
        %v2841 = vrot.slane %v2839, 5
        %v2842 = vsel %vm378, %v2837, %v2841
        %v2843 = vshrl.u32 %v2637, 16
        %v2845 = vrot.slane %v2843, 4
        %v2846 = vor.u32 %v2845, %v2841
        %v2847 = vrot.slane %v2846, 4
        %v2849 = vshll.u32 %v2638, 16
        %v2851 = vrot.slane %v2849, 5
        %v2852 = vsel %vm378, %v2847, %v2851
        %s2853 = scalar_lea.vmem [#allocation3], 64
        %v2854 = vld [vmem:[%s2853] sm:$0xf]
        %v2855 = vld [vmem:[%s2853 + $0x4] sm:$0xf]
        %v2856 = vld [vmem:[%s2853 + $0x8] sm:$0xf]
        %v2857 = vld [vmem:[%s2853 + $0xc] sm:$0xf]
        %v2858 = vld [vmem:[%s2853 + $0x10] sm:$0xf]
        %v2859 = vld [vmem:[%s2853 + $0x14] sm:$0xf]
        %v2860 = vld [vmem:[%s2853 + $0x18] sm:$0xf]
        %v2861 = vld [vmem:[%s2853 + $0x1c] sm:$0xf]
        %v2862 = vld [vmem:[%s2853 + $0x20] sm:$0xf]
        %v2863 = vld [vmem:[%s2853 + $0x24] sm:$0xf]
        %v2864 = vld [vmem:[%s2853 + $0x28] sm:$0xf]
        %v2865 = vld [vmem:[%s2853 + $0x2c] sm:$0xf]
        %v2866 = vld [vmem:[%s2853 + $0x30] sm:$0xf]
        %v2867 = vld [vmem:[%s2853 + $0x34] sm:$0xf]
        %v2868 = vld [vmem:[%s2853 + $0x38] sm:$0xf]
        %v2869 = vld [vmem:[%s2853 + $0x3c] sm:$0xf]
        %v2870 = vunpack.c.l.b16 %v2674
        %v2871 = vunpack.c.l.b16 %v2684
        %v2872 = vunpack.c.l.b16 %v2698
        %v2873 = vunpack.c.l.b16 %v2708
        %v2874 = vunpack.c.l.b16 %v2722
        %v2875 = vunpack.c.l.b16 %v2732
        %v2876 = vunpack.c.l.b16 %v2746
        %v2877 = vunpack.c.l.b16 %v2756
        %v2878 = vunpack.c.l.b16 %v2770
        %v2879 = vunpack.c.l.b16 %v2780
        %v2880 = vunpack.c.l.b16 %v2794
        %v2881 = vunpack.c.l.b16 %v2804
        %v2882 = vunpack.c.l.b16 %v2818
        %v2883 = vunpack.c.l.b16 %v2828
        %v2884 = vunpack.c.l.b16 %v2842
        %v2885 = vunpack.c.l.b16 %v2852
        %v2886 = vpack.c.b16 %v2871, %v2870
        %v2887 = vpack.c.b16 %v2873, %v2872
        %v2888 = vpack.c.b16 %v2875, %v2874
        %v2889 = vpack.c.b16 %v2877, %v2876
        %v2890 = vpack.c.b16 %v2879, %v2878
        %v2891 = vpack.c.b16 %v2881, %v2880
        %v2892 = vpack.c.b16 %v2883, %v2882
        %v2893 = vpack.c.b16 %v2885, %v2884
        %v2918 = vunpack.c.l.b16 %v2854
        %v2919 = vunpack.c.l.b16 %v2855
        %v2920 = vunpack.c.l.b16 %v2856
        %v2921 = vunpack.c.l.b16 %v2857
        %v2922 = vunpack.c.l.b16 %v2858
        %v2923 = vunpack.c.l.b16 %v2859
        %v2924 = vunpack.c.l.b16 %v2860
        %v2925 = vunpack.c.l.b16 %v2861
        %v2926 = vunpack.c.l.b16 %v2862
        %v2927 = vunpack.c.l.b16 %v2863
        %v2928 = vunpack.c.l.b16 %v2864
        %v2929 = vunpack.c.l.b16 %v2865
        %v2930 = vunpack.c.l.b16 %v2866
        %v2931 = vunpack.c.l.b16 %v2867
        %v2932 = vunpack.c.l.b16 %v2868
        %v2933 = vunpack.c.l.b16 %v2869
        %v2934 = vpack.c.b16 %v2919, %v2918
        %v2935 = vpack.c.b16 %v2921, %v2920
        %v2936 = vpack.c.b16 %v2923, %v2922
        %v2937 = vpack.c.b16 %v2925, %v2924
        %v2938 = vpack.c.b16 %v2927, %v2926
        %v2939 = vpack.c.b16 %v2929, %v2928
        %v2940 = vpack.c.b16 %v2931, %v2930
        %v2941 = vpack.c.b16 %v2933, %v2932
        %2950 = vmatpush.bf16.msra.mxu0 %v2941
        %2951 = vmatpush.bf16.msra.mxu0 %v2940
        %2952 = vmatpush.bf16.msra.mxu0 %v2939
        %2953 = vmatpush.bf16.msra.mxu0 %v2938
        %2954 = vmatpush.bf16.msra.mxu0 %v2937
        %2955 = vmatpush.bf16.msra.mxu0 %v2936
        %2956 = vmatpush.bf16.msra.mxu0 %v2935
        %2957 = vmatpush.bf16.msra.mxu0 %v2934
        %2958 = vmatmul.bf16.gmra.mxu0 %v2886
        %v2959 = vpop.f32.mrf.mxu0
        %v2960 = vadd.f32 0.0, %v2959
        %v2961 = vpop.f32.mrf.mxu0
        %v2962 = vadd.f32 0.0, %v2961
        %2963 = vmatmul.bf16.gmra.mxu0 %v2887
        %v2964 = vpop.f32.mrf.mxu0
        %v2965 = vadd.f32 0.0, %v2964
        %v2966 = vpop.f32.mrf.mxu0
        %v2967 = vadd.f32 0.0, %v2966
        %2968 = vmatmul.bf16.gmra.mxu0 %v2888
        %v2969 = vpop.f32.mrf.mxu0
        %v2970 = vadd.f32 0.0, %v2969
        %v2971 = vpop.f32.mrf.mxu0
        %v2972 = vadd.f32 0.0, %v2971
        %2973 = vmatmul.bf16.gmra.mxu0 %v2889
        %v2974 = vpop.f32.mrf.mxu0
        %v2975 = vadd.f32 0.0, %v2974
        %v2976 = vpop.f32.mrf.mxu0
        %v2977 = vadd.f32 0.0, %v2976
        %2978 = vmatmul.bf16.gmra.mxu0 %v2890
        %v2979 = vpop.f32.mrf.mxu0
        %v2980 = vadd.f32 0.0, %v2979
        %v2981 = vpop.f32.mrf.mxu0
        %v2982 = vadd.f32 0.0, %v2981
        %2983 = vmatmul.bf16.gmra.mxu0 %v2891
        %v2984 = vpop.f32.mrf.mxu0
        %v2985 = vadd.f32 0.0, %v2984
        %v2986 = vpop.f32.mrf.mxu0
        %v2987 = vadd.f32 0.0, %v2986
        %2988 = vmatmul.bf16.gmra.mxu0 %v2892
        %v2989 = vpop.f32.mrf.mxu0
        %v2990 = vadd.f32 0.0, %v2989
        %v2991 = vpop.f32.mrf.mxu0
        %v2992 = vadd.f32 0.0, %v2991
        %2993 = vmatmul.bf16.gmra.mxu0 %v2893
        %v2994 = vpop.f32.mrf.mxu0
        %v2995 = vadd.f32 0.0, %v2994
        %v2996 = vpop.f32.mrf.mxu0
        %v2997 = vadd.f32 0.0, %v2996
        %2998 = vdwg.mxu0
        %v3015 = vunpack.c.l.b16 %v2615
        %v3016 = vunpack.c.l.b16 %v2616
        %v3017 = vunpack.c.l.b16 %v2618
        %v3018 = vunpack.c.l.b16 %v2619
        %v3019 = vunpack.c.l.b16 %v2621
        %v3020 = vunpack.c.l.b16 %v2622
        %v3021 = vunpack.c.l.b16 %v2624
        %v3022 = vunpack.c.l.b16 %v2625
        %v3023 = vunpack.c.l.b16 %v2627
        %v3024 = vunpack.c.l.b16 %v2628
        %v3025 = vunpack.c.l.b16 %v2630
        %v3026 = vunpack.c.l.b16 %v2631
        %v3027 = vunpack.c.l.b16 %v2633
        %v3028 = vunpack.c.l.b16 %v2634
        %v3029 = vunpack.c.l.b16 %v2636
        %v3030 = vunpack.c.l.b16 %v2637
        %v3031 = vpack.c.b16 %v3016, %v3015
        %v3032 = vpack.c.b16 %v3018, %v3017
        %v3033 = vpack.c.b16 %v3020, %v3019
        %v3034 = vpack.c.b16 %v3022, %v3021
        %v3035 = vpack.c.b16 %v3024, %v3023
        %v3036 = vpack.c.b16 %v3026, %v3025
        %v3037 = vpack.c.b16 %v3028, %v3027
        %v3038 = vpack.c.b16 %v3030, %v3029
        %v3063 = vunpack.c.l.b16 %v2645
        %v3064 = vunpack.c.l.b16 %v2646
        %v3065 = vunpack.c.l.b16 %v2647
        %v3066 = vunpack.c.l.b16 %v2648
        %v3067 = vunpack.c.l.b16 %v2649
        %v3068 = vunpack.c.l.b16 %v2650
        %v3069 = vunpack.c.l.b16 %v2651
        %v3070 = vunpack.c.l.b16 %v2652
        %v3071 = vunpack.c.l.b16 %v2653
        %v3072 = vunpack.c.l.b16 %v2654
        %v3073 = vunpack.c.l.b16 %v2655
        %v3074 = vunpack.c.l.b16 %v2656
        %v3075 = vunpack.c.l.b16 %v2657
        %v3076 = vunpack.c.l.b16 %v2658
        %v3077 = vunpack.c.l.b16 %v2659
        %v3078 = vunpack.c.l.b16 %v2660
        %v3079 = vpack.c.b16 %v3064, %v3063
        %v3080 = vpack.c.b16 %v3066, %v3065
        %v3081 = vpack.c.b16 %v3068, %v3067
        %v3082 = vpack.c.b16 %v3070, %v3069
        %v3083 = vpack.c.b16 %v3072, %v3071
        %v3084 = vpack.c.b16 %v3074, %v3073
        %v3085 = vpack.c.b16 %v3076, %v3075
        %v3086 = vpack.c.b16 %v3078, %v3077
        %3095 = vmatpush.bf16.msra.mxu0 %v3086
        %3096 = vmatpush.bf16.msra.mxu0 %v3085
        %3097 = vmatpush.bf16.msra.mxu0 %v3084
        %3098 = vmatpush.bf16.msra.mxu0 %v3083
        %3099 = vmatpush.bf16.msra.mxu0 %v3082
        %3100 = vmatpush.bf16.msra.mxu0 %v3081
        %3101 = vmatpush.bf16.msra.mxu0 %v3080
        %3102 = vmatpush.bf16.msra.mxu0 %v3079
        %3103 = vmatmul.bf16.gmra.mxu0 %v3031
        %v3104 = vpop.f32.mrf.mxu0
        %v3105 = vadd.f32 %v2960, %v3104
        %v3106 = vpop.f32.mrf.mxu0
        %v3107 = vadd.f32 %v2962, %v3106
        %3108 = vmatmul.bf16.gmra.mxu0 %v3032
        %v3109 = vpop.f32.mrf.mxu0
        %v3110 = vadd.f32 %v2965, %v3109
        %v3111 = vpop.f32.mrf.mxu0
        %v3112 = vadd.f32 %v2967, %v3111
        %3113 = vmatmul.bf16.gmra.mxu0 %v3033
        %v3114 = vpop.f32.mrf.mxu0
        %v3115 = vadd.f32 %v2970, %v3114
        %v3116 = vpop.f32.mrf.mxu0
        %v3117 = vadd.f32 %v2972, %v3116
        %3118 = vmatmul.bf16.gmra.mxu0 %v3034
        %v3119 = vpop.f32.mrf.mxu0
        %v3120 = vadd.f32 %v2975, %v3119
        %v3121 = vpop.f32.mrf.mxu0
        %v3122 = vadd.f32 %v2977, %v3121
        %3123 = vmatmul.bf16.gmra.mxu0 %v3035
        %v3124 = vpop.f32.mrf.mxu0
        %v3125 = vadd.f32 %v2980, %v3124
        %v3126 = vpop.f32.mrf.mxu0
        %v3127 = vadd.f32 %v2982, %v3126
        %3128 = vmatmul.bf16.gmra.mxu0 %v3036
        %v3129 = vpop.f32.mrf.mxu0
        %v3130 = vadd.f32 %v2985, %v3129
        %v3131 = vpop.f32.mrf.mxu0
        %v3132 = vadd.f32 %v2987, %v3131
        %3133 = vmatmul.bf16.gmra.mxu0 %v3037
        %v3134 = vpop.f32.mrf.mxu0
        %v3135 = vadd.f32 %v2990, %v3134
        %v3136 = vpop.f32.mrf.mxu0
        %v3137 = vadd.f32 %v2992, %v3136
        %3138 = vmatmul.bf16.gmra.mxu0 %v3038
        %v3139 = vpop.f32.mrf.mxu0
        %v3140 = vadd.f32 %v2995, %v3139
        %v3141 = vpop.f32.mrf.mxu0
        %v3142 = vadd.f32 %v2997, %v3141
        %3143 = vdwg.mxu0
        %v3152 = vrot.slane %v2615, 5
        %v3153 = vrot.slane %v3152, 4
        %v3154 = vrot.slane %v2616, 5
        %v3155 = vsel %vm962, %v3153, %v3154
        %v3156 = vrot.slane %v3154, 4
        %v3157 = vrot.slane %v2617, 5
        %v3158 = vsel %vm962, %v3156, %v3157
        %v3159 = vrot.slane %v2618, 5
        %v3160 = vrot.slane %v3159, 4
        %v3161 = vrot.slane %v2619, 5
        %v3162 = vsel %vm962, %v3160, %v3161
        %v3163 = vrot.slane %v3161, 4
        %v3164 = vrot.slane %v2620, 5
        %v3165 = vsel %vm962, %v3163, %v3164
        %v3166 = vrot.slane %v2621, 5
        %v3167 = vrot.slane %v3166, 4
        %v3168 = vrot.slane %v2622, 5
        %v3169 = vsel %vm962, %v3167, %v3168
        %v3170 = vrot.slane %v3168, 4
        %v3171 = vrot.slane %v2623, 5
        %v3172 = vsel %vm962, %v3170, %v3171
        %v3173 = vrot.slane %v2624, 5
        %v3174 = vrot.slane %v3173, 4
        %v3175 = vrot.slane %v2625, 5
        %v3176 = vsel %vm962, %v3174, %v3175
        %v3177 = vrot.slane %v3175, 4
        %v3178 = vrot.slane %v2626, 5
        %v3179 = vsel %vm962, %v3177, %v3178
        %v3180 = vrot.slane %v2627, 5
        %v3181 = vrot.slane %v3180, 4
        %v3182 = vrot.slane %v2628, 5
        %v3183 = vsel %vm962, %v3181, %v3182
        %v3184 = vrot.slane %v3182, 4
        %v3185 = vrot.slane %v2629, 5
        %v3186 = vsel %vm962, %v3184, %v3185
        %v3187 = vrot.slane %v2630, 5
        %v3188 = vrot.slane %v3187, 4
        %v3189 = vrot.slane %v2631, 5
        %v3190 = vsel %vm962, %v3188, %v3189
        %v3191 = vrot.slane %v3189, 4
        %v3192 = vrot.slane %v2632, 5
        %v3193 = vsel %vm962, %v3191, %v3192
        %v3194 = vrot.slane %v2633, 5
        %v3195 = vrot.slane %v3194, 4
        %v3196 = vrot.slane %v2634, 5
        %v3197 = vsel %vm962, %v3195, %v3196
        %v3198 = vrot.slane %v3196, 4
        %v3199 = vrot.slane %v2635, 5
        %v3200 = vsel %vm962, %v3198, %v3199
        %v3201 = vrot.slane %v2636, 5
        %v3202 = vrot.slane %v3201, 4
        %v3203 = vrot.slane %v2637, 5
        %v3204 = vsel %vm962, %v3202, %v3203
        %v3205 = vrot.slane %v3203, 4
        %v3206 = vrot.slane %v2638, 5
        %v3207 = vsel %vm962, %v3205, %v3206
        %s3208 = scalar_lea.vmem [#allocation3], 128
        %v3209 = vld [vmem:[%s3208] sm:$0xf]
        %v3210 = vld [vmem:[%s3208 + $0x4] sm:$0xf]
        %v3211 = vld [vmem:[%s3208 + $0x8] sm:$0xf]
        %v3212 = vld [vmem:[%s3208 + $0xc] sm:$0xf]
        %v3213 = vld [vmem:[%s3208 + $0x10] sm:$0xf]
        %v3214 = vld [vmem:[%s3208 + $0x14] sm:$0xf]
        %v3215 = vld [vmem:[%s3208 + $0x18] sm:$0xf]
        %v3216 = vld [vmem:[%s3208 + $0x1c] sm:$0xf]
        %v3217 = vld [vmem:[%s3208 + $0x20] sm:$0xf]
        %v3218 = vld [vmem:[%s3208 + $0x24] sm:$0xf]
        %v3219 = vld [vmem:[%s3208 + $0x28] sm:$0xf]
        %v3220 = vld [vmem:[%s3208 + $0x2c] sm:$0xf]
        %v3221 = vld [vmem:[%s3208 + $0x30] sm:$0xf]
        %v3222 = vld [vmem:[%s3208 + $0x34] sm:$0xf]
        %v3223 = vld [vmem:[%s3208 + $0x38] sm:$0xf]
        %v3224 = vld [vmem:[%s3208 + $0x3c] sm:$0xf]
        %v3225 = vunpack.c.l.b16 %v3155
        %v3226 = vunpack.c.l.b16 %v3158
        %v3227 = vunpack.c.l.b16 %v3162
        %v3228 = vunpack.c.l.b16 %v3165
        %v3229 = vunpack.c.l.b16 %v3169
        %v3230 = vunpack.c.l.b16 %v3172
        %v3231 = vunpack.c.l.b16 %v3176
        %v3232 = vunpack.c.l.b16 %v3179
        %v3233 = vunpack.c.l.b16 %v3183
        %v3234 = vunpack.c.l.b16 %v3186
        %v3235 = vunpack.c.l.b16 %v3190
        %v3236 = vunpack.c.l.b16 %v3193
        %v3237 = vunpack.c.l.b16 %v3197
        %v3238 = vunpack.c.l.b16 %v3200
        %v3239 = vunpack.c.l.b16 %v3204
        %v3240 = vunpack.c.l.b16 %v3207
        %v3241 = vpack.c.b16 %v3226, %v3225
        %v3242 = vpack.c.b16 %v3228, %v3227
        %v3243 = vpack.c.b16 %v3230, %v3229
        %v3244 = vpack.c.b16 %v3232, %v3231
        %v3245 = vpack.c.b16 %v3234, %v3233
        %v3246 = vpack.c.b16 %v3236, %v3235
        %v3247 = vpack.c.b16 %v3238, %v3237
        %v3248 = vpack.c.b16 %v3240, %v3239
        %v3273 = vunpack.c.l.b16 %v3209
        %v3274 = vunpack.c.l.b16 %v3210
        %v3275 = vunpack.c.l.b16 %v3211
        %v3276 = vunpack.c.l.b16 %v3212
        %v3277 = vunpack.c.l.b16 %v3213
        %v3278 = vunpack.c.l.b16 %v3214
        %v3279 = vunpack.c.l.b16 %v3215
        %v3280 = vunpack.c.l.b16 %v3216
        %v3281 = vunpack.c.l.b16 %v3217
        %v3282 = vunpack.c.l.b16 %v3218
        %v3283 = vunpack.c.l.b16 %v3219
        %v3284 = vunpack.c.l.b16 %v3220
        %v3285 = vunpack.c.l.b16 %v3221
        %v3286 = vunpack.c.l.b16 %v3222
        %v3287 = vunpack.c.l.b16 %v3223
        %v3288 = vunpack.c.l.b16 %v3224
        %v3289 = vpack.c.b16 %v3274, %v3273
        %v3290 = vpack.c.b16 %v3276, %v3275
        %v3291 = vpack.c.b16 %v3278, %v3277
        %v3292 = vpack.c.b16 %v3280, %v3279
        %v3293 = vpack.c.b16 %v3282, %v3281
        %v3294 = vpack.c.b16 %v3284, %v3283
        %v3295 = vpack.c.b16 %v3286, %v3285
        %v3296 = vpack.c.b16 %v3288, %v3287
        %3305 = vmatpush.bf16.msra.mxu0 %v3296
        %3306 = vmatpush.bf16.msra.mxu0 %v3295
        %3307 = vmatpush.bf16.msra.mxu0 %v3294
        %3308 = vmatpush.bf16.msra.mxu0 %v3293
        %3309 = vmatpush.bf16.msra.mxu0 %v3292
        %3310 = vmatpush.bf16.msra.mxu0 %v3291
        %3311 = vmatpush.bf16.msra.mxu0 %v3290
        %3312 = vmatpush.bf16.msra.mxu0 %v3289
        %3313 = vmatmul.bf16.gmra.mxu0 %v3241
        %v3314 = vpop.f32.mrf.mxu0
        %v3315 = vadd.f32 0.0, %v3314
        %v3316 = vpop.f32.mrf.mxu0
        %v3317 = vadd.f32 0.0, %v3316
        %3318 = vmatmul.bf16.gmra.mxu0 %v3242
        %v3319 = vpop.f32.mrf.mxu0
        %v3320 = vadd.f32 0.0, %v3319
        %v3321 = vpop.f32.mrf.mxu0
        %v3322 = vadd.f32 0.0, %v3321
        %3323 = vmatmul.bf16.gmra.mxu0 %v3243
        %v3324 = vpop.f32.mrf.mxu0
        %v3325 = vadd.f32 0.0, %v3324
        %v3326 = vpop.f32.mrf.mxu0
        %v3327 = vadd.f32 0.0, %v3326
        %3328 = vmatmul.bf16.gmra.mxu0 %v3244
        %v3329 = vpop.f32.mrf.mxu0
        %v3330 = vadd.f32 0.0, %v3329
        %v3331 = vpop.f32.mrf.mxu0
        %v3332 = vadd.f32 0.0, %v3331
        %3333 = vmatmul.bf16.gmra.mxu0 %v3245
        %v3334 = vpop.f32.mrf.mxu0
        %v3335 = vadd.f32 0.0, %v3334
        %v3336 = vpop.f32.mrf.mxu0
        %v3337 = vadd.f32 0.0, %v3336
        %3338 = vmatmul.bf16.gmra.mxu0 %v3246
        %v3339 = vpop.f32.mrf.mxu0
        %v3340 = vadd.f32 0.0, %v3339
        %v3341 = vpop.f32.mrf.mxu0
        %v3342 = vadd.f32 0.0, %v3341
        %3343 = vmatmul.bf16.gmra.mxu0 %v3247
        %v3344 = vpop.f32.mrf.mxu0
        %v3345 = vadd.f32 0.0, %v3344
        %v3346 = vpop.f32.mrf.mxu0
        %v3347 = vadd.f32 0.0, %v3346
        %3348 = vmatmul.bf16.gmra.mxu0 %v3248
        %v3349 = vpop.f32.mrf.mxu0
        %v3350 = vadd.f32 0.0, %v3349
        %v3351 = vpop.f32.mrf.mxu0
        %v3352 = vadd.f32 0.0, %v3351
        %3353 = vdwg.mxu0
        %v3354 = vadd.f32 %v3105, %v3315
        %v3355 = vadd.f32 %v3107, %v3317
        %v3356 = vadd.f32 %v3110, %v3320
        %v3357 = vadd.f32 %v3112, %v3322
        %v3358 = vadd.f32 %v3115, %v3325
        %v3359 = vadd.f32 %v3117, %v3327
        %v3360 = vadd.f32 %v3120, %v3330
        %v3361 = vadd.f32 %v3122, %v3332
        %v3362 = vadd.f32 %v3125, %v3335
        %v3363 = vadd.f32 %v3127, %v3337
        %v3364 = vadd.f32 %v3130, %v3340
        %v3365 = vadd.f32 %v3132, %v3342
        %v3366 = vadd.f32 %v3135, %v3345
        %v3367 = vadd.f32 %v3137, %v3347
        %v3368 = vadd.f32 %v3140, %v3350
        %v3369 = vadd.f32 %v3142, %v3352
        %s3370 = scalar_lea.vmem [#allocation3], 192
        %v3371 = vld [vmem:[%s3370] sm:$0xf]
        %v3372 = vld [vmem:[%s3370 + $0x4] sm:$0xf]
        %v3373 = vld [vmem:[%s3370 + $0x8] sm:$0xf]
        %v3374 = vld [vmem:[%s3370 + $0xc] sm:$0xf]
        %v3375 = vld [vmem:[%s3370 + $0x10] sm:$0xf]
        %v3376 = vld [vmem:[%s3370 + $0x14] sm:$0xf]
        %v3377 = vld [vmem:[%s3370 + $0x18] sm:$0xf]
        %v3378 = vld [vmem:[%s3370 + $0x1c] sm:$0xf]
        %v3379 = vld [vmem:[%s3370 + $0x20] sm:$0xf]
        %v3380 = vld [vmem:[%s3370 + $0x24] sm:$0xf]
        %v3381 = vld [vmem:[%s3370 + $0x28] sm:$0xf]
        %v3382 = vld [vmem:[%s3370 + $0x2c] sm:$0xf]
        %v3383 = vld [vmem:[%s3370 + $0x30] sm:$0xf]
        %v3384 = vld [vmem:[%s3370 + $0x34] sm:$0xf]
        %v3385 = vld [vmem:[%s3370 + $0x38] sm:$0xf]
        %v3386 = vld [vmem:[%s3370 + $0x3c] sm:$0xf]
        %v3389 = vunpack.c.l.b16 %v2639
        %v3390 = vunpack.c.l.b16 %v2640
        %v3391 = vpack.c.b16 %v3390, %v3389
        %v3409 = vunpack.c.l.b16 %v3371
        %v3410 = vunpack.c.l.b16 %v3372
        %v3411 = vunpack.c.l.b16 %v3373
        %v3412 = vunpack.c.l.b16 %v3374
        %v3413 = vunpack.c.l.b16 %v3375
        %v3414 = vunpack.c.l.b16 %v3376
        %v3415 = vunpack.c.l.b16 %v3377
        %v3416 = vunpack.c.l.b16 %v3378
        %v3417 = vunpack.c.l.b16 %v3379
        %v3418 = vunpack.c.l.b16 %v3380
        %v3419 = vunpack.c.l.b16 %v3381
        %v3420 = vunpack.c.l.b16 %v3382
        %v3421 = vunpack.c.l.b16 %v3383
        %v3422 = vunpack.c.l.b16 %v3384
        %v3423 = vunpack.c.l.b16 %v3385
        %v3424 = vunpack.c.l.b16 %v3386
        %v3425 = vpack.c.b16 %v3410, %v3409
        %v3426 = vpack.c.b16 %v3412, %v3411
        %v3427 = vpack.c.b16 %v3414, %v3413
        %v3428 = vpack.c.b16 %v3416, %v3415
        %v3429 = vpack.c.b16 %v3418, %v3417
        %v3430 = vpack.c.b16 %v3420, %v3419
        %v3431 = vpack.c.b16 %v3422, %v3421
        %v3432 = vpack.c.b16 %v3424, %v3423
        %3441 = vmatpush.bf16.msra.mxu0 %v3432
        %3442 = vmatpush.bf16.msra.mxu0 %v3431
        %3443 = vmatpush.bf16.msra.mxu0 %v3430
        %3444 = vmatpush.bf16.msra.mxu0 %v3429
        %3445 = vmatpush.bf16.msra.mxu0 %v3428
        %3446 = vmatpush.bf16.msra.mxu0 %v3427
        %3447 = vmatpush.bf16.msra.mxu0 %v3426
        %3448 = vmatpush.bf16.msra.mxu0 %v3425
        %3449 = vmatmul.bf16.gmra.mxu0 %v3032
        %v3450 = vpop.f32.mrf.mxu0
        %v3451 = vadd.f32 0.0, %v3450
        %v3452 = vpop.f32.mrf.mxu0
        %v3453 = vadd.f32 0.0, %v3452
        %3454 = vmatmul.bf16.gmra.mxu0 %v3033
        %v3455 = vpop.f32.mrf.mxu0
        %v3456 = vadd.f32 0.0, %v3455
        %v3457 = vpop.f32.mrf.mxu0
        %v3458 = vadd.f32 0.0, %v3457
        %3459 = vmatmul.bf16.gmra.mxu0 %v3034
        %v3460 = vpop.f32.mrf.mxu0
        %v3461 = vadd.f32 0.0, %v3460
        %v3462 = vpop.f32.mrf.mxu0
        %v3463 = vadd.f32 0.0, %v3462
        %3464 = vmatmul.bf16.gmra.mxu0 %v3035
        %v3465 = vpop.f32.mrf.mxu0
        %v3466 = vadd.f32 0.0, %v3465
        %v3467 = vpop.f32.mrf.mxu0
        %v3468 = vadd.f32 0.0, %v3467
        %3469 = vmatmul.bf16.gmra.mxu0 %v3036
        %v3470 = vpop.f32.mrf.mxu0
        %v3471 = vadd.f32 0.0, %v3470
        %v3472 = vpop.f32.mrf.mxu0
        %v3473 = vadd.f32 0.0, %v3472
        %3474 = vmatmul.bf16.gmra.mxu0 %v3037
        %v3475 = vpop.f32.mrf.mxu0
        %v3476 = vadd.f32 0.0, %v3475
        %v3477 = vpop.f32.mrf.mxu0
        %v3478 = vadd.f32 0.0, %v3477
        %3479 = vmatmul.bf16.gmra.mxu0 %v3038
        %v3480 = vpop.f32.mrf.mxu0
        %v3481 = vadd.f32 0.0, %v3480
        %v3482 = vpop.f32.mrf.mxu0
        %v3483 = vadd.f32 0.0, %v3482
        %3484 = vmatmul.bf16.gmra.mxu0 %v3391
        %v3485 = vpop.f32.mrf.mxu0
        %v3486 = vadd.f32 0.0, %v3485
        %v3487 = vpop.f32.mrf.mxu0
        %v3488 = vadd.f32 0.0, %v3487
        %3489 = vdwg.mxu0
        %v3490 = vadd.f32 %v3354, %v3451
        %v3491 = vadd.f32 %v3355, %v3453
        %v3492 = vadd.f32 %v3356, %v3456
        %v3493 = vadd.f32 %v3357, %v3458
        %v3494 = vadd.f32 %v3358, %v3461
        %v3495 = vadd.f32 %v3359, %v3463
        %v3496 = vadd.f32 %v3360, %v3466
        %v3497 = vadd.f32 %v3361, %v3468
        %v3498 = vadd.f32 %v3362, %v3471
        %v3499 = vadd.f32 %v3363, %v3473
        %v3500 = vadd.f32 %v3364, %v3476
        %v3501 = vadd.f32 %v3365, %v3478
        %v3502 = vadd.f32 %v3366, %v3481
        %v3503 = vadd.f32 %v3367, %v3483
        %v3504 = vadd.f32 %v3368, %v3486
        %v3505 = vadd.f32 %v3369, %v3488
        %v3507 = vshrl.u32 %v2639, 16
        %v3509 = vrot.slane %v3507, 4
        %v3510 = vshll.u32 %v2639, 16
        %v3512 = vrot.slane %v3510, 5
        %v3513 = vor.u32 %v3509, %v3512
        %v3514 = vrot.slane %v3513, 4
        %v3516 = vshll.u32 %v2640, 16
        %v3518 = vrot.slane %v3516, 5
        %v3519 = vsel %vm378, %v3514, %v3518
        %v3520 = vshrl.u32 %v2640, 16
        %v3522 = vrot.slane %v3520, 4
        %v3523 = vor.u32 %v3522, %v3518
        %v3524 = vrot.slane %v3523, 4
        %v3526 = vshll.u32 %v2641, 16
        %v3528 = vrot.slane %v3526, 5
        %v3529 = vsel %vm378, %v3524, %v3528
        %s3530 = scalar_lea.vmem [#allocation3], 256
        %v3531 = vld [vmem:[%s3530] sm:$0xf]
        %v3532 = vld [vmem:[%s3530 + $0x4] sm:$0xf]
        %v3533 = vld [vmem:[%s3530 + $0x8] sm:$0xf]
        %v3534 = vld [vmem:[%s3530 + $0xc] sm:$0xf]
        %v3535 = vld [vmem:[%s3530 + $0x10] sm:$0xf]
        %v3536 = vld [vmem:[%s3530 + $0x14] sm:$0xf]
        %v3537 = vld [vmem:[%s3530 + $0x18] sm:$0xf]
        %v3538 = vld [vmem:[%s3530 + $0x1c] sm:$0xf]
        %v3539 = vld [vmem:[%s3530 + $0x20] sm:$0xf]
        %v3540 = vld [vmem:[%s3530 + $0x24] sm:$0xf]
        %v3541 = vld [vmem:[%s3530 + $0x28] sm:$0xf]
        %v3542 = vld [vmem:[%s3530 + $0x2c] sm:$0xf]
        %v3543 = vld [vmem:[%s3530 + $0x30] sm:$0xf]
        %v3544 = vld [vmem:[%s3530 + $0x34] sm:$0xf]
        %v3545 = vld [vmem:[%s3530 + $0x38] sm:$0xf]
        %v3546 = vld [vmem:[%s3530 + $0x3c] sm:$0xf]
        %v3547 = vunpack.c.l.b16 %v3519
        %v3548 = vunpack.c.l.b16 %v3529
        %v3549 = vpack.c.b16 %v3548, %v3547
        %v3567 = vunpack.c.l.b16 %v3531
        %v3568 = vunpack.c.l.b16 %v3532
        %v3569 = vunpack.c.l.b16 %v3533
        %v3570 = vunpack.c.l.b16 %v3534
        %v3571 = vunpack.c.l.b16 %v3535
        %v3572 = vunpack.c.l.b16 %v3536
        %v3573 = vunpack.c.l.b16 %v3537
        %v3574 = vunpack.c.l.b16 %v3538
        %v3575 = vunpack.c.l.b16 %v3539
        %v3576 = vunpack.c.l.b16 %v3540
        %v3577 = vunpack.c.l.b16 %v3541
        %v3578 = vunpack.c.l.b16 %v3542
        %v3579 = vunpack.c.l.b16 %v3543
        %v3580 = vunpack.c.l.b16 %v3544
        %v3581 = vunpack.c.l.b16 %v3545
        %v3582 = vunpack.c.l.b16 %v3546
        %v3583 = vpack.c.b16 %v3568, %v3567
        %v3584 = vpack.c.b16 %v3570, %v3569
        %v3585 = vpack.c.b16 %v3572, %v3571
        %v3586 = vpack.c.b16 %v3574, %v3573
        %v3587 = vpack.c.b16 %v3576, %v3575
        %v3588 = vpack.c.b16 %v3578, %v3577
        %v3589 = vpack.c.b16 %v3580, %v3579
        %v3590 = vpack.c.b16 %v3582, %v3581
        %3599 = vmatpush.bf16.msra.mxu0 %v3590
        %3600 = vmatpush.bf16.msra.mxu0 %v3589
        %3601 = vmatpush.bf16.msra.mxu0 %v3588
        %3602 = vmatpush.bf16.msra.mxu0 %v3587
        %3603 = vmatpush.bf16.msra.mxu0 %v3586
        %3604 = vmatpush.bf16.msra.mxu0 %v3585
        %3605 = vmatpush.bf16.msra.mxu0 %v3584
        %3606 = vmatpush.bf16.msra.mxu0 %v3583
        %3607 = vmatmul.bf16.gmra.mxu0 %v2887
        %v3608 = vpop.f32.mrf.mxu0
        %v3609 = vadd.f32 0.0, %v3608
        %v3610 = vpop.f32.mrf.mxu0
        %v3611 = vadd.f32 0.0, %v3610
        %3612 = vmatmul.bf16.gmra.mxu0 %v2888
        %v3613 = vpop.f32.mrf.mxu0
        %v3614 = vadd.f32 0.0, %v3613
        %v3615 = vpop.f32.mrf.mxu0
        %v3616 = vadd.f32 0.0, %v3615
        %3617 = vmatmul.bf16.gmra.mxu0 %v2889
        %v3618 = vpop.f32.mrf.mxu0
        %v3619 = vadd.f32 0.0, %v3618
        %v3620 = vpop.f32.mrf.mxu0
        %v3621 = vadd.f32 0.0, %v3620
        %3622 = vmatmul.bf16.gmra.mxu0 %v2890
        %v3623 = vpop.f32.mrf.mxu0
        %v3624 = vadd.f32 0.0, %v3623
        %v3625 = vpop.f32.mrf.mxu0
        %v3626 = vadd.f32 0.0, %v3625
        %3627 = vmatmul.bf16.gmra.mxu0 %v2891
        %v3628 = vpop.f32.mrf.mxu0
        %v3629 = vadd.f32 0.0, %v3628
        %v3630 = vpop.f32.mrf.mxu0
        %v3631 = vadd.f32 0.0, %v3630
        %3632 = vmatmul.bf16.gmra.mxu0 %v2892
        %v3633 = vpop.f32.mrf.mxu0
        %v3634 = vadd.f32 0.0, %v3633
        %v3635 = vpop.f32.mrf.mxu0
        %v3636 = vadd.f32 0.0, %v3635
        %3637 = vmatmul.bf16.gmra.mxu0 %v2893
        %v3638 = vpop.f32.mrf.mxu0
        %v3639 = vadd.f32 0.0, %v3638
        %v3640 = vpop.f32.mrf.mxu0
        %v3641 = vadd.f32 0.0, %v3640
        %3642 = vmatmul.bf16.gmra.mxu0 %v3549
        %v3643 = vpop.f32.mrf.mxu0
        %v3644 = vadd.f32 0.0, %v3643
        %v3645 = vpop.f32.mrf.mxu0
        %v3646 = vadd.f32 0.0, %v3645
        %3647 = vdwg.mxu0
        %v3648 = vadd.f32 %v3490, %v3609
        %v3649 = vadd.f32 %v3491, %v3611
        %v3650 = vadd.f32 %v3492, %v3614
        %v3651 = vadd.f32 %v3493, %v3616
        %v3652 = vadd.f32 %v3494, %v3619
        %v3653 = vadd.f32 %v3495, %v3621
        %v3654 = vadd.f32 %v3496, %v3624
        %v3655 = vadd.f32 %v3497, %v3626
        %v3656 = vadd.f32 %v3498, %v3629
        %v3657 = vadd.f32 %v3499, %v3631
        %v3658 = vadd.f32 %v3500, %v3634
        %v3659 = vadd.f32 %v3501, %v3636
        %v3660 = vadd.f32 %v3502, %v3639
        %v3661 = vadd.f32 %v3503, %v3641
        %v3662 = vadd.f32 %v3504, %v3644
        %v3663 = vadd.f32 %v3505, %v3646
        %v3665 = vrot.slane %v2639, 5
        %v3666 = vrot.slane %v3665, 4
        %v3667 = vrot.slane %v2640, 5
        %v3668 = vsel %vm962, %v3666, %v3667
        %v3669 = vrot.slane %v3667, 4
        %v3670 = vrot.slane %v2641, 5
        %v3671 = vsel %vm962, %v3669, %v3670
        %s3672 = scalar_lea.vmem [#allocation3], 320
        %v3673 = vld [vmem:[%s3672] sm:$0xf]
        %v3674 = vld [vmem:[%s3672 + $0x4] sm:$0xf]
        %v3675 = vld [vmem:[%s3672 + $0x8] sm:$0xf]
        %v3676 = vld [vmem:[%s3672 + $0xc] sm:$0xf]
        %v3677 = vld [vmem:[%s3672 + $0x10] sm:$0xf]
        %v3678 = vld [vmem:[%s3672 + $0x14] sm:$0xf]
        %v3679 = vld [vmem:[%s3672 + $0x18] sm:$0xf]
        %v3680 = vld [vmem:[%s3672 + $0x1c] sm:$0xf]
        %v3681 = vld [vmem:[%s3672 + $0x20] sm:$0xf]
        %v3682 = vld [vmem:[%s3672 + $0x24] sm:$0xf]
        %v3683 = vld [vmem:[%s3672 + $0x28] sm:$0xf]
        %v3684 = vld [vmem:[%s3672 + $0x2c] sm:$0xf]
        %v3685 = vld [vmem:[%s3672 + $0x30] sm:$0xf]
        %v3686 = vld [vmem:[%s3672 + $0x34] sm:$0xf]
        %v3687 = vld [vmem:[%s3672 + $0x38] sm:$0xf]
        %v3688 = vld [vmem:[%s3672 + $0x3c] sm:$0xf]
        %v3689 = vunpack.c.l.b16 %v3668
        %v3690 = vunpack.c.l.b16 %v3671
        %v3691 = vpack.c.b16 %v3690, %v3689
        %v3709 = vunpack.c.l.b16 %v3673
        %v3710 = vunpack.c.l.b16 %v3674
        %v3711 = vunpack.c.l.b16 %v3675
        %v3712 = vunpack.c.l.b16 %v3676
        %v3713 = vunpack.c.l.b16 %v3677
        %v3714 = vunpack.c.l.b16 %v3678
        %v3715 = vunpack.c.l.b16 %v3679
        %v3716 = vunpack.c.l.b16 %v3680
        %v3717 = vunpack.c.l.b16 %v3681
        %v3718 = vunpack.c.l.b16 %v3682
        %v3719 = vunpack.c.l.b16 %v3683
        %v3720 = vunpack.c.l.b16 %v3684
        %v3721 = vunpack.c.l.b16 %v3685
        %v3722 = vunpack.c.l.b16 %v3686
        %v3723 = vunpack.c.l.b16 %v3687
        %v3724 = vunpack.c.l.b16 %v3688
        %v3725 = vpack.c.b16 %v3710, %v3709
        %v3726 = vpack.c.b16 %v3712, %v3711
        %v3727 = vpack.c.b16 %v3714, %v3713
        %v3728 = vpack.c.b16 %v3716, %v3715
        %v3729 = vpack.c.b16 %v3718, %v3717
        %v3730 = vpack.c.b16 %v3720, %v3719
        %v3731 = vpack.c.b16 %v3722, %v3721
        %v3732 = vpack.c.b16 %v3724, %v3723
        %3741 = vmatpush.bf16.msra.mxu0 %v3732
        %3742 = vmatpush.bf16.msra.mxu0 %v3731
        %3743 = vmatpush.bf16.msra.mxu0 %v3730
        %3744 = vmatpush.bf16.msra.mxu0 %v3729
        %3745 = vmatpush.bf16.msra.mxu0 %v3728
        %3746 = vmatpush.bf16.msra.mxu0 %v3727
        %3747 = vmatpush.bf16.msra.mxu0 %v3726
        %3748 = vmatpush.bf16.msra.mxu0 %v3725
        %3749 = vmatmul.bf16.gmra.mxu0 %v3242
        %v3750 = vpop.f32.mrf.mxu0
        %v3751 = vadd.f32 0.0, %v3750
        %v3752 = vpop.f32.mrf.mxu0
        %v3753 = vadd.f32 0.0, %v3752
        %3754 = vmatmul.bf16.gmra.mxu0 %v3243
        %v3755 = vpop.f32.mrf.mxu0
        %v3756 = vadd.f32 0.0, %v3755
        %v3757 = vpop.f32.mrf.mxu0
        %v3758 = vadd.f32 0.0, %v3757
        %3759 = vmatmul.bf16.gmra.mxu0 %v3244
        %v3760 = vpop.f32.mrf.mxu0
        %v3761 = vadd.f32 0.0, %v3760
        %v3762 = vpop.f32.mrf.mxu0
        %v3763 = vadd.f32 0.0, %v3762
        %3764 = vmatmul.bf16.gmra.mxu0 %v3245
        %v3765 = vpop.f32.mrf.mxu0
        %v3766 = vadd.f32 0.0, %v3765
        %v3767 = vpop.f32.mrf.mxu0
        %v3768 = vadd.f32 0.0, %v3767
        %3769 = vmatmul.bf16.gmra.mxu0 %v3246
        %v3770 = vpop.f32.mrf.mxu0
        %v3771 = vadd.f32 0.0, %v3770
        %v3772 = vpop.f32.mrf.mxu0
        %v3773 = vadd.f32 0.0, %v3772
        %3774 = vmatmul.bf16.gmra.mxu0 %v3247
        %v3775 = vpop.f32.mrf.mxu0
        %v3776 = vadd.f32 0.0, %v3775
        %v3777 = vpop.f32.mrf.mxu0
        %v3778 = vadd.f32 0.0, %v3777
        %3779 = vmatmul.bf16.gmra.mxu0 %v3248
        %v3780 = vpop.f32.mrf.mxu0
        %v3781 = vadd.f32 0.0, %v3780
        %v3782 = vpop.f32.mrf.mxu0
        %v3783 = vadd.f32 0.0, %v3782
        %3784 = vmatmul.bf16.gmra.mxu0 %v3691
        %v3785 = vpop.f32.mrf.mxu0
        %v3786 = vadd.f32 0.0, %v3785
        %v3787 = vpop.f32.mrf.mxu0
        %v3788 = vadd.f32 0.0, %v3787
        %3789 = vdwg.mxu0
        %v3790 = vadd.f32 %v3648, %v3751
        %v3791 = vadd.f32 %v3649, %v3753
        %v3792 = vadd.f32 %v3650, %v3756
        %v3793 = vadd.f32 %v3651, %v3758
        %v3794 = vadd.f32 %v3652, %v3761
        %v3795 = vadd.f32 %v3653, %v3763
        %v3796 = vadd.f32 %v3654, %v3766
        %v3797 = vadd.f32 %v3655, %v3768
        %v3798 = vadd.f32 %v3656, %v3771
        %v3799 = vadd.f32 %v3657, %v3773
        %v3800 = vadd.f32 %v3658, %v3776
        %v3801 = vadd.f32 %v3659, %v3778
        %v3802 = vadd.f32 %v3660, %v3781
        %v3803 = vadd.f32 %v3661, %v3783
        %v3804 = vadd.f32 %v3662, %v3786
        %v3805 = vadd.f32 %v3663, %v3788
        %s3806 = scalar_lea.vmem [#allocation3], 384
        %v3807 = vld [vmem:[%s3806] sm:$0xf]
        %v3808 = vld [vmem:[%s3806 + $0x4] sm:$0xf]
        %v3809 = vld [vmem:[%s3806 + $0x8] sm:$0xf]
        %v3810 = vld [vmem:[%s3806 + $0xc] sm:$0xf]
        %v3811 = vld [vmem:[%s3806 + $0x10] sm:$0xf]
        %v3812 = vld [vmem:[%s3806 + $0x14] sm:$0xf]
        %v3813 = vld [vmem:[%s3806 + $0x18] sm:$0xf]
        %v3814 = vld [vmem:[%s3806 + $0x1c] sm:$0xf]
        %v3815 = vld [vmem:[%s3806 + $0x20] sm:$0xf]
        %v3816 = vld [vmem:[%s3806 + $0x24] sm:$0xf]
        %v3817 = vld [vmem:[%s3806 + $0x28] sm:$0xf]
        %v3818 = vld [vmem:[%s3806 + $0x2c] sm:$0xf]
        %v3819 = vld [vmem:[%s3806 + $0x30] sm:$0xf]
        %v3820 = vld [vmem:[%s3806 + $0x34] sm:$0xf]
        %v3821 = vld [vmem:[%s3806 + $0x38] sm:$0xf]
        %v3822 = vld [vmem:[%s3806 + $0x3c] sm:$0xf]
        %v3825 = vunpack.c.l.b16 %v2642
        %v3826 = vunpack.c.l.b16 %v2643
        %v3827 = vpack.c.b16 %v3826, %v3825
        %v3845 = vunpack.c.l.b16 %v3807
        %v3846 = vunpack.c.l.b16 %v3808
        %v3847 = vunpack.c.l.b16 %v3809
        %v3848 = vunpack.c.l.b16 %v3810
        %v3849 = vunpack.c.l.b16 %v3811
        %v3850 = vunpack.c.l.b16 %v3812
        %v3851 = vunpack.c.l.b16 %v3813
        %v3852 = vunpack.c.l.b16 %v3814
        %v3853 = vunpack.c.l.b16 %v3815
        %v3854 = vunpack.c.l.b16 %v3816
        %v3855 = vunpack.c.l.b16 %v3817
        %v3856 = vunpack.c.l.b16 %v3818
        %v3857 = vunpack.c.l.b16 %v3819
        %v3858 = vunpack.c.l.b16 %v3820
        %v3859 = vunpack.c.l.b16 %v3821
        %v3860 = vunpack.c.l.b16 %v3822
        %v3861 = vpack.c.b16 %v3846, %v3845
        %v3862 = vpack.c.b16 %v3848, %v3847
        %v3863 = vpack.c.b16 %v3850, %v3849
        %v3864 = vpack.c.b16 %v3852, %v3851
        %v3865 = vpack.c.b16 %v3854, %v3853
        %v3866 = vpack.c.b16 %v3856, %v3855
        %v3867 = vpack.c.b16 %v3858, %v3857
        %v3868 = vpack.c.b16 %v3860, %v3859
        %3877 = vmatpush.bf16.msra.mxu0 %v3868
        %3878 = vmatpush.bf16.msra.mxu0 %v3867
        %3879 = vmatpush.bf16.msra.mxu0 %v3866
        %3880 = vmatpush.bf16.msra.mxu0 %v3865
        %3881 = vmatpush.bf16.msra.mxu0 %v3864
        %3882 = vmatpush.bf16.msra.mxu0 %v3863
        %3883 = vmatpush.bf16.msra.mxu0 %v3862
        %3884 = vmatpush.bf16.msra.mxu0 %v3861
        %3885 = vmatmul.bf16.gmra.mxu0 %v3033
        %v3886 = vpop.f32.mrf.mxu0
        %v3887 = vadd.f32 0.0, %v3886
        %v3888 = vpop.f32.mrf.mxu0
        %v3889 = vadd.f32 0.0, %v3888
        %3890 = vmatmul.bf16.gmra.mxu0 %v3034
        %v3891 = vpop.f32.mrf.mxu0
        %v3892 = vadd.f32 0.0, %v3891
        %v3893 = vpop.f32.mrf.mxu0
        %v3894 = vadd.f32 0.0, %v3893
        %3895 = vmatmul.bf16.gmra.mxu0 %v3035
        %v3896 = vpop.f32.mrf.mxu0
        %v3897 = vadd.f32 0.0, %v3896
        %v3898 = vpop.f32.mrf.mxu0
        %v3899 = vadd.f32 0.0, %v3898
        %3900 = vmatmul.bf16.gmra.mxu0 %v3036
        %v3901 = vpop.f32.mrf.mxu0
        %v3902 = vadd.f32 0.0, %v3901
        %v3903 = vpop.f32.mrf.mxu0
        %v3904 = vadd.f32 0.0, %v3903
        %3905 = vmatmul.bf16.gmra.mxu0 %v3037
        %v3906 = vpop.f32.mrf.mxu0
        %v3907 = vadd.f32 0.0, %v3906
        %v3908 = vpop.f32.mrf.mxu0
        %v3909 = vadd.f32 0.0, %v3908
        %3910 = vmatmul.bf16.gmra.mxu0 %v3038
        %v3911 = vpop.f32.mrf.mxu0
        %v3912 = vadd.f32 0.0, %v3911
        %v3913 = vpop.f32.mrf.mxu0
        %v3914 = vadd.f32 0.0, %v3913
        %3915 = vmatmul.bf16.gmra.mxu0 %v3391
        %v3916 = vpop.f32.mrf.mxu0
        %v3917 = vadd.f32 0.0, %v3916
        %v3918 = vpop.f32.mrf.mxu0
        %v3919 = vadd.f32 0.0, %v3918
        %3920 = vmatmul.bf16.gmra.mxu0 %v3827
        %v3921 = vpop.f32.mrf.mxu0
        %v3922 = vadd.f32 0.0, %v3921
        %v3923 = vpop.f32.mrf.mxu0
        %v3924 = vadd.f32 0.0, %v3923
        %3925 = vdwg.mxu0
        %v3926 = vadd.f32 %v3790, %v3887
        %v3927 = vadd.f32 %v3791, %v3889
        %v3928 = vadd.f32 %v3792, %v3892
        %v3929 = vadd.f32 %v3793, %v3894
        %v3930 = vadd.f32 %v3794, %v3897
        %v3931 = vadd.f32 %v3795, %v3899
        %v3932 = vadd.f32 %v3796, %v3902
        %v3933 = vadd.f32 %v3797, %v3904
        %v3934 = vadd.f32 %v3798, %v3907
        %v3935 = vadd.f32 %v3799, %v3909
        %v3936 = vadd.f32 %v3800, %v3912
        %v3937 = vadd.f32 %v3801, %v3914
        %v3938 = vadd.f32 %v3802, %v3917
        %v3939 = vadd.f32 %v3803, %v3919
        %v3940 = vadd.f32 %v3804, %v3922
        %v3941 = vadd.f32 %v3805, %v3924
        %v3943 = vshrl.u32 %v2642, 16
        %v3945 = vrot.slane %v3943, 4
        %v3946 = vshll.u32 %v2642, 16
        %v3948 = vrot.slane %v3946, 5
        %v3949 = vor.u32 %v3945, %v3948
        %v3950 = vrot.slane %v3949, 4
        %v3952 = vshll.u32 %v2643, 16
        %v3954 = vrot.slane %v3952, 5
        %v3955 = vsel %vm378, %v3950, %v3954
        %v3956 = vshrl.u32 %v2643, 16
        %v3958 = vrot.slane %v3956, 4
        %v3959 = vor.u32 %v3958, %v3954
        %v3960 = vrot.slane %v3959, 4
        %v3962 = vshll.u32 %v2644, 16
        %v3964 = vrot.slane %v3962, 5
        %v3965 = vsel %vm378, %v3960, %v3964
        %s3966 = scalar_lea.vmem [#allocation3], 448
        %v3967 = vld [vmem:[%s3966] sm:$0xf]
        %v3968 = vld [vmem:[%s3966 + $0x4] sm:$0xf]
        %v3969 = vld [vmem:[%s3966 + $0x8] sm:$0xf]
        %v3970 = vld [vmem:[%s3966 + $0xc] sm:$0xf]
        %v3971 = vld [vmem:[%s3966 + $0x10] sm:$0xf]
        %v3972 = vld [vmem:[%s3966 + $0x14] sm:$0xf]
        %v3973 = vld [vmem:[%s3966 + $0x18] sm:$0xf]
        %v3974 = vld [vmem:[%s3966 + $0x1c] sm:$0xf]
        %v3975 = vld [vmem:[%s3966 + $0x20] sm:$0xf]
        %v3976 = vld [vmem:[%s3966 + $0x24] sm:$0xf]
        %v3977 = vld [vmem:[%s3966 + $0x28] sm:$0xf]
        %v3978 = vld [vmem:[%s3966 + $0x2c] sm:$0xf]
        %v3979 = vld [vmem:[%s3966 + $0x30] sm:$0xf]
        %v3980 = vld [vmem:[%s3966 + $0x34] sm:$0xf]
        %v3981 = vld [vmem:[%s3966 + $0x38] sm:$0xf]
        %v3982 = vld [vmem:[%s3966 + $0x3c] sm:$0xf]
        %v3983 = vunpack.c.l.b16 %v3955
        %v3984 = vunpack.c.l.b16 %v3965
        %v3985 = vpack.c.b16 %v3984, %v3983
        %v4003 = vunpack.c.l.b16 %v3967
        %v4004 = vunpack.c.l.b16 %v3968
        %v4005 = vunpack.c.l.b16 %v3969
        %v4006 = vunpack.c.l.b16 %v3970
        %v4007 = vunpack.c.l.b16 %v3971
        %v4008 = vunpack.c.l.b16 %v3972
        %v4009 = vunpack.c.l.b16 %v3973
        %v4010 = vunpack.c.l.b16 %v3974
        %v4011 = vunpack.c.l.b16 %v3975
        %v4012 = vunpack.c.l.b16 %v3976
        %v4013 = vunpack.c.l.b16 %v3977
        %v4014 = vunpack.c.l.b16 %v3978
        %v4015 = vunpack.c.l.b16 %v3979
        %v4016 = vunpack.c.l.b16 %v3980
        %v4017 = vunpack.c.l.b16 %v3981
        %v4018 = vunpack.c.l.b16 %v3982
        %v4019 = vpack.c.b16 %v4004, %v4003
        %v4020 = vpack.c.b16 %v4006, %v4005
        %v4021 = vpack.c.b16 %v4008, %v4007
        %v4022 = vpack.c.b16 %v4010, %v4009
        %v4023 = vpack.c.b16 %v4012, %v4011
        %v4024 = vpack.c.b16 %v4014, %v4013
        %v4025 = vpack.c.b16 %v4016, %v4015
        %v4026 = vpack.c.b16 %v4018, %v4017
        %4035 = vmatpush.bf16.msra.mxu0 %v4026
        %4036 = vmatpush.bf16.msra.mxu0 %v4025
        %4037 = vmatpush.bf16.msra.mxu0 %v4024
        %4038 = vmatpush.bf16.msra.mxu0 %v4023
        %4039 = vmatpush.bf16.msra.mxu0 %v4022
        %4040 = vmatpush.bf16.msra.mxu0 %v4021
        %4041 = vmatpush.bf16.msra.mxu0 %v4020
        %4042 = vmatpush.bf16.msra.mxu0 %v4019
        %4043 = vmatmul.bf16.gmra.mxu0 %v2888
        %v4044 = vpop.f32.mrf.mxu0
        %v4045 = vadd.f32 0.0, %v4044
        %v4046 = vpop.f32.mrf.mxu0
        %v4047 = vadd.f32 0.0, %v4046
        %4048 = vmatmul.bf16.gmra.mxu0 %v2889
        %v4049 = vpop.f32.mrf.mxu0
        %v4050 = vadd.f32 0.0, %v4049
        %v4051 = vpop.f32.mrf.mxu0
        %v4052 = vadd.f32 0.0, %v4051
        %4053 = vmatmul.bf16.gmra.mxu0 %v2890
        %v4054 = vpop.f32.mrf.mxu0
        %v4055 = vadd.f32 0.0, %v4054
        %v4056 = vpop.f32.mrf.mxu0
        %v4057 = vadd.f32 0.0, %v4056
        %4058 = vmatmul.bf16.gmra.mxu0 %v2891
        %v4059 = vpop.f32.mrf.mxu0
        %v4060 = vadd.f32 0.0, %v4059
        %v4061 = vpop.f32.mrf.mxu0
        %v4062 = vadd.f32 0.0, %v4061
        %4063 = vmatmul.bf16.gmra.mxu0 %v2892
        %v4064 = vpop.f32.mrf.mxu0
        %v4065 = vadd.f32 0.0, %v4064
        %v4066 = vpop.f32.mrf.mxu0
        %v4067 = vadd.f32 0.0, %v4066
        %4068 = vmatmul.bf16.gmra.mxu0 %v2893
        %v4069 = vpop.f32.mrf.mxu0
        %v4070 = vadd.f32 0.0, %v4069
        %v4071 = vpop.f32.mrf.mxu0
        %v4072 = vadd.f32 0.0, %v4071
        %4073 = vmatmul.bf16.gmra.mxu0 %v3549
        %v4074 = vpop.f32.mrf.mxu0
        %v4075 = vadd.f32 0.0, %v4074
        %v4076 = vpop.f32.mrf.mxu0
        %v4077 = vadd.f32 0.0, %v4076
        %4078 = vmatmul.bf16.gmra.mxu0 %v3985
        %v4079 = vpop.f32.mrf.mxu0
        %v4080 = vadd.f32 0.0, %v4079
        %v4081 = vpop.f32.mrf.mxu0
        %v4082 = vadd.f32 0.0, %v4081
        %4083 = vdwg.mxu0
        %v4084 = vadd.f32 %v3926, %v4045
        %v4085 = vadd.f32 %v3927, %v4047
        %v4086 = vadd.f32 %v3928, %v4050
        %v4087 = vadd.f32 %v3929, %v4052
        %v4088 = vadd.f32 %v3930, %v4055
        %v4089 = vadd.f32 %v3931, %v4057
        %v4090 = vadd.f32 %v3932, %v4060
        %v4091 = vadd.f32 %v3933, %v4062
        %v4092 = vadd.f32 %v3934, %v4065
        %v4093 = vadd.f32 %v3935, %v4067
        %v4094 = vadd.f32 %v3936, %v4070
        %v4095 = vadd.f32 %v3937, %v4072
        %v4096 = vadd.f32 %v3938, %v4075
        %v4097 = vadd.f32 %v3939, %v4077
        %v4098 = vadd.f32 %v3940, %v4080
        %v4099 = vadd.f32 %v3941, %v4082
        %v4101 = vrot.slane %v2642, 5
        %v4102 = vrot.slane %v4101, 4
        %v4103 = vrot.slane %v2643, 5
        %v4104 = vsel %vm962, %v4102, %v4103
        %v4105 = vrot.slane %v4103, 4
        %v4106 = vrot.slane %v2644, 5
        %v4107 = vsel %vm962, %v4105, %v4106
        %s4108 = scalar_lea.vmem [#allocation3], 512
        %v4109 = vld [vmem:[%s4108] sm:$0xf]
        %v4110 = vld [vmem:[%s4108 + $0x4] sm:$0xf]
        %v4111 = vld [vmem:[%s4108 + $0x8] sm:$0xf]
        %v4112 = vld [vmem:[%s4108 + $0xc] sm:$0xf]
        %v4113 = vld [vmem:[%s4108 + $0x10] sm:$0xf]
        %v4114 = vld [vmem:[%s4108 + $0x14] sm:$0xf]
        %v4115 = vld [vmem:[%s4108 + $0x18] sm:$0xf]
        %v4116 = vld [vmem:[%s4108 + $0x1c] sm:$0xf]
        %v4117 = vld [vmem:[%s4108 + $0x20] sm:$0xf]
        %v4118 = vld [vmem:[%s4108 + $0x24] sm:$0xf]
        %v4119 = vld [vmem:[%s4108 + $0x28] sm:$0xf]
        %v4120 = vld [vmem:[%s4108 + $0x2c] sm:$0xf]
        %v4121 = vld [vmem:[%s4108 + $0x30] sm:$0xf]
        %v4122 = vld [vmem:[%s4108 + $0x34] sm:$0xf]
        %v4123 = vld [vmem:[%s4108 + $0x38] sm:$0xf]
        %v4124 = vld [vmem:[%s4108 + $0x3c] sm:$0xf]
        %v4125 = vunpack.c.l.b16 %v4104
        %v4126 = vunpack.c.l.b16 %v4107
        %v4127 = vpack.c.b16 %v4126, %v4125
        %v4145 = vunpack.c.l.b16 %v4109
        %v4146 = vunpack.c.l.b16 %v4110
        %v4147 = vunpack.c.l.b16 %v4111
        %v4148 = vunpack.c.l.b16 %v4112
        %v4149 = vunpack.c.l.b16 %v4113
        %v4150 = vunpack.c.l.b16 %v4114
        %v4151 = vunpack.c.l.b16 %v4115
        %v4152 = vunpack.c.l.b16 %v4116
        %v4153 = vunpack.c.l.b16 %v4117
        %v4154 = vunpack.c.l.b16 %v4118
        %v4155 = vunpack.c.l.b16 %v4119
        %v4156 = vunpack.c.l.b16 %v4120
        %v4157 = vunpack.c.l.b16 %v4121
        %v4158 = vunpack.c.l.b16 %v4122
        %v4159 = vunpack.c.l.b16 %v4123
        %v4160 = vunpack.c.l.b16 %v4124
        %v4161 = vpack.c.b16 %v4146, %v4145
        %v4162 = vpack.c.b16 %v4148, %v4147
        %v4163 = vpack.c.b16 %v4150, %v4149
        %v4164 = vpack.c.b16 %v4152, %v4151
        %v4165 = vpack.c.b16 %v4154, %v4153
        %v4166 = vpack.c.b16 %v4156, %v4155
        %v4167 = vpack.c.b16 %v4158, %v4157
        %v4168 = vpack.c.b16 %v4160, %v4159
        %4177 = vmatpush.bf16.msra.mxu0 %v4168
        %4178 = vmatpush.bf16.msra.mxu0 %v4167
        %4179 = vmatpush.bf16.msra.mxu0 %v4166
        %4180 = vmatpush.bf16.msra.mxu0 %v4165
        %4181 = vmatpush.bf16.msra.mxu0 %v4164
        %4182 = vmatpush.bf16.msra.mxu0 %v4163
        %4183 = vmatpush.bf16.msra.mxu0 %v4162
        %4184 = vmatpush.bf16.msra.mxu0 %v4161
        %4185 = vmatmul.bf16.gmra.mxu0 %v3243
        %v4186 = vpop.f32.mrf.mxu0
        %v4187 = vadd.f32 0.0, %v4186
        %v4188 = vpop.f32.mrf.mxu0
        %v4189 = vadd.f32 0.0, %v4188
        %4190 = vmatmul.bf16.gmra.mxu0 %v3244
        %v4191 = vpop.f32.mrf.mxu0
        %v4192 = vadd.f32 0.0, %v4191
        %v4193 = vpop.f32.mrf.mxu0
        %v4194 = vadd.f32 0.0, %v4193
        %4195 = vmatmul.bf16.gmra.mxu0 %v3245
        %v4196 = vpop.f32.mrf.mxu0
        %v4197 = vadd.f32 0.0, %v4196
        %v4198 = vpop.f32.mrf.mxu0
        %v4199 = vadd.f32 0.0, %v4198
        %4200 = vmatmul.bf16.gmra.mxu0 %v3246
        %v4201 = vpop.f32.mrf.mxu0
        %v4202 = vadd.f32 0.0, %v4201
        %v4203 = vpop.f32.mrf.mxu0
        %v4204 = vadd.f32 0.0, %v4203
        %4205 = vmatmul.bf16.gmra.mxu0 %v3247
        %v4206 = vpop.f32.mrf.mxu0
        %v4207 = vadd.f32 0.0, %v4206
        %v4208 = vpop.f32.mrf.mxu0
        %v4209 = vadd.f32 0.0, %v4208
        %4210 = vmatmul.bf16.gmra.mxu0 %v3248
        %v4211 = vpop.f32.mrf.mxu0
        %v4212 = vadd.f32 0.0, %v4211
        %v4213 = vpop.f32.mrf.mxu0
        %v4214 = vadd.f32 0.0, %v4213
        %4215 = vmatmul.bf16.gmra.mxu0 %v3691
        %v4216 = vpop.f32.mrf.mxu0
        %v4217 = vadd.f32 0.0, %v4216
        %v4218 = vpop.f32.mrf.mxu0
        %v4219 = vadd.f32 0.0, %v4218
        %4220 = vmatmul.bf16.gmra.mxu0 %v4127
        %v4221 = vpop.f32.mrf.mxu0
        %v4222 = vadd.f32 0.0, %v4221
        %v4223 = vpop.f32.mrf.mxu0
        %v4224 = vadd.f32 0.0, %v4223
        %4225 = vdwg.mxu0
        %v4226 = vadd.f32 %v4084, %v4187
        %v4227 = vadd.f32 %v4085, %v4189
        %v4228 = vadd.f32 %v4086, %v4192
        %v4229 = vadd.f32 %v4087, %v4194
        %v4230 = vadd.f32 %v4088, %v4197
        %v4231 = vadd.f32 %v4089, %v4199
        %v4232 = vadd.f32 %v4090, %v4202
        %v4233 = vadd.f32 %v4091, %v4204
        %v4234 = vadd.f32 %v4092, %v4207
        %v4235 = vadd.f32 %v4093, %v4209
        %v4236 = vadd.f32 %v4094, %v4212
        %v4237 = vadd.f32 %v4095, %v4214
        %v4238 = vadd.f32 %v4096, %v4217
        %v4239 = vadd.f32 %v4097, %v4219
        %v4240 = vadd.f32 %v4098, %v4222
        %v4241 = vadd.f32 %v4099, %v4224
        %v4258 = vunpack.c.l.bf16 %v440
        %v4259 = vunpack.c.l.bf16 %v450
        %v4260 = vunpack.c.l.bf16 %v464
        %v4261 = vunpack.c.l.bf16 %v474
        %v4262 = vunpack.c.l.bf16 %v488
        %v4263 = vunpack.c.l.bf16 %v498
        %v4264 = vunpack.c.l.bf16 %v512
        %v4265 = vunpack.c.l.bf16 %v522
        %v4266 = vunpack.c.l.bf16 %v536
        %v4267 = vunpack.c.l.bf16 %v546
        %v4268 = vunpack.c.l.bf16 %v560
        %v4269 = vunpack.c.l.bf16 %v570
        %v4270 = vunpack.c.l.bf16 %v584
        %v4271 = vunpack.c.l.bf16 %v594
        %v4272 = vunpack.c.l.bf16 %v608
        %v4273 = vunpack.c.l.bf16 %v618
        %v4274 = vld [vmem:[%s5] sm:$0x1]
        %v4276 = vperm.slane %v4274, 0
        %v4278 = vmul.f32 %v4226, %v4276
        %v4279 = vmul.f32 %v4227, %v4276
        %v4280 = vmul.f32 %v4228, %v4276
        %v4281 = vmul.f32 %v4229, %v4276
        %v4282 = vmul.f32 %v4230, %v4276
        %v4283 = vmul.f32 %v4231, %v4276
        %v4284 = vmul.f32 %v4232, %v4276
        %v4285 = vmul.f32 %v4233, %v4276
        %v4286 = vmul.f32 %v4234, %v4276
        %v4287 = vmul.f32 %v4235, %v4276
        %v4288 = vmul.f32 %v4236, %v4276
        %v4289 = vmul.f32 %v4237, %v4276
        %v4290 = vmul.f32 %v4238, %v4276
        %v4291 = vmul.f32 %v4239, %v4276
        %v4292 = vmul.f32 %v4240, %v4276
        %v4293 = vmul.f32 %v4241, %v4276
        %v4294 = vld [vmem:[%s6] sm:$0x1]
        %v4296 = vperm.slane %v4294, 0
        %v4298 = vadd.f32 %v4278, %v4296
        %v4299 = vadd.f32 %v4279, %v4296
        %v4300 = vadd.f32 %v4280, %v4296
        %v4301 = vadd.f32 %v4281, %v4296
        %v4302 = vadd.f32 %v4282, %v4296
        %v4303 = vadd.f32 %v4283, %v4296
        %v4304 = vadd.f32 %v4284, %v4296
        %v4305 = vadd.f32 %v4285, %v4296
        %v4306 = vadd.f32 %v4286, %v4296
        %v4307 = vadd.f32 %v4287, %v4296
        %v4308 = vadd.f32 %v4288, %v4296
        %v4309 = vadd.f32 %v4289, %v4296
        %v4310 = vadd.f32 %v4290, %v4296
        %v4311 = vadd.f32 %v4291, %v4296
        %v4312 = vadd.f32 %v4292, %v4296
        %v4313 = vadd.f32 %v4293, %v4296
        %v4314 = vadd.f32 %v4298, %v4258
        %v4315 = vadd.f32 %v4299, %v4259
        %v4316 = vadd.f32 %v4300, %v4260
        %v4317 = vadd.f32 %v4301, %v4261
        %v4318 = vadd.f32 %v4302, %v4262
        %v4319 = vadd.f32 %v4303, %v4263
        %v4320 = vadd.f32 %v4304, %v4264
        %v4321 = vadd.f32 %v4305, %v4265
        %v4322 = vadd.f32 %v4306, %v4266
        %v4323 = vadd.f32 %v4307, %v4267
        %v4324 = vadd.f32 %v4308, %v4268
        %v4325 = vadd.f32 %v4309, %v4269
        %v4326 = vadd.f32 %v4310, %v4270
        %v4327 = vadd.f32 %v4311, %v4271
        %v4328 = vadd.f32 %v4312, %v4272
        %v4329 = vadd.f32 %v4313, %v4273
        %v4330 = vmax.f32 %v4314, 0.0
        %v4331 = vmax.f32 %v4315, 0.0
        %v4332 = vmax.f32 %v4316, 0.0
        %v4333 = vmax.f32 %v4317, 0.0
        %v4334 = vmax.f32 %v4318, 0.0
        %v4335 = vmax.f32 %v4319, 0.0
        %v4336 = vmax.f32 %v4320, 0.0
        %v4337 = vmax.f32 %v4321, 0.0
        %v4338 = vmax.f32 %v4322, 0.0
        %v4339 = vmax.f32 %v4323, 0.0
        %v4340 = vmax.f32 %v4324, 0.0
        %v4341 = vmax.f32 %v4325, 0.0
        %v4342 = vmax.f32 %v4326, 0.0
        %v4343 = vmax.f32 %v4327, 0.0
        %v4344 = vmax.f32 %v4328, 0.0
        %v4345 = vmax.f32 %v4329, 0.0
        %v4346 = vpack.c.bf16 %v4330, %v4330
        %v4347 = vpack.c.bf16 %v4331, %v4331
        %v4348 = vpack.c.bf16 %v4332, %v4332
        %v4349 = vpack.c.bf16 %v4333, %v4333
        %v4350 = vpack.c.bf16 %v4334, %v4334
        %v4351 = vpack.c.bf16 %v4335, %v4335
        %v4352 = vpack.c.bf16 %v4336, %v4336
        %v4353 = vpack.c.bf16 %v4337, %v4337
        %v4354 = vpack.c.bf16 %v4338, %v4338
        %v4355 = vpack.c.bf16 %v4339, %v4339
        %v4356 = vpack.c.bf16 %v4340, %v4340
        %v4357 = vpack.c.bf16 %v4341, %v4341
        %v4358 = vpack.c.bf16 %v4342, %v4342
        %v4359 = vpack.c.bf16 %v4343, %v4343
        %v4360 = vpack.c.bf16 %v4344, %v4344
        %v4361 = vpack.c.bf16 %v4345, %v4345
        %4362 = vst [vmem:[%s312] sm:$0xf] %v4346
        %4363 = vst [vmem:[%s312 + $0x4] sm:$0xf] %v4347
        %4364 = vst [vmem:[%s312 + $0x8] sm:$0xf] %v4348
        %4365 = vst [vmem:[%s312 + $0xc] sm:$0xf] %v4349
        %4366 = vst [vmem:[%s312 + $0x10] sm:$0xf] %v4350
        %4367 = vst [vmem:[%s312 + $0x14] sm:$0xf] %v4351
        %4368 = vst [vmem:[%s312 + $0x18] sm:$0xf] %v4352
        %4369 = vst [vmem:[%s312 + $0x1c] sm:$0xf] %v4353
        %4370 = vst [vmem:[%s312 + $0x20] sm:$0xf] %v4354
        %4371 = vst [vmem:[%s312 + $0x24] sm:$0xf] %v4355
        %4372 = vst [vmem:[%s312 + $0x28] sm:$0xf] %v4356
        %4373 = vst [vmem:[%s312 + $0x2c] sm:$0xf] %v4357
        %4374 = vst [vmem:[%s312 + $0x30] sm:$0xf] %v4358
        %4375 = vst [vmem:[%s312 + $0x34] sm:$0xf] %v4359
        %4376 = vst [vmem:[%s312 + $0x38] sm:$0xf] %v4360
        %4377 = vst [vmem:[%s312 + $0x3c] sm:$0xf] %v4361
        %s4378 = sand.u32 %s198, 1
        %s4379 = scalar_lea.sflag [#allocation5], %s4378
        %s4380 = sand.u32 %s198, 1
        %s4381 = smul.addr %s4380, 64
        %s4382 = scalar_lea.vmem [#allocation6], %s4381
        // Predicated region
        $region61: #{tpu_custom_call.1} parent=47 // pred_check
          %p4383 = pneg %p208
        $region62: #{tpu_custom_call.1} parent=47 // pred_check_branch
          %4385 = sbr.rel (%p4383) target = $region64
        $region63: #{tpu_custom_call.1} parent=47 // pred_region
          %s4386 = smul.u32 8, %s27
          %4388 = vsyncadd %s4379, 0
          %s4389 = smul.addr %s4386, 2
          %s4390 = smul.addr %s26, 32
          %s4391 = sadd.s32 %s4389, %s4390
          %s4392 = smul.addr %s4391, 4
          %s4393 = scalar_lea.hbm %s7, %s4392
          %s4394 = sshll.u32 %s4382, 4
          %s4395 = int_to_ptr.vmem [resolvable:$true] %s4394
          %s4396 = sshll.u32 %s4393, 4
          %s4397 = int_to_ptr.hbm [resolvable:$true] %s4396
          %4402 = dma.vmem_to_hbm [thread:$0]  %s4395, 1024, %s4397, %s4379, 64, 64, 4
        $region64: #{tpu_custom_call.1} parent=47 // pred_fallthru
          _
      $region48: #{tpu_custom_call.1} parent=5 // pred_fallthru
        _
      %p4403 = scmp.le.s32.totalorder 2, %s17
      // Predicated region
      $region65: #{tpu_custom_call.1} parent=5 // pred_check
        %p4404 = pneg %p4403
      $region66: #{tpu_custom_call.1} parent=5 // pred_check_branch
        %4406 = sbr.rel (%p4404) target = $region68
      $region67: #{tpu_custom_call.1} parent=5 // pred_region
        %s4407 = ssub.s32 %s17, 2
        // Predicated region
        $region69: #{tpu_custom_call.1} parent=67 // pred_check
          %p4408 = pneg %p214
        $region70: #{tpu_custom_call.1} parent=67 // pred_check_branch
          %4410 = sbr.rel (%p4408) target = $region72
        $region71: #{tpu_custom_call.1} parent=67 // pred_region
          %s4411 = sand.u32 %s199, 1
          %s4412 = scalar_lea.sflag [#allocation5], %s4411
          %s4413 = sand.u32 %s199, 1
          %s4414 = smul.addr %s4413, 64
          %s4415 = scalar_lea.vmem [#allocation6], %s4414
          %4417 = dma.done %s4412, 1024
        $region72: #{tpu_custom_call.1} parent=67 // pred_fallthru
          _
      $region68: #{tpu_custom_call.1} parent=5 // pred_fallthru
        _
    $region6: #{tpu_custom_call.1} parent=1 // loop_footer
      %s21 = sadd.s32 1, %s17
    $region7: #{tpu_custom_call.1} parent=1 // loop_footer_branch
      %16 = sbr.rel target = $region3
    $region8: #{tpu_custom_call.1} parent=1 // loop_exit
      _
    %4418 = vsyncpa [#allocation4], 1
    %s4419 = scalar_lea.sflag [#allocation4], 1
    %4420 = vsyncpa %s4419, 1
    %4421 = vsyncpa [#allocation5], 1
    %s4422 = scalar_lea.sflag [#allocation5], 1
    %4423 = vsyncpa %s4422, 1

</llo_original>
